<compile_context>
chip_gen: v5e
topology: v5e:2x2
jax: 0.10.0
libtpu: 0.0.40
codegen_flags: <defaults>
</compile_context>

<pallas_src>
import functools

import jax
import jax.numpy as jnp
from jax.experimental import pallas as pl
from jax.experimental.pallas import tpu as pltpu


# ----------------------------------------------------------------------------
# Small helpers: padded-size VMEM accounting and per-generation VMEM limits.
# ----------------------------------------------------------------------------
def _round_up(x, m):
    return (x + m - 1) // m * m


def _padded_elems(shape):
    """Element count after (8, 128) sublane/lane padding of the last two dims."""
    s = list(shape)
    if len(s) >= 1:
        s[-1] = _round_up(s[-1], 128)
    if len(s) >= 2:
        s[-2] = _round_up(s[-2], 8)
    n = 1
    for d in s:
        n *= d
    return n


def _vmem_limit_bytes():
    """96 MiB on 128-MiB VMEM parts (v5e/v6e), 48 MiB on v7x / unknown."""
    try:
        info = pltpu.get_tpu_info()
        cap = int(getattr(info, "vmem_capacity_bytes", 0))
    except Exception:
        cap = 0
    if cap >= 100 * (1 << 20):
        return 96 * (1 << 20)
    return 48 * (1 << 20)


# ----------------------------------------------------------------------------
# Fused ImpalaBlock kernel builder (one batch-block per grid step).
# ----------------------------------------------------------------------------
def _build_kernel(nb, H, W, cin, cout, compute_dtype, out_dtype):
    Hp, Wp = H + 2, W + 2
    Ho, Wo = H // 2, W // 2

    def conv3x3(pad_ref, wmat_ref, b_ref, h, w):
        """3x3 conv over a zero-pre-padded (nb, h+2, w+2, ci) VMEM buffer.

        Single im2col-style dot with K = 9*ci and bf16/f32 operands,
        f32 accumulation, bias added in f32.
        """
        ci = pad_ref.shape[-1]
        co = wmat_ref.shape[-1]
        m = nb * h * w
        taps = []
        for dy in range(3):
            for dx in range(3):
                tap = pad_ref[:, dy:dy + h, dx:dx + w, :]
                taps.append(tap.reshape(m, ci).astype(compute_dtype))
        patches = jnp.concatenate(taps, axis=-1)                  # (m, 9*ci)
        acc = jnp.dot(patches, wmat_ref[...].astype(compute_dtype),
                      preferred_element_type=jnp.float32)          # (m, co)
        acc = acc + b_ref[...]                                     # (1, co)
        return acc.reshape(nb, h, w, co)
        # TODO(synk): for very large batch blocks, chunk m with lax.fori_loop
        # (unroll=True) to bound live ranges; unnecessary at these block sizes.

    def kernel(x_ref,
               w0_ref, b0_ref, w1_ref, b1_ref, w2_ref, b2_ref,
               w3_ref, b3_ref, w4_ref, b4_ref,
               o_ref,
               padx_ref, padp_ref, padr_ref, act_ref):
        f32 = jnp.float32

        # ---- stem conv: zero only the halo strips, interior = x -----------
        zrow = jnp.zeros((nb, 1, Wp, cin), f32)
        zcol = jnp.zeros((nb, Hp, 1, cin), f32)
        padx_ref[:, 0:1, :, :] = zrow
        padx_ref[:, Hp - 1:Hp, :, :] = zrow
        padx_ref[:, :, 0:1, :] = zcol
        padx_ref[:, :, Wp - 1:Wp, :] = zcol
        padx_ref[:, 1:H + 1, 1:W + 1, :] = x_ref[...].astype(f32)
        h0 = conv3x3(padx_ref, w0_ref, b0_ref, H, W)               # (nb,H,W,cout)

        # ---- maxpool 3x3 / stride 2 / pad 1 --------------------------------
        # Only top/left halos are ever read for even H, W -> (H+1, W+1) buffer.
        ninf = jnp.full((nb, 1, W + 1, cout), -jnp.inf, f32)
        padp_ref[:, 0:1, :, :] = ninf
        padp_ref[:, :, 0:1, :] = jnp.full((nb, H + 1, 1, cout), -jnp.inf, f32)
        padp_ref[:, 1:H + 1, 1:W + 1, :] = h0
        # Unstrided vertical 3-tap max, unstrided horizontal 3-tap max, then
        # a single stride-2 selection (one strided read instead of nine).
        vmax = jnp.maximum(jnp.maximum(padp_ref[:, 0:H - 1, :, :],
                                       padp_ref[:, 1:H, :, :]),
                           padp_ref[:, 2:H + 1, :, :])             # (nb,H-1,W+1,cout)
        hmax = jnp.maximum(jnp.maximum(vmax[:, :, 0:W - 1, :],
                                       vmax[:, :, 1:W, :]),
                           vmax[:, :, 2:W + 1, :])                 # (nb,H-1,W-1,cout)
        padp_ref[:, 0:H - 1, 0:W - 1, :] = hmax
        act_ref[...] = padp_ref[:, pl.ds(0, Ho, 2), pl.ds(0, Wo, 2), :]

        # ---- residual blocks: zero halo strips of the shared pad buffer ----
        zrow_r = jnp.zeros((nb, 1, Wo + 2, cout), f32)
        zcol_r = jnp.zeros((nb, Ho + 2, 1, cout), f32)
        padr_ref[:, 0:1, :, :] = zrow_r
        padr_ref[:, Ho + 1:Ho + 2, :, :] = zrow_r
        padr_ref[:, :, 0:1, :] = zcol_r
        padr_ref[:, :, Wo + 1:Wo + 2, :] = zcol_r

        def residual_block(wa_ref, ba_ref, wb_ref, bb_ref):
            xin = act_ref[...]
            padr_ref[:, 1:Ho + 1, 1:Wo + 1, :] = jnp.maximum(xin, 0.0)
            a = conv3x3(padr_ref, wa_ref, ba_ref, Ho, Wo)
            padr_ref[:, 1:Ho + 1, 1:Wo + 1, :] = jnp.maximum(a, 0.0)
            return conv3x3(padr_ref, wb_ref, bb_ref, Ho, Wo) + xin

        act_ref[...] = residual_block(w1_ref, b1_ref, w2_ref, b2_ref)
        out = residual_block(w3_ref, b3_ref, w4_ref, b4_ref)
        # Lane-dense store: (nb, Ho, Wo*cout) slab; wrapper un-merges cheaply.
        o_ref[...] = out.reshape(nb, Ho, Wo * cout).astype(out_dtype)

    return kernel


# ----------------------------------------------------------------------------
# Wrapper: weight prep, padded-size VMEM budgeting, grid policy, pallas_call.
# ----------------------------------------------------------------------------
def impala_block(x_nchw, params, *, use_bf16=True):
    w0, b0 = params["conv"]
    w1, b1 = params["res1_conv1"]
    w2, b2 = params["res1_conv2"]
    w3, b3 = params["res2_conv1"]
    w4, b4 = params["res2_conv2"]

    x = jnp.transpose(x_nchw, (0, 2, 3, 1))                  # NCHW -> NHWC
    n, h, w, cin = x.shape
    cout = w0.shape[-1]
    assert h % 2 == 0 and w % 2 == 0, "kernel assumes even spatial dims"
    ho, wo = h // 2, w // 2

    # im2col weight prep: HWIO (3,3,ci,co) -> (9*ci, co); biases -> (1, co).
    wmats = [wt.reshape(-1, wt.shape[-1]) for wt in (w0, w1, w2, w3, w4)]
    biases = [b.reshape(1, -1) for b in (b0, b1, b2, b3, b4)]

    vmem_limit = _vmem_limit_bytes()
    budget = (vmem_limit * 3) // 4
    f32b = 4

    def block_bytes(nb):
        tot = 0
        tot += 2 * f32b * _padded_elems((nb, h, w, cin))          # x block (2x)
        tot += 2 * f32b * _padded_elems((nb, ho, wo * cout))      # out block (2x)
        tot += f32b * _padded_elems((nb, h + 2, w + 2, cin))      # padx scratch
        tot += f32b * _padded_elems((nb, h + 1, w + 1, cout))     # padp scratch
        tot += f32b * _padded_elems((nb, ho + 2, wo + 2, cout))   # padr scratch
        tot += f32b * _padded_elems((nb, ho, wo, cout))           # act scratch
        # Live-value headroom: im2col patches + conv results.
        tot += f32b * _padded_elems((nb * h * w, 9 * cin))
        tot += 3 * f32b * _padded_elems((nb, h, w, cout))
        tot += f32b * _padded_elems((nb * ho * wo, 9 * cout))
        tot += 3 * f32b * _padded_elems((nb, ho, wo, cout))
        for wm in wmats:
            tot += 2 * f32b * _padded_elems(wm.shape)
        for bs in biases:
            tot += 2 * f32b * _padded_elems(bs.shape)
        return tot

    # Largest batch block that fits, while keeping >=4 (else >=2) grid steps
    # so the input/output DMAs pipeline and v7x can shard across its 2 TCs.
    fitting = [nb for nb in range(1, n + 1)
               if n % nb == 0 and block_bytes(nb) <= budget] or [1]
    nb = 1
    for min_steps in (4, 2, 1):
        cand = [b for b in fitting if n // b >= min_steps]
        if cand:
            nb = max(cand)
            break

    compute_dtype = jnp.bfloat16 if use_bf16 else jnp.float32
    kernel = _build_kernel(nb, h, w, cin, cout, compute_dtype, x.dtype)

    in_specs = [pl.BlockSpec((nb, h, w, cin), lambda i: (i, 0, 0, 0))]
    args = [x]
    for wm, bs in zip(wmats, biases):
        in_specs.append(pl.BlockSpec(wm.shape, lambda i: (0, 0)))
        in_specs.append(pl.BlockSpec(bs.shape, lambda i: (0, 0)))
        args.append(wm)
        args.append(bs)

    out_slab = pl.pallas_call(
        kernel,
        out_shape=jax.ShapeDtypeStruct((n, ho, wo * cout), x.dtype),
        grid=(n // nb,),
        in_specs=in_specs,
        out_specs=pl.BlockSpec((nb, ho, wo * cout), lambda i: (i, 0, 0)),
        scratch_shapes=[
            pltpu.VMEM((nb, h + 2, w + 2, cin), jnp.float32),     # padded stem in
            pltpu.VMEM((nb, h + 1, w + 1, cout), jnp.float32),    # padded pool in
            pltpu.VMEM((nb, ho + 2, wo + 2, cout), jnp.float32),  # padded res in
            pltpu.VMEM((nb, ho, wo, cout), jnp.float32),          # activation carry
        ],
        compiler_params=pltpu.CompilerParams(
            dimension_semantics=("parallel",),
            vmem_limit_bytes=vmem_limit,
        ),
    )(*args)

    out = out_slab.reshape(n, ho, wo, cout)
    return jnp.transpose(out, (0, 3, 1, 2))                  # NHWC -> NCHW


# ----------------------------------------------------------------------------
# Params + pure-JAX reference for validation.
# ----------------------------------------------------------------------------
def init_impala_block_params(key, in_channels, out_channels, dtype=jnp.float32):
    """Deterministic init mimicking nn.Conv2d default (uniform +/- 1/sqrt(fan_in))."""
    keys = jax.random.split(key, 5)

    def conv_params(k, cin, cout):
        kw, kb = jax.random.split(k)
        scale = (cin * 9) ** -0.5
        wgt = jax.random.uniform(kw, (3, 3, cin, cout), dtype, -scale, scale)
        b = jax.random.uniform(kb, (cout,), dtype, -scale, scale)
        return wgt, b

    return {
        "conv": conv_params(keys[0], in_channels, out_channels),
        "res1_conv1": conv_params(keys[1], out_channels, out_channels),
        "res1_conv2": conv_params(keys[2], out_channels, out_channels),
        "res2_conv1": conv_params(keys[3], out_channels, out_channels),
        "res2_conv2": conv_params(keys[4], out_channels, out_channels),
    }


def _reference_impala_block(x_nchw, params):
    x = jnp.transpose(x_nchw, (0, 2, 3, 1))

    def conv(hid, wb):
        wgt, b = wb
        return jax.lax.conv_general_dilated(
            hid, wgt, window_strides=(1, 1), padding=((1, 1), (1, 1)),
            dimension_numbers=("NHWC", "HWIO", "NHWC")) + b

    hid = conv(x, params["conv"])
    hid = jax.lax.reduce_window(
        hid, -jnp.inf, jax.lax.max, (1, 3, 3, 1), (1, 2, 2, 1),
        ((0, 0), (1, 1), (1, 1), (0, 0)))

    def res(hid, c1, c2):
        out = conv(jax.nn.relu(hid), c1)
        out = conv(jax.nn.relu(out), c2)
        return out + hid

    hid = res(hid, params["res1_conv1"], params["res1_conv2"])
    hid = res(hid, params["res2_conv1"], params["res2_conv2"])
    return jnp.transpose(hid, (0, 3, 1, 2))


if __name__ == "__main__":
    key = jax.random.PRNGKey(0)
    kx, kp = jax.random.split(key)

    in_channels, out_channels = 4, 8
    x = jax.random.normal(kx, (2, in_channels, 16, 16), jnp.float32)   # NCHW
    params = init_impala_block_params(kp, in_channels, out_channels)

    # Default (bf16 MXU operands, f32 accumulation) path.
    out = jax.jit(impala_block)(x, params)
    jax.block_until_ready(out)
    assert out.shape == (2, out_channels, 8, 8), out.shape
    assert out.dtype == jnp.float32

    ref = _reference_impala_block(x, params)
    err_bf16 = float(jnp.max(jnp.abs(out - ref)))
    assert err_bf16 < 5e-2, f"bf16-path max abs error vs reference: {err_bf16}"

    # Strict check on the all-f32 path (catches indexing/semantics regressions).
    out_f32 = jax.jit(functools.partial(impala_block, use_bf16=False))(x, params)
    jax.block_until_ready(out_f32)
    err_f32 = float(jnp.max(jnp.abs(out_f32 - ref)))
    assert err_f32 < 2e-4, f"f32-path max abs error vs reference: {err_f32}"

    print("KERNEL_OK")
</pallas_src>

<mosaic_0001>
module attributes {stable_mosaic.version = 11 : i64} {
  func.func @kernel(%arg0: i32, %arg1: memref<1x16x16x4xf32, #tpu.memory_space<vmem>>, %arg2: memref<36x8xf32, #tpu.memory_space<vmem>>, %arg3: memref<1x8xf32, #tpu.memory_space<vmem>>, %arg4: memref<72x8xf32, #tpu.memory_space<vmem>>, %arg5: memref<1x8xf32, #tpu.memory_space<vmem>>, %arg6: memref<72x8xf32, #tpu.memory_space<vmem>>, %arg7: memref<1x8xf32, #tpu.memory_space<vmem>>, %arg8: memref<72x8xf32, #tpu.memory_space<vmem>>, %arg9: memref<1x8xf32, #tpu.memory_space<vmem>>, %arg10: memref<72x8xf32, #tpu.memory_space<vmem>>, %arg11: memref<1x8xf32, #tpu.memory_space<vmem>>, %arg12: memref<1x8x64xf32, #tpu.memory_space<vmem>>, %arg13: memref<1x18x18x4xf32, #tpu.memory_space<vmem>>, %arg14: memref<1x17x17x8xf32, #tpu.memory_space<vmem>>, %arg15: memref<1x10x10x8xf32, #tpu.memory_space<vmem>>, %arg16: memref<1x8x8x8xf32, #tpu.memory_space<vmem>>) attributes {dimension_semantics = [#tpu.dimension_semantics<parallel>], iteration_bounds = array<i64: 2>, scalar_prefetch = 0 : i64, scratch_operands = 4 : i64, tpu.core_type = #tpu.core_type<tc>, window_params = [{transform_indices = @transform_0, window_bounds = array<i64: 1, 16, 16, 4>}, {pipeline_mode = #tpu.pipeline_mode<synchronous>, transform_indices = @transform_1, window_bounds = array<i64: 36, 8>}, {pipeline_mode = #tpu.pipeline_mode<synchronous>, transform_indices = @transform_2, window_bounds = array<i64: 1, 8>}, {pipeline_mode = #tpu.pipeline_mode<synchronous>, transform_indices = @transform_3, window_bounds = array<i64: 72, 8>}, {pipeline_mode = #tpu.pipeline_mode<synchronous>, transform_indices = @transform_4, window_bounds = array<i64: 1, 8>}, {pipeline_mode = #tpu.pipeline_mode<synchronous>, transform_indices = @transform_5, window_bounds = array<i64: 72, 8>}, {pipeline_mode = #tpu.pipeline_mode<synchronous>, transform_indices = @transform_6, window_bounds = array<i64: 1, 8>}, {pipeline_mode = #tpu.pipeline_mode<synchronous>, transform_indices = @transform_7, window_bounds = array<i64: 72, 8>}, {pipeline_mode = #tpu.pipeline_mode<synchronous>, transform_indices = @transform_8, window_bounds = array<i64: 1, 8>}, {pipeline_mode = #tpu.pipeline_mode<synchronous>, transform_indices = @transform_9, window_bounds = array<i64: 72, 8>}, {pipeline_mode = #tpu.pipeline_mode<synchronous>, transform_indices = @transform_10, window_bounds = array<i64: 1, 8>}, {transform_indices = @transform_11, window_bounds = array<i64: 1, 8, 64>}]} {
    %cst = arith.constant 0.000000e+00 : f32
    %0 = vector.broadcast %cst : f32 to vector<1x1x18x4xf32>
    %cst_0 = arith.constant 0.000000e+00 : f32
    %1 = vector.broadcast %cst_0 : f32 to vector<1x18x1x4xf32>
    %c0 = arith.constant 0 : index
    %c0_1 = arith.constant 0 : index
    %c0_2 = arith.constant 0 : index
    %c0_3 = arith.constant 0 : index
    %2 = vector.load %arg13[%c0, %c0_1, %c0_2, %c0_3] : memref<1x18x18x4xf32, #tpu.memory_space<vmem>>, vector<1x1x18x4xf32>
    tpu.vector_store %arg13[%c0, %c0_1, %c0_2, %c0_3], %0 {strides = array<i32>} : memref<1x18x18x4xf32, #tpu.memory_space<vmem>>, vector<1x1x18x4xf32>,
    %c0_4 = arith.constant 0 : index
    %c17 = arith.constant 17 : index
    %c0_5 = arith.constant 0 : index
    %c0_6 = arith.constant 0 : index
    %3 = vector.load %arg13[%c0_4, %c17, %c0_5, %c0_6] : memref<1x18x18x4xf32, #tpu.memory_space<vmem>>, vector<1x1x18x4xf32>
    tpu.vector_store %arg13[%c0_4, %c17, %c0_5, %c0_6], %0 {strides = array<i32>} : memref<1x18x18x4xf32, #tpu.memory_space<vmem>>, vector<1x1x18x4xf32>,
    %c0_7 = arith.constant 0 : index
    %c0_8 = arith.constant 0 : index
    %c0_9 = arith.constant 0 : index
    %c0_10 = arith.constant 0 : index
    %4 = vector.load %arg13[%c0_7, %c0_8, %c0_9, %c0_10] : memref<1x18x18x4xf32, #tpu.memory_space<vmem>>, vector<1x18x1x4xf32>
    tpu.vector_store %arg13[%c0_7, %c0_8, %c0_9, %c0_10], %1 {strides = array<i32>} : memref<1x18x18x4xf32, #tpu.memory_space<vmem>>, vector<1x18x1x4xf32>,
    %c0_11 = arith.constant 0 : index
    %c0_12 = arith.constant 0 : index
    %c17_13 = arith.constant 17 : index
    %c0_14 = arith.constant 0 : index
    %5 = vector.load %arg13[%c0_11, %c0_12, %c17_13, %c0_14] : memref<1x18x18x4xf32, #tpu.memory_space<vmem>>, vector<1x18x1x4xf32>
    tpu.vector_store %arg13[%c0_11, %c0_12, %c17_13, %c0_14], %1 {strides = array<i32>} : memref<1x18x18x4xf32, #tpu.memory_space<vmem>>, vector<1x18x1x4xf32>,
    %c0_15 = arith.constant 0 : index
    %c0_16 = arith.constant 0 : index
    %c0_17 = arith.constant 0 : index
    %c0_18 = arith.constant 0 : index
    %6 = vector.load %arg1[%c0_15, %c0_16, %c0_17, %c0_18] : memref<1x16x16x4xf32, #tpu.memory_space<vmem>>, vector<1x16x16x4xf32>
    %c0_19 = arith.constant 0 : index
    %c1 = arith.constant 1 : index
    %c1_20 = arith.constant 1 : index
    %c0_21 = arith.constant 0 : index
    %7 = vector.load %arg13[%c0_19, %c1, %c1_20, %c0_21] : memref<1x18x18x4xf32, #tpu.memory_space<vmem>>, vector<1x16x16x4xf32>
    tpu.vector_store %arg13[%c0_19, %c1, %c1_20, %c0_21], %6 {strides = array<i32>} : memref<1x18x18x4xf32, #tpu.memory_space<vmem>>, vector<1x16x16x4xf32>,
    %c0_22 = arith.constant 0 : index
    %c0_23 = arith.constant 0 : index
    %c0_24 = arith.constant 0 : index
    %c0_25 = arith.constant 0 : index
    %8 = vector.load %arg13[%c0_22, %c0_23, %c0_24, %c0_25] : memref<1x18x18x4xf32, #tpu.memory_space<vmem>>, vector<1x16x16x4xf32>
    %9 = vector.shape_cast %8 : vector<1x16x16x4xf32> to vector<256x4xf32>
    %10 = arith.truncf %9 : vector<256x4xf32> to vector<256x4xbf16>
    %c0_26 = arith.constant 0 : index
    %c0_27 = arith.constant 0 : index
    %c1_28 = arith.constant 1 : index
    %c0_29 = arith.constant 0 : index
    %11 = vector.load %arg13[%c0_26, %c0_27, %c1_28, %c0_29] : memref<1x18x18x4xf32, #tpu.memory_space<vmem>>, vector<1x16x16x4xf32>
    %12 = vector.shape_cast %11 : vector<1x16x16x4xf32> to vector<256x4xf32>
    %13 = arith.truncf %12 : vector<256x4xf32> to vector<256x4xbf16>
    %c0_30 = arith.constant 0 : index
    %c0_31 = arith.constant 0 : index
    %c2 = arith.constant 2 : index
    %c0_32 = arith.constant 0 : index
    %14 = vector.load %arg13[%c0_30, %c0_31, %c2, %c0_32] : memref<1x18x18x4xf32, #tpu.memory_space<vmem>>, vector<1x16x16x4xf32>
    %15 = vector.shape_cast %14 : vector<1x16x16x4xf32> to vector<256x4xf32>
    %16 = arith.truncf %15 : vector<256x4xf32> to vector<256x4xbf16>
    %c0_33 = arith.constant 0 : index
    %c1_34 = arith.constant 1 : index
    %c0_35 = arith.constant 0 : index
    %c0_36 = arith.constant 0 : index
    %17 = vector.load %arg13[%c0_33, %c1_34, %c0_35, %c0_36] : memref<1x18x18x4xf32, #tpu.memory_space<vmem>>, vector<1x16x16x4xf32>
    %18 = vector.shape_cast %17 : vector<1x16x16x4xf32> to vector<256x4xf32>
    %19 = arith.truncf %18 : vector<256x4xf32> to vector<256x4xbf16>
    %c0_37 = arith.constant 0 : index
    %c1_38 = arith.constant 1 : index
    %c1_39 = arith.constant 1 : index
    %c0_40 = arith.constant 0 : index
    %20 = vector.load %arg13[%c0_37, %c1_38, %c1_39, %c0_40] : memref<1x18x18x4xf32, #tpu.memory_space<vmem>>, vector<1x16x16x4xf32>
    %21 = vector.shape_cast %20 : vector<1x16x16x4xf32> to vector<256x4xf32>
    %22 = arith.truncf %21 : vector<256x4xf32> to vector<256x4xbf16>
    %c0_41 = arith.constant 0 : index
    %c1_42 = arith.constant 1 : index
    %c2_43 = arith.constant 2 : index
    %c0_44 = arith.constant 0 : index
    %23 = vector.load %arg13[%c0_41, %c1_42, %c2_43, %c0_44] : memref<1x18x18x4xf32, #tpu.memory_space<vmem>>, vector<1x16x16x4xf32>
    %24 = vector.shape_cast %23 : vector<1x16x16x4xf32> to vector<256x4xf32>
    %25 = arith.truncf %24 : vector<256x4xf32> to vector<256x4xbf16>
    %c0_45 = arith.constant 0 : index
    %c2_46 = arith.constant 2 : index
    %c0_47 = arith.constant 0 : index
    %c0_48 = arith.constant 0 : index
    %26 = vector.load %arg13[%c0_45, %c2_46, %c0_47, %c0_48] : memref<1x18x18x4xf32, #tpu.memory_space<vmem>>, vector<1x16x16x4xf32>
    %27 = vector.shape_cast %26 : vector<1x16x16x4xf32> to vector<256x4xf32>
    %28 = arith.truncf %27 : vector<256x4xf32> to vector<256x4xbf16>
    %c0_49 = arith.constant 0 : index
    %c2_50 = arith.constant 2 : index
    %c1_51 = arith.constant 1 : index
    %c0_52 = arith.constant 0 : index
    %29 = vector.load %arg13[%c0_49, %c2_50, %c1_51, %c0_52] : memref<1x18x18x4xf32, #tpu.memory_space<vmem>>, vector<1x16x16x4xf32>
    %30 = vector.shape_cast %29 : vector<1x16x16x4xf32> to vector<256x4xf32>
    %31 = arith.truncf %30 : vector<256x4xf32> to vector<256x4xbf16>
    %c0_53 = arith.constant 0 : index
    %c2_54 = arith.constant 2 : index
    %c2_55 = arith.constant 2 : index
    %c0_56 = arith.constant 0 : index
    %32 = vector.load %arg13[%c0_53, %c2_54, %c2_55, %c0_56] : memref<1x18x18x4xf32, #tpu.memory_space<vmem>>, vector<1x16x16x4xf32>
    %33 = vector.shape_cast %32 : vector<1x16x16x4xf32> to vector<256x4xf32>
    %34 = arith.truncf %33 : vector<256x4xf32> to vector<256x4xbf16>
    %35 = tpu.concatenate %10, %13, %16, %19, %22, %25, %28, %31, %34 in 1 : vector<256x4xbf16>, vector<256x4xbf16>, vector<256x4xbf16>, vector<256x4xbf16>, vector<256x4xbf16>, vector<256x4xbf16>, vector<256x4xbf16>, vector<256x4xbf16>, vector<256x4xbf16> -> vector<256x36xbf16>
    %c0_57 = arith.constant 0 : index
    %c0_58 = arith.constant 0 : index
    %36 = vector.load %arg2[%c0_57, %c0_58] : memref<36x8xf32, #tpu.memory_space<vmem>>, vector<36x8xf32>
    %37 = arith.truncf %36 : vector<36x8xf32> to vector<36x8xbf16>
    %cst_59 = arith.constant dense<0.000000e+00> : vector<256x8xf32>
    %38 = tpu.matmul %35, %37, %cst_59 {dimension_numbers = #tpu.dot_dimension_numbers<[1], [0], [0], [1], [0, 0, 1, 1], [], []>} : vector<256x36xbf16>, vector<36x8xbf16>, vector<256x8xf32> -> vector<256x8xf32>
    %c0_60 = arith.constant 0 : index
    %c0_61 = arith.constant 0 : index
    %39 = vector.load %arg3[%c0_60, %c0_61] : memref<1x8xf32, #tpu.memory_space<vmem>>, vector<1x8xf32>
    %40 = vector.broadcast %39 : vector<1x8xf32> to vector<256x8xf32>
    %41 = arith.addf %38, %40 : vector<256x8xf32>
    %42 = vector.shape_cast %41 : vector<256x8xf32> to vector<1x16x16x8xf32>
    %cst_62 = arith.constant 0xFF800000 : f32
    %43 = vector.broadcast %cst_62 : f32 to vector<1x1x17x8xf32>
    %c0_63 = arith.constant 0 : index
    %c0_64 = arith.constant 0 : index
    %c0_65 = arith.constant 0 : index
    %c0_66 = arith.constant 0 : index
    %44 = vector.load %arg14[%c0_63, %c0_64, %c0_65, %c0_66] : memref<1x17x17x8xf32, #tpu.memory_space<vmem>>, vector<1x1x17x8xf32>
    tpu.vector_store %arg14[%c0_63, %c0_64, %c0_65, %c0_66], %43 {strides = array<i32>} : memref<1x17x17x8xf32, #tpu.memory_space<vmem>>, vector<1x1x17x8xf32>,
    %cst_67 = arith.constant 0xFF800000 : f32
    %45 = vector.broadcast %cst_67 : f32 to vector<1x17x1x8xf32>
    %c0_68 = arith.constant 0 : index
    %c0_69 = arith.constant 0 : index
    %c0_70 = arith.constant 0 : index
    %c0_71 = arith.constant 0 : index
    %46 = vector.load %arg14[%c0_68, %c0_69, %c0_70, %c0_71] : memref<1x17x17x8xf32, #tpu.memory_space<vmem>>, vector<1x17x1x8xf32>
    tpu.vector_store %arg14[%c0_68, %c0_69, %c0_70, %c0_71], %45 {strides = array<i32>} : memref<1x17x17x8xf32, #tpu.memory_space<vmem>>, vector<1x17x1x8xf32>,
    %c0_72 = arith.constant 0 : index
    %c1_73 = arith.constant 1 : index
    %c1_74 = arith.constant 1 : index
    %c0_75 = arith.constant 0 : index
    %47 = vector.load %arg14[%c0_72, %c1_73, %c1_74, %c0_75] : memref<1x17x17x8xf32, #tpu.memory_space<vmem>>, vector<1x16x16x8xf32>
    tpu.vector_store %arg14[%c0_72, %c1_73, %c1_74, %c0_75], %42 {strides = array<i32>} : memref<1x17x17x8xf32, #tpu.memory_space<vmem>>, vector<1x16x16x8xf32>,
    %c0_76 = arith.constant 0 : index
    %c0_77 = arith.constant 0 : index
    %c0_78 = arith.constant 0 : index
    %c0_79 = arith.constant 0 : index
    %48 = vector.load %arg14[%c0_76, %c0_77, %c0_78, %c0_79] : memref<1x17x17x8xf32, #tpu.memory_space<vmem>>, vector<1x15x17x8xf32>
    %c0_80 = arith.constant 0 : index
    %c1_81 = arith.constant 1 : index
    %c0_82 = arith.constant 0 : index
    %c0_83 = arith.constant 0 : index
    %49 = vector.load %arg14[%c0_80, %c1_81, %c0_82, %c0_83] : memref<1x17x17x8xf32, #tpu.memory_space<vmem>>, vector<1x15x17x8xf32>
    %50 = arith.maximumf %48, %49 : vector<1x15x17x8xf32>
    %c0_84 = arith.constant 0 : index
    %c2_85 = arith.constant 2 : index
    %c0_86 = arith.constant 0 : index
    %c0_87 = arith.constant 0 : index
    %51 = vector.load %arg14[%c0_84, %c2_85, %c0_86, %c0_87] : memref<1x17x17x8xf32, #tpu.memory_space<vmem>>, vector<1x15x17x8xf32>
    %52 = arith.maximumf %50, %51 : vector<1x15x17x8xf32>
    %53 = vector.extract_strided_slice %52 {offsets = [0, 0, 0, 0], sizes = [1, 15, 15, 8], strides = [1, 1, 1, 1]} : vector<1x15x17x8xf32> to vector<1x15x15x8xf32>
    %54 = vector.extract_strided_slice %52 {offsets = [0, 0, 1, 0], sizes = [1, 15, 15, 8], strides = [1, 1, 1, 1]} : vector<1x15x17x8xf32> to vector<1x15x15x8xf32>
    %55 = arith.maximumf %53, %54 : vector<1x15x15x8xf32>
    %56 = vector.extract_strided_slice %52 {offsets = [0, 0, 2, 0], sizes = [1, 15, 15, 8], strides = [1, 1, 1, 1]} : vector<1x15x17x8xf32> to vector<1x15x15x8xf32>
    %57 = arith.maximumf %55, %56 : vector<1x15x15x8xf32>
    %c0_88 = arith.constant 0 : index
    %c0_89 = arith.constant 0 : index
    %c0_90 = arith.constant 0 : index
    %c0_91 = arith.constant 0 : index
    %58 = vector.load %arg14[%c0_88, %c0_89, %c0_90, %c0_91] : memref<1x17x17x8xf32, #tpu.memory_space<vmem>>, vector<1x15x15x8xf32>
    tpu.vector_store %arg14[%c0_88, %c0_89, %c0_90, %c0_91], %57 {strides = array<i32>} : memref<1x17x17x8xf32, #tpu.memory_space<vmem>>, vector<1x15x15x8xf32>,
    %c0_92 = arith.constant 0 : index
    %c0_93 = arith.constant 0 : index
    %c0_94 = arith.constant 0 : index
    %c0_95 = arith.constant 0 : index
    %59 = tpu.strided_load %arg14[%c0_92, %c0_93, %c0_94, %c0_95] {strides = array<i32: 1, 2, 2, 1>} : memref<1x17x17x8xf32, #tpu.memory_space<vmem>>, vector<1x8x8x8xf32>
    %c0_96 = arith.constant 0 : index
    %c0_97 = arith.constant 0 : index
    %c0_98 = arith.constant 0 : index
    %c0_99 = arith.constant 0 : index
    %60 = vector.load %arg16[%c0_96, %c0_97, %c0_98, %c0_99] : memref<1x8x8x8xf32, #tpu.memory_space<vmem>>, vector<1x8x8x8xf32>
    tpu.vector_store %arg16[%c0_96, %c0_97, %c0_98, %c0_99], %59 {strides = array<i32>} : memref<1x8x8x8xf32, #tpu.memory_space<vmem>>, vector<1x8x8x8xf32>,
    %cst_100 = arith.constant 0.000000e+00 : f32
    %61 = vector.broadcast %cst_100 : f32 to vector<1x1x10x8xf32>
    %cst_101 = arith.constant 0.000000e+00 : f32
    %62 = vector.broadcast %cst_101 : f32 to vector<1x10x1x8xf32>
    %c0_102 = arith.constant 0 : index
    %c0_103 = arith.constant 0 : index
    %c0_104 = arith.constant 0 : index
    %c0_105 = arith.constant 0 : index
    %63 = vector.load %arg15[%c0_102, %c0_103, %c0_104, %c0_105] : memref<1x10x10x8xf32, #tpu.memory_space<vmem>>, vector<1x1x10x8xf32>
    tpu.vector_store %arg15[%c0_102, %c0_103, %c0_104, %c0_105], %61 {strides = array<i32>} : memref<1x10x10x8xf32, #tpu.memory_space<vmem>>, vector<1x1x10x8xf32>,
    %c0_106 = arith.constant 0 : index
    %c9 = arith.constant 9 : index
    %c0_107 = arith.constant 0 : index
    %c0_108 = arith.constant 0 : index
    %64 = vector.load %arg15[%c0_106, %c9, %c0_107, %c0_108] : memref<1x10x10x8xf32, #tpu.memory_space<vmem>>, vector<1x1x10x8xf32>
    tpu.vector_store %arg15[%c0_106, %c9, %c0_107, %c0_108], %61 {strides = array<i32>} : memref<1x10x10x8xf32, #tpu.memory_space<vmem>>, vector<1x1x10x8xf32>,
    %c0_109 = arith.constant 0 : index
    %c0_110 = arith.constant 0 : index
    %c0_111 = arith.constant 0 : index
    %c0_112 = arith.constant 0 : index
    %65 = vector.load %arg15[%c0_109, %c0_110, %c0_111, %c0_112] : memref<1x10x10x8xf32, #tpu.memory_space<vmem>>, vector<1x10x1x8xf32>
    tpu.vector_store %arg15[%c0_109, %c0_110, %c0_111, %c0_112], %62 {strides = array<i32>} : memref<1x10x10x8xf32, #tpu.memory_space<vmem>>, vector<1x10x1x8xf32>,
    %c0_113 = arith.constant 0 : index
    %c0_114 = arith.constant 0 : index
    %c9_115 = arith.constant 9 : index
    %c0_116 = arith.constant 0 : index
    %66 = vector.load %arg15[%c0_113, %c0_114, %c9_115, %c0_116] : memref<1x10x10x8xf32, #tpu.memory_space<vmem>>, vector<1x10x1x8xf32>
    tpu.vector_store %arg15[%c0_113, %c0_114, %c9_115, %c0_116], %62 {strides = array<i32>} : memref<1x10x10x8xf32, #tpu.memory_space<vmem>>, vector<1x10x1x8xf32>,
    %c0_117 = arith.constant 0 : index
    %c0_118 = arith.constant 0 : index
    %c0_119 = arith.constant 0 : index
    %c0_120 = arith.constant 0 : index
    %67 = vector.load %arg16[%c0_117, %c0_118, %c0_119, %c0_120] : memref<1x8x8x8xf32, #tpu.memory_space<vmem>>, vector<1x8x8x8xf32>
    %cst_121 = arith.constant 0.000000e+00 : f32
    %68 = vector.broadcast %cst_121 : f32 to vector<1x8x8x8xf32>
    %69 = arith.maximumf %67, %68 : vector<1x8x8x8xf32>
    %c0_122 = arith.constant 0 : index
    %c1_123 = arith.constant 1 : index
    %c1_124 = arith.constant 1 : index
    %c0_125 = arith.constant 0 : index
    %70 = vector.load %arg15[%c0_122, %c1_123, %c1_124, %c0_125] : memref<1x10x10x8xf32, #tpu.memory_space<vmem>>, vector<1x8x8x8xf32>
    tpu.vector_store %arg15[%c0_122, %c1_123, %c1_124, %c0_125], %69 {strides = array<i32>} : memref<1x10x10x8xf32, #tpu.memory_space<vmem>>, vector<1x8x8x8xf32>,
    %c0_126 = arith.constant 0 : index
    %c0_127 = arith.constant 0 : index
    %c0_128 = arith.constant 0 : index
    %c0_129 = arith.constant 0 : index
    %71 = vector.load %arg15[%c0_126, %c0_127, %c0_128, %c0_129] : memref<1x10x10x8xf32, #tpu.memory_space<vmem>>, vector<1x8x8x8xf32>
    %72 = vector.shape_cast %71 : vector<1x8x8x8xf32> to vector<64x8xf32>
    %73 = arith.truncf %72 : vector<64x8xf32> to vector<64x8xbf16>
    %c0_130 = arith.constant 0 : index
    %c0_131 = arith.constant 0 : index
    %c1_132 = arith.constant 1 : index
    %c0_133 = arith.constant 0 : index
    %74 = vector.load %arg15[%c0_130, %c0_131, %c1_132, %c0_133] : memref<1x10x10x8xf32, #tpu.memory_space<vmem>>, vector<1x8x8x8xf32>
    %75 = vector.shape_cast %74 : vector<1x8x8x8xf32> to vector<64x8xf32>
    %76 = arith.truncf %75 : vector<64x8xf32> to vector<64x8xbf16>
    %c0_134 = arith.constant 0 : index
    %c0_135 = arith.constant 0 : index
    %c2_136 = arith.constant 2 : index
    %c0_137 = arith.constant 0 : index
    %77 = vector.load %arg15[%c0_134, %c0_135, %c2_136, %c0_137] : memref<1x10x10x8xf32, #tpu.memory_space<vmem>>, vector<1x8x8x8xf32>
    %78 = vector.shape_cast %77 : vector<1x8x8x8xf32> to vector<64x8xf32>
    %79 = arith.truncf %78 : vector<64x8xf32> to vector<64x8xbf16>
    %c0_138 = arith.constant 0 : index
    %c1_139 = arith.constant 1 : index
    %c0_140 = arith.constant 0 : index
    %c0_141 = arith.constant 0 : index
    %80 = vector.load %arg15[%c0_138, %c1_139, %c0_140, %c0_141] : memref<1x10x10x8xf32, #tpu.memory_space<vmem>>, vector<1x8x8x8xf32>
    %81 = vector.shape_cast %80 : vector<1x8x8x8xf32> to vector<64x8xf32>
    %82 = arith.truncf %81 : vector<64x8xf32> to vector<64x8xbf16>
    %c0_142 = arith.constant 0 : index
    %c1_143 = arith.constant 1 : index
    %c1_144 = arith.constant 1 : index
    %c0_145 = arith.constant 0 : index
    %83 = vector.load %arg15[%c0_142, %c1_143, %c1_144, %c0_145] : memref<1x10x10x8xf32, #tpu.memory_space<vmem>>, vector<1x8x8x8xf32>
    %84 = vector.shape_cast %83 : vector<1x8x8x8xf32> to vector<64x8xf32>
    %85 = arith.truncf %84 : vector<64x8xf32> to vector<64x8xbf16>
    %c0_146 = arith.constant 0 : index
    %c1_147 = arith.constant 1 : index
    %c2_148 = arith.constant 2 : index
    %c0_149 = arith.constant 0 : index
    %86 = vector.load %arg15[%c0_146, %c1_147, %c2_148, %c0_149] : memref<1x10x10x8xf32, #tpu.memory_space<vmem>>, vector<1x8x8x8xf32>
    %87 = vector.shape_cast %86 : vector<1x8x8x8xf32> to vector<64x8xf32>
    %88 = arith.truncf %87 : vector<64x8xf32> to vector<64x8xbf16>
    %c0_150 = arith.constant 0 : index
    %c2_151 = arith.constant 2 : index
    %c0_152 = arith.constant 0 : index
    %c0_153 = arith.constant 0 : index
    %89 = vector.load %arg15[%c0_150, %c2_151, %c0_152, %c0_153] : memref<1x10x10x8xf32, #tpu.memory_space<vmem>>, vector<1x8x8x8xf32>
    %90 = vector.shape_cast %89 : vector<1x8x8x8xf32> to vector<64x8xf32>
    %91 = arith.truncf %90 : vector<64x8xf32> to vector<64x8xbf16>
    %c0_154 = arith.constant 0 : index
    %c2_155 = arith.constant 2 : index
    %c1_156 = arith.constant 1 : index
    %c0_157 = arith.constant 0 : index
    %92 = vector.load %arg15[%c0_154, %c2_155, %c1_156, %c0_157] : memref<1x10x10x8xf32, #tpu.memory_space<vmem>>, vector<1x8x8x8xf32>
    %93 = vector.shape_cast %92 : vector<1x8x8x8xf32> to vector<64x8xf32>
    %94 = arith.truncf %93 : vector<64x8xf32> to vector<64x8xbf16>
    %c0_158 = arith.constant 0 : index
    %c2_159 = arith.constant 2 : index
    %c2_160 = arith.constant 2 : index
    %c0_161 = arith.constant 0 : index
    %95 = vector.load %arg15[%c0_158, %c2_159, %c2_160, %c0_161] : memref<1x10x10x8xf32, #tpu.memory_space<vmem>>, vector<1x8x8x8xf32>
    %96 = vector.shape_cast %95 : vector<1x8x8x8xf32> to vector<64x8xf32>
    %97 = arith.truncf %96 : vector<64x8xf32> to vector<64x8xbf16>
    %98 = tpu.concatenate %73, %76, %79, %82, %85, %88, %91, %94, %97 in 1 : vector<64x8xbf16>, vector<64x8xbf16>, vector<64x8xbf16>, vector<64x8xbf16>, vector<64x8xbf16>, vector<64x8xbf16>, vector<64x8xbf16>, vector<64x8xbf16>, vector<64x8xbf16> -> vector<64x72xbf16>
    %c0_162 = arith.constant 0 : index
    %c0_163 = arith.constant 0 : index
    %99 = vector.load %arg4[%c0_162, %c0_163] : memref<72x8xf32, #tpu.memory_space<vmem>>, vector<72x8xf32>
    %100 = arith.truncf %99 : vector<72x8xf32> to vector<72x8xbf16>
    %cst_164 = arith.constant dense<0.000000e+00> : vector<64x8xf32>
    %101 = tpu.matmul %98, %100, %cst_164 {dimension_numbers = #tpu.dot_dimension_numbers<[1], [0], [0], [1], [0, 0, 1, 1], [], []>} : vector<64x72xbf16>, vector<72x8xbf16>, vector<64x8xf32> -> vector<64x8xf32>
    %c0_165 = arith.constant 0 : index
    %c0_166 = arith.constant 0 : index
    %102 = vector.load %arg5[%c0_165, %c0_166] : memref<1x8xf32, #tpu.memory_space<vmem>>, vector<1x8xf32>
    %103 = vector.broadcast %102 : vector<1x8xf32> to vector<64x8xf32>
    %104 = arith.addf %101, %103 : vector<64x8xf32>
    %105 = vector.shape_cast %104 : vector<64x8xf32> to vector<1x8x8x8xf32>
    %cst_167 = arith.constant 0.000000e+00 : f32
    %106 = vector.broadcast %cst_167 : f32 to vector<1x8x8x8xf32>
    %107 = arith.maximumf %105, %106 : vector<1x8x8x8xf32>
    %c0_168 = arith.constant 0 : index
    %c1_169 = arith.constant 1 : index
    %c1_170 = arith.constant 1 : index
    %c0_171 = arith.constant 0 : index
    %108 = vector.load %arg15[%c0_168, %c1_169, %c1_170, %c0_171] : memref<1x10x10x8xf32, #tpu.memory_space<vmem>>, vector<1x8x8x8xf32>
    tpu.vector_store %arg15[%c0_168, %c1_169, %c1_170, %c0_171], %107 {strides = array<i32>} : memref<1x10x10x8xf32, #tpu.memory_space<vmem>>, vector<1x8x8x8xf32>,
    %c0_172 = arith.constant 0 : index
    %c0_173 = arith.constant 0 : index
    %c0_174 = arith.constant 0 : index
    %c0_175 = arith.constant 0 : index
    %109 = vector.load %arg15[%c0_172, %c0_173, %c0_174, %c0_175] : memref<1x10x10x8xf32, #tpu.memory_space<vmem>>, vector<1x8x8x8xf32>
    %110 = vector.shape_cast %109 : vector<1x8x8x8xf32> to vector<64x8xf32>
    %111 = arith.truncf %110 : vector<64x8xf32> to vector<64x8xbf16>
    %c0_176 = arith.constant 0 : index
    %c0_177 = arith.constant 0 : index
    %c1_178 = arith.constant 1 : index
    %c0_179 = arith.constant 0 : index
    %112 = vector.load %arg15[%c0_176, %c0_177, %c1_178, %c0_179] : memref<1x10x10x8xf32, #tpu.memory_space<vmem>>, vector<1x8x8x8xf32>
    %113 = vector.shape_cast %112 : vector<1x8x8x8xf32> to vector<64x8xf32>
    %114 = arith.truncf %113 : vector<64x8xf32> to vector<64x8xbf16>
    %c0_180 = arith.constant 0 : index
    %c0_181 = arith.constant 0 : index
    %c2_182 = arith.constant 2 : index
    %c0_183 = arith.constant 0 : index
    %115 = vector.load %arg15[%c0_180, %c0_181, %c2_182, %c0_183] : memref<1x10x10x8xf32, #tpu.memory_space<vmem>>, vector<1x8x8x8xf32>
    %116 = vector.shape_cast %115 : vector<1x8x8x8xf32> to vector<64x8xf32>
    %117 = arith.truncf %116 : vector<64x8xf32> to vector<64x8xbf16>
    %c0_184 = arith.constant 0 : index
    %c1_185 = arith.constant 1 : index
    %c0_186 = arith.constant 0 : index
    %c0_187 = arith.constant 0 : index
    %118 = vector.load %arg15[%c0_184, %c1_185, %c0_186, %c0_187] : memref<1x10x10x8xf32, #tpu.memory_space<vmem>>, vector<1x8x8x8xf32>
    %119 = vector.shape_cast %118 : vector<1x8x8x8xf32> to vector<64x8xf32>
    %120 = arith.truncf %119 : vector<64x8xf32> to vector<64x8xbf16>
    %c0_188 = arith.constant 0 : index
    %c1_189 = arith.constant 1 : index
    %c1_190 = arith.constant 1 : index
    %c0_191 = arith.constant 0 : index
    %121 = vector.load %arg15[%c0_188, %c1_189, %c1_190, %c0_191] : memref<1x10x10x8xf32, #tpu.memory_space<vmem>>, vector<1x8x8x8xf32>
    %122 = vector.shape_cast %121 : vector<1x8x8x8xf32> to vector<64x8xf32>
    %123 = arith.truncf %122 : vector<64x8xf32> to vector<64x8xbf16>
    %c0_192 = arith.constant 0 : index
    %c1_193 = arith.constant 1 : index
    %c2_194 = arith.constant 2 : index
    %c0_195 = arith.constant 0 : index
    %124 = vector.load %arg15[%c0_192, %c1_193, %c2_194, %c0_195] : memref<1x10x10x8xf32, #tpu.memory_space<vmem>>, vector<1x8x8x8xf32>
    %125 = vector.shape_cast %124 : vector<1x8x8x8xf32> to vector<64x8xf32>
    %126 = arith.truncf %125 : vector<64x8xf32> to vector<64x8xbf16>
    %c0_196 = arith.constant 0 : index
    %c2_197 = arith.constant 2 : index
    %c0_198 = arith.constant 0 : index
    %c0_199 = arith.constant 0 : index
    %127 = vector.load %arg15[%c0_196, %c2_197, %c0_198, %c0_199] : memref<1x10x10x8xf32, #tpu.memory_space<vmem>>, vector<1x8x8x8xf32>
    %128 = vector.shape_cast %127 : vector<1x8x8x8xf32> to vector<64x8xf32>
    %129 = arith.truncf %128 : vector<64x8xf32> to vector<64x8xbf16>
    %c0_200 = arith.constant 0 : index
    %c2_201 = arith.constant 2 : index
    %c1_202 = arith.constant 1 : index
    %c0_203 = arith.constant 0 : index
    %130 = vector.load %arg15[%c0_200, %c2_201, %c1_202, %c0_203] : memref<1x10x10x8xf32, #tpu.memory_space<vmem>>, vector<1x8x8x8xf32>
    %131 = vector.shape_cast %130 : vector<1x8x8x8xf32> to vector<64x8xf32>
    %132 = arith.truncf %131 : vector<64x8xf32> to vector<64x8xbf16>
    %c0_204 = arith.constant 0 : index
    %c2_205 = arith.constant 2 : index
    %c2_206 = arith.constant 2 : index
    %c0_207 = arith.constant 0 : index
    %133 = vector.load %arg15[%c0_204, %c2_205, %c2_206, %c0_207] : memref<1x10x10x8xf32, #tpu.memory_space<vmem>>, vector<1x8x8x8xf32>
    %134 = vector.shape_cast %133 : vector<1x8x8x8xf32> to vector<64x8xf32>
    %135 = arith.truncf %134 : vector<64x8xf32> to vector<64x8xbf16>
    %136 = tpu.concatenate %111, %114, %117, %120, %123, %126, %129, %132, %135 in 1 : vector<64x8xbf16>, vector<64x8xbf16>, vector<64x8xbf16>, vector<64x8xbf16>, vector<64x8xbf16>, vector<64x8xbf16>, vector<64x8xbf16>, vector<64x8xbf16>, vector<64x8xbf16> -> vector<64x72xbf16>
    %c0_208 = arith.constant 0 : index
    %c0_209 = arith.constant 0 : index
    %137 = vector.load %arg6[%c0_208, %c0_209] : memref<72x8xf32, #tpu.memory_space<vmem>>, vector<72x8xf32>
    %138 = arith.truncf %137 : vector<72x8xf32> to vector<72x8xbf16>
    %cst_210 = arith.constant dense<0.000000e+00> : vector<64x8xf32>
    %139 = tpu.matmul %136, %138, %cst_210 {dimension_numbers = #tpu.dot_dimension_numbers<[1], [0], [0], [1], [0, 0, 1, 1], [], []>} : vector<64x72xbf16>, vector<72x8xbf16>, vector<64x8xf32> -> vector<64x8xf32>
    %c0_211 = arith.constant 0 : index
    %c0_212 = arith.constant 0 : index
    %140 = vector.load %arg7[%c0_211, %c0_212] : memref<1x8xf32, #tpu.memory_space<vmem>>, vector<1x8xf32>
    %141 = vector.broadcast %140 : vector<1x8xf32> to vector<64x8xf32>
    %142 = arith.addf %139, %141 : vector<64x8xf32>
    %143 = vector.shape_cast %142 : vector<64x8xf32> to vector<1x8x8x8xf32>
    %144 = arith.addf %143, %67 : vector<1x8x8x8xf32>
    %c0_213 = arith.constant 0 : index
    %c0_214 = arith.constant 0 : index
    %c0_215 = arith.constant 0 : index
    %c0_216 = arith.constant 0 : index
    %145 = vector.load %arg16[%c0_213, %c0_214, %c0_215, %c0_216] : memref<1x8x8x8xf32, #tpu.memory_space<vmem>>, vector<1x8x8x8xf32>
    tpu.vector_store %arg16[%c0_213, %c0_214, %c0_215, %c0_216], %144 {strides = array<i32>} : memref<1x8x8x8xf32, #tpu.memory_space<vmem>>, vector<1x8x8x8xf32>,
    %c0_217 = arith.constant 0 : index
    %c0_218 = arith.constant 0 : index
    %c0_219 = arith.constant 0 : index
    %c0_220 = arith.constant 0 : index
    %146 = vector.load %arg16[%c0_217, %c0_218, %c0_219, %c0_220] : memref<1x8x8x8xf32, #tpu.memory_space<vmem>>, vector<1x8x8x8xf32>
    %cst_221 = arith.constant 0.000000e+00 : f32
    %147 = vector.broadcast %cst_221 : f32 to vector<1x8x8x8xf32>
    %148 = arith.maximumf %146, %147 : vector<1x8x8x8xf32>
    %c0_222 = arith.constant 0 : index
    %c1_223 = arith.constant 1 : index
    %c1_224 = arith.constant 1 : index
    %c0_225 = arith.constant 0 : index
    %149 = vector.load %arg15[%c0_222, %c1_223, %c1_224, %c0_225] : memref<1x10x10x8xf32, #tpu.memory_space<vmem>>, vector<1x8x8x8xf32>
    tpu.vector_store %arg15[%c0_222, %c1_223, %c1_224, %c0_225], %148 {strides = array<i32>} : memref<1x10x10x8xf32, #tpu.memory_space<vmem>>, vector<1x8x8x8xf32>,
    %c0_226 = arith.constant 0 : index
    %c0_227 = arith.constant 0 : index
    %c0_228 = arith.constant 0 : index
    %c0_229 = arith.constant 0 : index
    %150 = vector.load %arg15[%c0_226, %c0_227, %c0_228, %c0_229] : memref<1x10x10x8xf32, #tpu.memory_space<vmem>>, vector<1x8x8x8xf32>
    %151 = vector.shape_cast %150 : vector<1x8x8x8xf32> to vector<64x8xf32>
    %152 = arith.truncf %151 : vector<64x8xf32> to vector<64x8xbf16>
    %c0_230 = arith.constant 0 : index
    %c0_231 = arith.constant 0 : index
    %c1_232 = arith.constant 1 : index
    %c0_233 = arith.constant 0 : index
    %153 = vector.load %arg15[%c0_230, %c0_231, %c1_232, %c0_233] : memref<1x10x10x8xf32, #tpu.memory_space<vmem>>, vector<1x8x8x8xf32>
    %154 = vector.shape_cast %153 : vector<1x8x8x8xf32> to vector<64x8xf32>
    %155 = arith.truncf %154 : vector<64x8xf32> to vector<64x8xbf16>
    %c0_234 = arith.constant 0 : index
    %c0_235 = arith.constant 0 : index
    %c2_236 = arith.constant 2 : index
    %c0_237 = arith.constant 0 : index
    %156 = vector.load %arg15[%c0_234, %c0_235, %c2_236, %c0_237] : memref<1x10x10x8xf32, #tpu.memory_space<vmem>>, vector<1x8x8x8xf32>
    %157 = vector.shape_cast %156 : vector<1x8x8x8xf32> to vector<64x8xf32>
    %158 = arith.truncf %157 : vector<64x8xf32> to vector<64x8xbf16>
    %c0_238 = arith.constant 0 : index
    %c1_239 = arith.constant 1 : index
    %c0_240 = arith.constant 0 : index
    %c0_241 = arith.constant 0 : index
    %159 = vector.load %arg15[%c0_238, %c1_239, %c0_240, %c0_241] : memref<1x10x10x8xf32, #tpu.memory_space<vmem>>, vector<1x8x8x8xf32>
    %160 = vector.shape_cast %159 : vector<1x8x8x8xf32> to vector<64x8xf32>
    %161 = arith.truncf %160 : vector<64x8xf32> to vector<64x8xbf16>
    %c0_242 = arith.constant 0 : index
    %c1_243 = arith.constant 1 : index
    %c1_244 = arith.constant 1 : index
    %c0_245 = arith.constant 0 : index
    %162 = vector.load %arg15[%c0_242, %c1_243, %c1_244, %c0_245] : memref<1x10x10x8xf32, #tpu.memory_space<vmem>>, vector<1x8x8x8xf32>
    %163 = vector.shape_cast %162 : vector<1x8x8x8xf32> to vector<64x8xf32>
    %164 = arith.truncf %163 : vector<64x8xf32> to vector<64x8xbf16>
    %c0_246 = arith.constant 0 : index
    %c1_247 = arith.constant 1 : index
    %c2_248 = arith.constant 2 : index
    %c0_249 = arith.constant 0 : index
    %165 = vector.load %arg15[%c0_246, %c1_247, %c2_248, %c0_249] : memref<1x10x10x8xf32, #tpu.memory_space<vmem>>, vector<1x8x8x8xf32>
    %166 = vector.shape_cast %165 : vector<1x8x8x8xf32> to vector<64x8xf32>
    %167 = arith.truncf %166 : vector<64x8xf32> to vector<64x8xbf16>
    %c0_250 = arith.constant 0 : index
    %c2_251 = arith.constant 2 : index
    %c0_252 = arith.constant 0 : index
    %c0_253 = arith.constant 0 : index
    %168 = vector.load %arg15[%c0_250, %c2_251, %c0_252, %c0_253] : memref<1x10x10x8xf32, #tpu.memory_space<vmem>>, vector<1x8x8x8xf32>
    %169 = vector.shape_cast %168 : vector<1x8x8x8xf32> to vector<64x8xf32>
    %170 = arith.truncf %169 : vector<64x8xf32> to vector<64x8xbf16>
    %c0_254 = arith.constant 0 : index
    %c2_255 = arith.constant 2 : index
    %c1_256 = arith.constant 1 : index
    %c0_257 = arith.constant 0 : index
    %171 = vector.load %arg15[%c0_254, %c2_255, %c1_256, %c0_257] : memref<1x10x10x8xf32, #tpu.memory_space<vmem>>, vector<1x8x8x8xf32>
    %172 = vector.shape_cast %171 : vector<1x8x8x8xf32> to vector<64x8xf32>
    %173 = arith.truncf %172 : vector<64x8xf32> to vector<64x8xbf16>
    %c0_258 = arith.constant 0 : index
    %c2_259 = arith.constant 2 : index
    %c2_260 = arith.constant 2 : index
    %c0_261 = arith.constant 0 : index
    %174 = vector.load %arg15[%c0_258, %c2_259, %c2_260, %c0_261] : memref<1x10x10x8xf32, #tpu.memory_space<vmem>>, vector<1x8x8x8xf32>
    %175 = vector.shape_cast %174 : vector<1x8x8x8xf32> to vector<64x8xf32>
    %176 = arith.truncf %175 : vector<64x8xf32> to vector<64x8xbf16>
    %177 = tpu.concatenate %152, %155, %158, %161, %164, %167, %170, %173, %176 in 1 : vector<64x8xbf16>, vector<64x8xbf16>, vector<64x8xbf16>, vector<64x8xbf16>, vector<64x8xbf16>, vector<64x8xbf16>, vector<64x8xbf16>, vector<64x8xbf16>, vector<64x8xbf16> -> vector<64x72xbf16>
    %c0_262 = arith.constant 0 : index
    %c0_263 = arith.constant 0 : index
    %178 = vector.load %arg8[%c0_262, %c0_263] : memref<72x8xf32, #tpu.memory_space<vmem>>, vector<72x8xf32>
    %179 = arith.truncf %178 : vector<72x8xf32> to vector<72x8xbf16>
    %cst_264 = arith.constant dense<0.000000e+00> : vector<64x8xf32>
    %180 = tpu.matmul %177, %179, %cst_264 {dimension_numbers = #tpu.dot_dimension_numbers<[1], [0], [0], [1], [0, 0, 1, 1], [], []>} : vector<64x72xbf16>, vector<72x8xbf16>, vector<64x8xf32> -> vector<64x8xf32>
    %c0_265 = arith.constant 0 : index
    %c0_266 = arith.constant 0 : index
    %181 = vector.load %arg9[%c0_265, %c0_266] : memref<1x8xf32, #tpu.memory_space<vmem>>, vector<1x8xf32>
    %182 = vector.broadcast %181 : vector<1x8xf32> to vector<64x8xf32>
    %183 = arith.addf %180, %182 : vector<64x8xf32>
    %184 = vector.shape_cast %183 : vector<64x8xf32> to vector<1x8x8x8xf32>
    %cst_267 = arith.constant 0.000000e+00 : f32
    %185 = vector.broadcast %cst_267 : f32 to vector<1x8x8x8xf32>
    %186 = arith.maximumf %184, %185 : vector<1x8x8x8xf32>
    %c0_268 = arith.constant 0 : index
    %c1_269 = arith.constant 1 : index
    %c1_270 = arith.constant 1 : index
    %c0_271 = arith.constant 0 : index
    %187 = vector.load %arg15[%c0_268, %c1_269, %c1_270, %c0_271] : memref<1x10x10x8xf32, #tpu.memory_space<vmem>>, vector<1x8x8x8xf32>
    tpu.vector_store %arg15[%c0_268, %c1_269, %c1_270, %c0_271], %186 {strides = array<i32>} : memref<1x10x10x8xf32, #tpu.memory_space<vmem>>, vector<1x8x8x8xf32>,
    %c0_272 = arith.constant 0 : index
    %c0_273 = arith.constant 0 : index
    %c0_274 = arith.constant 0 : index
    %c0_275 = arith.constant 0 : index
    %188 = vector.load %arg15[%c0_272, %c0_273, %c0_274, %c0_275] : memref<1x10x10x8xf32, #tpu.memory_space<vmem>>, vector<1x8x8x8xf32>
    %189 = vector.shape_cast %188 : vector<1x8x8x8xf32> to vector<64x8xf32>
    %190 = arith.truncf %189 : vector<64x8xf32> to vector<64x8xbf16>
    %c0_276 = arith.constant 0 : index
    %c0_277 = arith.constant 0 : index
    %c1_278 = arith.constant 1 : index
    %c0_279 = arith.constant 0 : index
    %191 = vector.load %arg15[%c0_276, %c0_277, %c1_278, %c0_279] : memref<1x10x10x8xf32, #tpu.memory_space<vmem>>, vector<1x8x8x8xf32>
    %192 = vector.shape_cast %191 : vector<1x8x8x8xf32> to vector<64x8xf32>
    %193 = arith.truncf %192 : vector<64x8xf32> to vector<64x8xbf16>
    %c0_280 = arith.constant 0 : index
    %c0_281 = arith.constant 0 : index
    %c2_282 = arith.constant 2 : index
    %c0_283 = arith.constant 0 : index
    %194 = vector.load %arg15[%c0_280, %c0_281, %c2_282, %c0_283] : memref<1x10x10x8xf32, #tpu.memory_space<vmem>>, vector<1x8x8x8xf32>
    %195 = vector.shape_cast %194 : vector<1x8x8x8xf32> to vector<64x8xf32>
    %196 = arith.truncf %195 : vector<64x8xf32> to vector<64x8xbf16>
    %c0_284 = arith.constant 0 : index
    %c1_285 = arith.constant 1 : index
    %c0_286 = arith.constant 0 : index
    %c0_287 = arith.constant 0 : index
    %197 = vector.load %arg15[%c0_284, %c1_285, %c0_286, %c0_287] : memref<1x10x10x8xf32, #tpu.memory_space<vmem>>, vector<1x8x8x8xf32>
    %198 = vector.shape_cast %197 : vector<1x8x8x8xf32> to vector<64x8xf32>
    %199 = arith.truncf %198 : vector<64x8xf32> to vector<64x8xbf16>
    %c0_288 = arith.constant 0 : index
    %c1_289 = arith.constant 1 : index
    %c1_290 = arith.constant 1 : index
    %c0_291 = arith.constant 0 : index
    %200 = vector.load %arg15[%c0_288, %c1_289, %c1_290, %c0_291] : memref<1x10x10x8xf32, #tpu.memory_space<vmem>>, vector<1x8x8x8xf32>
    %201 = vector.shape_cast %200 : vector<1x8x8x8xf32> to vector<64x8xf32>
    %202 = arith.truncf %201 : vector<64x8xf32> to vector<64x8xbf16>
    %c0_292 = arith.constant 0 : index
    %c1_293 = arith.constant 1 : index
    %c2_294 = arith.constant 2 : index
    %c0_295 = arith.constant 0 : index
    %203 = vector.load %arg15[%c0_292, %c1_293, %c2_294, %c0_295] : memref<1x10x10x8xf32, #tpu.memory_space<vmem>>, vector<1x8x8x8xf32>
    %204 = vector.shape_cast %203 : vector<1x8x8x8xf32> to vector<64x8xf32>
    %205 = arith.truncf %204 : vector<64x8xf32> to vector<64x8xbf16>
    %c0_296 = arith.constant 0 : index
    %c2_297 = arith.constant 2 : index
    %c0_298 = arith.constant 0 : index
    %c0_299 = arith.constant 0 : index
    %206 = vector.load %arg15[%c0_296, %c2_297, %c0_298, %c0_299] : memref<1x10x10x8xf32, #tpu.memory_space<vmem>>, vector<1x8x8x8xf32>
    %207 = vector.shape_cast %206 : vector<1x8x8x8xf32> to vector<64x8xf32>
    %208 = arith.truncf %207 : vector<64x8xf32> to vector<64x8xbf16>
    %c0_300 = arith.constant 0 : index
    %c2_301 = arith.constant 2 : index
    %c1_302 = arith.constant 1 : index
    %c0_303 = arith.constant 0 : index
    %209 = vector.load %arg15[%c0_300, %c2_301, %c1_302, %c0_303] : memref<1x10x10x8xf32, #tpu.memory_space<vmem>>, vector<1x8x8x8xf32>
    %210 = vector.shape_cast %209 : vector<1x8x8x8xf32> to vector<64x8xf32>
    %211 = arith.truncf %210 : vector<64x8xf32> to vector<64x8xbf16>
    %c0_304 = arith.constant 0 : index
    %c2_305 = arith.constant 2 : index
    %c2_306 = arith.constant 2 : index
    %c0_307 = arith.constant 0 : index
    %212 = vector.load %arg15[%c0_304, %c2_305, %c2_306, %c0_307] : memref<1x10x10x8xf32, #tpu.memory_space<vmem>>, vector<1x8x8x8xf32>
    %213 = vector.shape_cast %212 : vector<1x8x8x8xf32> to vector<64x8xf32>
    %214 = arith.truncf %213 : vector<64x8xf32> to vector<64x8xbf16>
    %215 = tpu.concatenate %190, %193, %196, %199, %202, %205, %208, %211, %214 in 1 : vector<64x8xbf16>, vector<64x8xbf16>, vector<64x8xbf16>, vector<64x8xbf16>, vector<64x8xbf16>, vector<64x8xbf16>, vector<64x8xbf16>, vector<64x8xbf16>, vector<64x8xbf16> -> vector<64x72xbf16>
    %c0_308 = arith.constant 0 : index
    %c0_309 = arith.constant 0 : index
    %216 = vector.load %arg10[%c0_308, %c0_309] : memref<72x8xf32, #tpu.memory_space<vmem>>, vector<72x8xf32>
    %217 = arith.truncf %216 : vector<72x8xf32> to vector<72x8xbf16>
    %cst_310 = arith.constant dense<0.000000e+00> : vector<64x8xf32>
    %218 = tpu.matmul %215, %217, %cst_310 {dimension_numbers = #tpu.dot_dimension_numbers<[1], [0], [0], [1], [0, 0, 1, 1], [], []>} : vector<64x72xbf16>, vector<72x8xbf16>, vector<64x8xf32> -> vector<64x8xf32>
    %c0_311 = arith.constant 0 : index
    %c0_312 = arith.constant 0 : index
    %219 = vector.load %arg11[%c0_311, %c0_312] : memref<1x8xf32, #tpu.memory_space<vmem>>, vector<1x8xf32>
    %220 = vector.broadcast %219 : vector<1x8xf32> to vector<64x8xf32>
    %221 = arith.addf %218, %220 : vector<64x8xf32>
    %222 = vector.shape_cast %221 : vector<64x8xf32> to vector<1x8x8x8xf32>
    %223 = arith.addf %222, %146 : vector<1x8x8x8xf32>
    %224 = vector.shape_cast %223 : vector<1x8x8x8xf32> to vector<1x8x64xf32>
    %c0_313 = arith.constant 0 : index
    %c0_314 = arith.constant 0 : index
    %c0_315 = arith.constant 0 : index
    %225 = vector.load %arg12[%c0_313, %c0_314, %c0_315] : memref<1x8x64xf32, #tpu.memory_space<vmem>>, vector<1x8x64xf32>
    tpu.vector_store %arg12[%c0_313, %c0_314, %c0_315], %224 {strides = array<i32>} : memref<1x8x64xf32, #tpu.memory_space<vmem>>, vector<1x8x64xf32>,
    return
  }
  func.func @transform_0(%arg0: i32) -> (i32, i32, i32, i32) {
    %c0_i32 = arith.constant 0 : i32
    %c0_i32_0 = arith.constant 0 : i32
    %c0_i32_1 = arith.constant 0 : i32
    %c0_i32_2 = arith.constant 0 : i32
    return %arg0, %c0_i32, %c0_i32_0, %c0_i32_1 : i32, i32, i32, i32
  }
  func.func @transform_1(%arg0: i32) -> (i32, i32) {
    %c0_i32 = arith.constant 0 : i32
    %c0_i32_0 = arith.constant 0 : i32
    %c0_i32_1 = arith.constant 0 : i32
    return %c0_i32, %c0_i32_0 : i32, i32
  }
  func.func @transform_2(%arg0: i32) -> (i32, i32) {
    %c0_i32 = arith.constant 0 : i32
    %c0_i32_0 = arith.constant 0 : i32
    %c0_i32_1 = arith.constant 0 : i32
    return %c0_i32, %c0_i32_0 : i32, i32
  }
  func.func @transform_3(%arg0: i32) -> (i32, i32) {
    %c0_i32 = arith.constant 0 : i32
    %c0_i32_0 = arith.constant 0 : i32
    %c0_i32_1 = arith.constant 0 : i32
    return %c0_i32, %c0_i32_0 : i32, i32
  }
  func.func @transform_4(%arg0: i32) -> (i32, i32) {
    %c0_i32 = arith.constant 0 : i32
    %c0_i32_0 = arith.constant 0 : i32
    %c0_i32_1 = arith.constant 0 : i32
    return %c0_i32, %c0_i32_0 : i32, i32
  }
  func.func @transform_5(%arg0: i32) -> (i32, i32) {
    %c0_i32 = arith.constant 0 : i32
    %c0_i32_0 = arith.constant 0 : i32
    %c0_i32_1 = arith.constant 0 : i32
    return %c0_i32, %c0_i32_0 : i32, i32
  }
  func.func @transform_6(%arg0: i32) -> (i32, i32) {
    %c0_i32 = arith.constant 0 : i32
    %c0_i32_0 = arith.constant 0 : i32
    %c0_i32_1 = arith.constant 0 : i32
    return %c0_i32, %c0_i32_0 : i32, i32
  }
  func.func @transform_7(%arg0: i32) -> (i32, i32) {
    %c0_i32 = arith.constant 0 : i32
    %c0_i32_0 = arith.constant 0 : i32
    %c0_i32_1 = arith.constant 0 : i32
    return %c0_i32, %c0_i32_0 : i32, i32
  }
  func.func @transform_8(%arg0: i32) -> (i32, i32) {
    %c0_i32 = arith.constant 0 : i32
    %c0_i32_0 = arith.constant 0 : i32
    %c0_i32_1 = arith.constant 0 : i32
    return %c0_i32, %c0_i32_0 : i32, i32
  }
  func.func @transform_9(%arg0: i32) -> (i32, i32) {
    %c0_i32 = arith.constant 0 : i32
    %c0_i32_0 = arith.constant 0 : i32
    %c0_i32_1 = arith.constant 0 : i32
    return %c0_i32, %c0_i32_0 : i32, i32
  }
  func.func @transform_10(%arg0: i32) -> (i32, i32) {
    %c0_i32 = arith.constant 0 : i32
    %c0_i32_0 = arith.constant 0 : i32
    %c0_i32_1 = arith.constant 0 : i32
    return %c0_i32, %c0_i32_0 : i32, i32
  }
  func.func @transform_11(%arg0: i32) -> (i32, i32, i32) {
    %c0_i32 = arith.constant 0 : i32
    %c0_i32_0 = arith.constant 0 : i32
    %c0_i32_1 = arith.constant 0 : i32
    return %arg0, %c0_i32, %c0_i32_0 : i32, i32, i32
  }
}

</mosaic_0001>

<llo_original>
// kernel: impala_block.1
$region0: #{impala_block.1}
  #allocation0 [shape = 'u32[]', space=smem, size = 0x4, offset = 0x4, fixed_abs, tag = 'smem constant byte address 0x4 - core index']
  #allocation1 [shape = 'u32[72,128]{1,0:T(1,128)}', space=vmem, size = 0x9000, scoped, tag = 'internal scratch']
  #allocation2 [shape = 'f32[1,18,18,4]{3,2,1,0:T(8,128)}', space=vmem, size = 0x36000, scoped, tag = 'scratch operand']
  #allocation3 [shape = 'f32[1,17,17,8]{3,2,1,0:T(8,128)}', space=vmem, size = 0x33000, scoped, tag = 'scratch operand']
  #allocation4 [shape = 'f32[1,10,10,8]{3,2,1,0:T(8,128)}', space=vmem, size = 0x14000, scoped, tag = 'scratch operand']
  #allocation5 [shape = 'f32[1,8,8,8]{3,2,1,0:T(8,128)}', space=vmem, size = 0x8000, scoped, tag = 'scratch operand']
  %s0 = inlined_call_operand.vmem [shape: f32[2,16,16,4], index: 0, kind: input, shape index: {}]
  %s1 = inlined_call_operand.vmem [shape: f32[36,8], index: 1, kind: input, shape index: {}]
  %s2 = inlined_call_operand.vmem [shape: f32[1,8], index: 2, kind: input, shape index: {}]
  %s3 = inlined_call_operand.vmem [shape: f32[72,8], index: 3, kind: input, shape index: {}]
  %s4 = inlined_call_operand.vmem [shape: f32[1,8], index: 4, kind: input, shape index: {}]
  %s5 = inlined_call_operand.vmem [shape: f32[72,8], index: 5, kind: input, shape index: {}]
  %s6 = inlined_call_operand.vmem [shape: f32[1,8], index: 6, kind: input, shape index: {}]
  %s7 = inlined_call_operand.vmem [shape: f32[72,8], index: 7, kind: input, shape index: {}]
  %s8 = inlined_call_operand.vmem [shape: f32[1,8], index: 8, kind: input, shape index: {}]
  %s9 = inlined_call_operand.vmem [shape: f32[72,8], index: 9, kind: input, shape index: {}]
  %s10 = inlined_call_operand.vmem [shape: f32[1,8], index: 10, kind: input, shape index: {}]
  %s11 = inlined_call_operand.vmem [shape: f32[2,8,64], index: 11, kind: output, shape index: {}]
  %s12 = sld [smem:[#allocation0]]
  $region77: #{impala_block.1} parent=0
    _
  %s14 = ssub.s32 1, %s12
  %s15 = scalar_select 0, %s14, %s12
  loop: start=0, step=1, limit=4
  $region2: #{impala_block.1} parent=0 // loop_pre_header
    _
  $region3: #{impala_block.1} parent=0 // loop_header
    %s17 = sphi 0, %s21
    %p18 = scmp.ge.s32.totalorder %s17, 4
    %s27 = sphi 0, %s29
    %s30 = sphi 0, %s27
    %s31 = sphi 0, %s30
    %s47 = sphi 0, %s31
    %s51 = sphi 0, %s51
    %s53 = sphi 0, %s51
    %s54 = sphi 0, %s53
    %s68 = sphi 0, %s54
    %s72 = sphi 0, %s72
    %s74 = sphi 0, %s72
    %s75 = sphi 0, %s74
    %s89 = sphi 0, %s75
    %s93 = sphi 0, %s93
    %s95 = sphi 0, %s93
    %s96 = sphi 0, %s95
    %s110 = sphi 0, %s96
    %s114 = sphi 0, %s114
    %s116 = sphi 0, %s114
    %s117 = sphi 0, %s116
    %s131 = sphi 0, %s117
    %s135 = sphi 0, %s135
    %s137 = sphi 0, %s135
    %s138 = sphi 0, %s137
    %s152 = sphi 0, %s138
    %s156 = sphi 0, %s156
    %s158 = sphi 0, %s156
    %s159 = sphi 0, %s158
    %s173 = sphi 0, %s159
    %s177 = sphi 0, %s177
    %s179 = sphi 0, %s177
    %s180 = sphi 0, %s179
    %s194 = sphi 0, %s180
    %s198 = sphi 0, %s198
    %s200 = sphi 0, %s198
    %s201 = sphi 0, %s200
    %s215 = sphi 0, %s201
    %s219 = sphi 0, %s219
    %s221 = sphi 0, %s219
    %s222 = sphi 0, %s221
    %s236 = sphi 0, %s222
    %s240 = sphi 0, %s240
    %s242 = sphi 0, %s240
    %s243 = sphi 0, %s242
    %s257 = sphi 0, %s243
    %s263 = sphi 0, %s265
    %s266 = sphi 0, %s263
    %s267 = sphi 0, %s266
    %s283 = sphi 0, %s267
  $region4: #{impala_block.1} parent=0 // loop_header_branch
    %20 = sbr.rel (%p18) target = $region8
  $region5: #{impala_block.1} parent=0 // loop_body
    %s22 = ssub.s32 %s17, 1
    %s23 = ssub.s32 %s17, 2
    %s24 = sadd.s32 %s17, 1
    %s25 = ssub.s32 %s17, %s24
    %p26 = scmp.eq.s32.totalorder %s25, 0
    %s28 = sadd.s32 %s27, 1
    %s29 = scalar_select %p26, %s27, %s28
    %p32 = pneg %p26
    %p33 = scmp.eq.s32.totalorder %s17, 1
    %p34 = por %p32, %p33
    %p35 = scmp.ne.s32.totalorder %s27, %s30
    %p36 = scmp.eq.s32.totalorder %s17, 0
    %p37 = por %p35, %p36
    %p38 = scmp.ne.s32.totalorder %s27, %s30
    %p39 = scmp.eq.s32.totalorder %s22, 1
    %p40 = por %p38, %p39
    %p41 = scmp.ne.s32.totalorder %s30, %s31
    %p42 = scmp.eq.s32.totalorder %s22, 0
    %p43 = por %p41, %p42
    %p44 = scmp.ne.s32.totalorder %s30, %s31
    %p45 = scmp.eq.s32.totalorder %s23, 1
    %p46 = por %p44, %p45
    %p48 = scmp.ne.s32.totalorder %s31, %s47
    %p49 = scmp.eq.s32.totalorder %s23, 0
    %p50 = por %p48, %p49
    %s52 = sadd.s32 %s51, 1
    %p55 = scmp.eq.s32.totalorder %s17, 1
    %p56 = scmp.ne.s32.totalorder %s51, %s53
    %p57 = scmp.eq.s32.totalorder %s17, 0
    %p58 = por %p56, %p57
    %p59 = scmp.ne.s32.totalorder %s51, %s53
    %p60 = scmp.eq.s32.totalorder %s22, 1
    %p61 = por %p59, %p60
    %p62 = scmp.ne.s32.totalorder %s53, %s54
    %p63 = scmp.eq.s32.totalorder %s22, 0
    %p64 = por %p62, %p63
    %p65 = scmp.ne.s32.totalorder %s53, %s54
    %p66 = scmp.eq.s32.totalorder %s23, 1
    %p67 = por %p65, %p66
    %p69 = scmp.ne.s32.totalorder %s54, %s68
    %p70 = scmp.eq.s32.totalorder %s23, 0
    %p71 = por %p69, %p70
    %s73 = sadd.s32 %s72, 1
    %p76 = scmp.eq.s32.totalorder %s17, 1
    %p77 = scmp.ne.s32.totalorder %s72, %s74
    %p78 = scmp.eq.s32.totalorder %s17, 0
    %p79 = por %p77, %p78
    %p80 = scmp.ne.s32.totalorder %s72, %s74
    %p81 = scmp.eq.s32.totalorder %s22, 1
    %p82 = por %p80, %p81
    %p83 = scmp.ne.s32.totalorder %s74, %s75
    %p84 = scmp.eq.s32.totalorder %s22, 0
    %p85 = por %p83, %p84
    %p86 = scmp.ne.s32.totalorder %s74, %s75
    %p87 = scmp.eq.s32.totalorder %s23, 1
    %p88 = por %p86, %p87
    %p90 = scmp.ne.s32.totalorder %s75, %s89
    %p91 = scmp.eq.s32.totalorder %s23, 0
    %p92 = por %p90, %p91
    %s94 = sadd.s32 %s93, 1
    %p97 = scmp.eq.s32.totalorder %s17, 1
    %p98 = scmp.ne.s32.totalorder %s93, %s95
    %p99 = scmp.eq.s32.totalorder %s17, 0
    %p100 = por %p98, %p99
    %p101 = scmp.ne.s32.totalorder %s93, %s95
    %p102 = scmp.eq.s32.totalorder %s22, 1
    %p103 = por %p101, %p102
    %p104 = scmp.ne.s32.totalorder %s95, %s96
    %p105 = scmp.eq.s32.totalorder %s22, 0
    %p106 = por %p104, %p105
    %p107 = scmp.ne.s32.totalorder %s95, %s96
    %p108 = scmp.eq.s32.totalorder %s23, 1
    %p109 = por %p107, %p108
    %p111 = scmp.ne.s32.totalorder %s96, %s110
    %p112 = scmp.eq.s32.totalorder %s23, 0
    %p113 = por %p111, %p112
    %s115 = sadd.s32 %s114, 1
    %p118 = scmp.eq.s32.totalorder %s17, 1
    %p119 = scmp.ne.s32.totalorder %s114, %s116
    %p120 = scmp.eq.s32.totalorder %s17, 0
    %p121 = por %p119, %p120
    %p122 = scmp.ne.s32.totalorder %s114, %s116
    %p123 = scmp.eq.s32.totalorder %s22, 1
    %p124 = por %p122, %p123
    %p125 = scmp.ne.s32.totalorder %s116, %s117
    %p126 = scmp.eq.s32.totalorder %s22, 0
    %p127 = por %p125, %p126
    %p128 = scmp.ne.s32.totalorder %s116, %s117
    %p129 = scmp.eq.s32.totalorder %s23, 1
    %p130 = por %p128, %p129
    %p132 = scmp.ne.s32.totalorder %s117, %s131
    %p133 = scmp.eq.s32.totalorder %s23, 0
    %p134 = por %p132, %p133
    %s136 = sadd.s32 %s135, 1
    %p139 = scmp.eq.s32.totalorder %s17, 1
    %p140 = scmp.ne.s32.totalorder %s135, %s137
    %p141 = scmp.eq.s32.totalorder %s17, 0
    %p142 = por %p140, %p141
    %p143 = scmp.ne.s32.totalorder %s135, %s137
    %p144 = scmp.eq.s32.totalorder %s22, 1
    %p145 = por %p143, %p144
    %p146 = scmp.ne.s32.totalorder %s137, %s138
    %p147 = scmp.eq.s32.totalorder %s22, 0
    %p148 = por %p146, %p147
    %p149 = scmp.ne.s32.totalorder %s137, %s138
    %p150 = scmp.eq.s32.totalorder %s23, 1
    %p151 = por %p149, %p150
    %p153 = scmp.ne.s32.totalorder %s138, %s152
    %p154 = scmp.eq.s32.totalorder %s23, 0
    %p155 = por %p153, %p154
    %s157 = sadd.s32 %s156, 1
    %p160 = scmp.eq.s32.totalorder %s17, 1
    %p161 = scmp.ne.s32.totalorder %s156, %s158
    %p162 = scmp.eq.s32.totalorder %s17, 0
    %p163 = por %p161, %p162
    %p164 = scmp.ne.s32.totalorder %s156, %s158
    %p165 = scmp.eq.s32.totalorder %s22, 1
    %p166 = por %p164, %p165
    %p167 = scmp.ne.s32.totalorder %s158, %s159
    %p168 = scmp.eq.s32.totalorder %s22, 0
    %p169 = por %p167, %p168
    %p170 = scmp.ne.s32.totalorder %s158, %s159
    %p171 = scmp.eq.s32.totalorder %s23, 1
    %p172 = por %p170, %p171
    %p174 = scmp.ne.s32.totalorder %s159, %s173
    %p175 = scmp.eq.s32.totalorder %s23, 0
    %p176 = por %p174, %p175
    %s178 = sadd.s32 %s177, 1
    %p181 = scmp.eq.s32.totalorder %s17, 1
    %p182 = scmp.ne.s32.totalorder %s177, %s179
    %p183 = scmp.eq.s32.totalorder %s17, 0
    %p184 = por %p182, %p183
    %p185 = scmp.ne.s32.totalorder %s177, %s179
    %p186 = scmp.eq.s32.totalorder %s22, 1
    %p187 = por %p185, %p186
    %p188 = scmp.ne.s32.totalorder %s179, %s180
    %p189 = scmp.eq.s32.totalorder %s22, 0
    %p190 = por %p188, %p189
    %p191 = scmp.ne.s32.totalorder %s179, %s180
    %p192 = scmp.eq.s32.totalorder %s23, 1
    %p193 = por %p191, %p192
    %p195 = scmp.ne.s32.totalorder %s180, %s194
    %p196 = scmp.eq.s32.totalorder %s23, 0
    %p197 = por %p195, %p196
    %s199 = sadd.s32 %s198, 1
    %p202 = scmp.eq.s32.totalorder %s17, 1
    %p203 = scmp.ne.s32.totalorder %s198, %s200
    %p204 = scmp.eq.s32.totalorder %s17, 0
    %p205 = por %p203, %p204
    %p206 = scmp.ne.s32.totalorder %s198, %s200
    %p207 = scmp.eq.s32.totalorder %s22, 1
    %p208 = por %p206, %p207
    %p209 = scmp.ne.s32.totalorder %s200, %s201
    %p210 = scmp.eq.s32.totalorder %s22, 0
    %p211 = por %p209, %p210
    %p212 = scmp.ne.s32.totalorder %s200, %s201
    %p213 = scmp.eq.s32.totalorder %s23, 1
    %p214 = por %p212, %p213
    %p216 = scmp.ne.s32.totalorder %s201, %s215
    %p217 = scmp.eq.s32.totalorder %s23, 0
    %p218 = por %p216, %p217
    %s220 = sadd.s32 %s219, 1
    %p223 = scmp.eq.s32.totalorder %s17, 1
    %p224 = scmp.ne.s32.totalorder %s219, %s221
    %p225 = scmp.eq.s32.totalorder %s17, 0
    %p226 = por %p224, %p225
    %p227 = scmp.ne.s32.totalorder %s219, %s221
    %p228 = scmp.eq.s32.totalorder %s22, 1
    %p229 = por %p227, %p228
    %p230 = scmp.ne.s32.totalorder %s221, %s222
    %p231 = scmp.eq.s32.totalorder %s22, 0
    %p232 = por %p230, %p231
    %p233 = scmp.ne.s32.totalorder %s221, %s222
    %p234 = scmp.eq.s32.totalorder %s23, 1
    %p235 = por %p233, %p234
    %p237 = scmp.ne.s32.totalorder %s222, %s236
    %p238 = scmp.eq.s32.totalorder %s23, 0
    %p239 = por %p237, %p238
    %s241 = sadd.s32 %s240, 1
    %p244 = scmp.eq.s32.totalorder %s17, 1
    %p245 = scmp.ne.s32.totalorder %s240, %s242
    %p246 = scmp.eq.s32.totalorder %s17, 0
    %p247 = por %p245, %p246
    %p248 = scmp.ne.s32.totalorder %s240, %s242
    %p249 = scmp.eq.s32.totalorder %s22, 1
    %p250 = por %p248, %p249
    %p251 = scmp.ne.s32.totalorder %s242, %s243
    %p252 = scmp.eq.s32.totalorder %s22, 0
    %p253 = por %p251, %p252
    %p254 = scmp.ne.s32.totalorder %s242, %s243
    %p255 = scmp.eq.s32.totalorder %s23, 1
    %p256 = por %p254, %p255
    %p258 = scmp.ne.s32.totalorder %s243, %s257
    %p259 = scmp.eq.s32.totalorder %s23, 0
    %p260 = por %p258, %p259
    %s261 = ssub.s32 %s17, %s24
    %p262 = scmp.eq.s32.totalorder %s261, 0
    %s264 = sadd.s32 %s263, 1
    %s265 = scalar_select %p262, %s263, %s264
    %p268 = pneg %p262
    %p269 = scmp.eq.s32.totalorder %s17, 1
    %p270 = por %p268, %p269
    %p271 = scmp.ne.s32.totalorder %s263, %s266
    %p272 = scmp.eq.s32.totalorder %s17, 0
    %p273 = por %p271, %p272
    %p274 = scmp.ne.s32.totalorder %s263, %s266
    %p275 = scmp.eq.s32.totalorder %s22, 1
    %p276 = por %p274, %p275
    %p277 = scmp.ne.s32.totalorder %s266, %s267
    %p278 = scmp.eq.s32.totalorder %s22, 0
    %p279 = por %p277, %p278
    %p280 = scmp.ne.s32.totalorder %s266, %s267
    %p281 = scmp.eq.s32.totalorder %s23, 1
    %p282 = por %p280, %p281
    %p284 = scmp.ne.s32.totalorder %s267, %s283
    %p285 = scmp.eq.s32.totalorder %s23, 0
    %p286 = por %p284, %p285
    %p287 = scmp.le.s32.totalorder 1, %s17
    %p288 = scmp.lt.s32.totalorder %s17, 3
    %p289 = pnand %p287, %p288
    %p290 = pneg %p289
    // Predicated region
    $region9: #{impala_block.1} parent=5 // pred_check
      _
    $region10: #{impala_block.1} parent=5 // pred_check_branch
      %292 = sbr.rel (%p289) target = $region12
    $region11: #{impala_block.1} parent=5 // pred_region
      %s293 = ssub.s32 %s17, 1
      // Predicated region
      $region13: #{impala_block.1} parent=11 // pred_check
        %p294 = pneg %p64
      $region14: #{impala_block.1} parent=11 // pred_check_branch
        %296 = sbr.rel (%p294) target = $region16
      $region15: #{impala_block.1} parent=11 // pred_region
        _
      $region16: #{impala_block.1} parent=11 // pred_fallthru
        _
      // Predicated region
      $region17: #{impala_block.1} parent=11 // pred_check
        %p297 = pneg %p85
      $region18: #{impala_block.1} parent=11 // pred_check_branch
        %299 = sbr.rel (%p297) target = $region20
      $region19: #{impala_block.1} parent=11 // pred_region
        _
      $region20: #{impala_block.1} parent=11 // pred_fallthru
        _
      // Predicated region
      $region21: #{impala_block.1} parent=11 // pred_check
        %p300 = pneg %p106
      $region22: #{impala_block.1} parent=11 // pred_check_branch
        %302 = sbr.rel (%p300) target = $region24
      $region23: #{impala_block.1} parent=11 // pred_region
        _
      $region24: #{impala_block.1} parent=11 // pred_fallthru
        _
      // Predicated region
      $region25: #{impala_block.1} parent=11 // pred_check
        %p303 = pneg %p127
      $region26: #{impala_block.1} parent=11 // pred_check_branch
        %305 = sbr.rel (%p303) target = $region28
      $region27: #{impala_block.1} parent=11 // pred_region
        _
      $region28: #{impala_block.1} parent=11 // pred_fallthru
        _
      // Predicated region
      $region29: #{impala_block.1} parent=11 // pred_check
        %p306 = pneg %p148
      $region30: #{impala_block.1} parent=11 // pred_check_branch
        %308 = sbr.rel (%p306) target = $region32
      $region31: #{impala_block.1} parent=11 // pred_region
        _
      $region32: #{impala_block.1} parent=11 // pred_fallthru
        _
      // Predicated region
      $region33: #{impala_block.1} parent=11 // pred_check
        %p309 = pneg %p169
      $region34: #{impala_block.1} parent=11 // pred_check_branch
        %311 = sbr.rel (%p309) target = $region36
      $region35: #{impala_block.1} parent=11 // pred_region
        _
      $region36: #{impala_block.1} parent=11 // pred_fallthru
        _
      // Predicated region
      $region37: #{impala_block.1} parent=11 // pred_check
        %p312 = pneg %p190
      $region38: #{impala_block.1} parent=11 // pred_check_branch
        %314 = sbr.rel (%p312) target = $region40
      $region39: #{impala_block.1} parent=11 // pred_region
        _
      $region40: #{impala_block.1} parent=11 // pred_fallthru
        _
      // Predicated region
      $region41: #{impala_block.1} parent=11 // pred_check
        %p315 = pneg %p211
      $region42: #{impala_block.1} parent=11 // pred_check_branch
        %317 = sbr.rel (%p315) target = $region44
      $region43: #{impala_block.1} parent=11 // pred_region
        _
      $region44: #{impala_block.1} parent=11 // pred_fallthru
        _
      // Predicated region
      $region45: #{impala_block.1} parent=11 // pred_check
        %p318 = pneg %p232
      $region46: #{impala_block.1} parent=11 // pred_check_branch
        %320 = sbr.rel (%p318) target = $region48
      $region47: #{impala_block.1} parent=11 // pred_region
        _
      $region48: #{impala_block.1} parent=11 // pred_fallthru
        _
      // Predicated region
      $region49: #{impala_block.1} parent=11 // pred_check
        %p321 = pneg %p253
      $region50: #{impala_block.1} parent=11 // pred_check_branch
        %323 = sbr.rel (%p321) target = $region52
      $region51: #{impala_block.1} parent=11 // pred_region
        _
      $region52: #{impala_block.1} parent=11 // pred_fallthru
        _
    $region12: #{impala_block.1} parent=5 // pred_fallthru
      _
    %p324 = scmp.lt.s32.totalorder %s17, 2
    // Predicated region
    $region53: #{impala_block.1} parent=5 // pred_check
      %p325 = pneg %p324
    $region54: #{impala_block.1} parent=5 // pred_check_branch
      %327 = sbr.rel (%p325) target = $region56
    $region55: #{impala_block.1} parent=5 // pred_region
      // Predicated region
      $region57: #{impala_block.1} parent=55 // pred_check
        %p328 = pneg %p37
      $region58: #{impala_block.1} parent=55 // pred_check_branch
        %330 = sbr.rel (%p328) target = $region60
      $region59: #{impala_block.1} parent=55 // pred_region
        %p331 = scmp.lt.s32.totalorder %s17, 1
        %s332 = scalar_select %p331, %s17, 1
        %s333 = smul.addr %s332, 32
        %s334 = smul.addr %s333, 8
        %s335 = scalar_lea.vmem %s0, %s334
      $region60: #{impala_block.1} parent=55 // pred_fallthru
        _
    $region56: #{impala_block.1} parent=5 // pred_fallthru
      _
    %p336 = scmp.le.s32.totalorder 1, %s17
    %p337 = scmp.lt.s32.totalorder %s17, 3
    %p338 = pnand %p336, %p337
    %p339 = pneg %p338
    // Predicated region
    $region61: #{impala_block.1} parent=5 // pred_check
      _
    $region62: #{impala_block.1} parent=5 // pred_check_branch
      %341 = sbr.rel (%p338) target = $region64
    $region63: #{impala_block.1} parent=5 // pred_region
      %s342 = ssub.s32 %s17, 1
      %p343 = scmp.lt.s32.totalorder %s22, 1
      %s344 = scalar_select %p343, %s22, 1
      %s345 = smul.addr %s344, 32
      %s346 = smul.addr %s345, 8
      %s347 = scalar_lea.vmem %s0, %s346
      %p348 = pneg %p43
      %p349 = pneg %p40
      %p350 = pneg %p64
      %p351 = pneg %p61
      %p352 = pneg %p85
      %p353 = pneg %p82
      %p354 = pneg %p106
      %p355 = pneg %p103
      %p356 = pneg %p127
      %p357 = pneg %p124
      %p358 = pneg %p148
      %p359 = pneg %p145
      %p360 = pneg %p169
      %p361 = pneg %p166
      %p362 = pneg %p190
      %p363 = pneg %p187
      %p364 = pneg %p211
      %p365 = pneg %p208
      %p366 = pneg %p232
      %p367 = pneg %p229
      %p368 = pneg %p253
      %p369 = pneg %p250
      %p370 = pneg %p279
      %p371 = pneg %p276
      %p372 = scmp.lt.s32.totalorder %s22, 1
      %s373 = scalar_select %p372, %s22, 1
      %s374 = smul.addr %s373, 8
      %s375 = scalar_lea.vmem %s11, %s374
      %p376 = scmp.lt.s32.totalorder %s22, 1
      %s377 = scalar_select %p376, %s22, 1
      %s378 = smul.addr %s377, 32
      %s379 = smul.addr %s378, 8
      %s380 = scalar_lea.vmem %s0, %s379
      %p381 = scmp.lt.s32.totalorder %s22, 1
      %s382 = scalar_select %p381, %s22, 1
      %s383 = smul.addr %s382, 8
      %s384 = scalar_lea.vmem %s11, %s383
      %vm386 = vcmask 31744
      %387 = vst.msk [vmem:[#allocation2] sm:$0xff] %vm386, 0.0
      %388 = vst.msk [vmem:[#allocation2 + $0x8] sm:$0xff] %vm386, 0.0
      %vm389 = vcmask 25600
      %390 = vst.msk [vmem:[#allocation2 + $0x10] sm:$0x3] %vm389, 0.0
      %s391 = scalar_lea.vmem [#allocation2], 408
      %392 = vst.msk [vmem:[%s391] sm:$0xff] %vm386, 0.0
      %393 = vst.msk [vmem:[%s391 + $0x8] sm:$0xff] %vm386, 0.0
      %394 = vst.msk [vmem:[%s391 + $0x10] sm:$0x3] %vm389, 0.0
      %vm395 = vcmask 24576
      %396 = vst.msk [vmem:[#allocation2] sm:$0x1] %vm395, 0.0
      %397 = vst.msk [vmem:[#allocation2 + $0x18] sm:$0x1] %vm395, 0.0
      %398 = vst.msk [vmem:[#allocation2 + $0x30] sm:$0x1] %vm395, 0.0
      %399 = vst.msk [vmem:[#allocation2 + $0x48] sm:$0x1] %vm395, 0.0
      %400 = vst.msk [vmem:[#allocation2 + $0x60] sm:$0x1] %vm395, 0.0
      %401 = vst.msk [vmem:[#allocation2 + $0x78] sm:$0x1] %vm395, 0.0
      %402 = vst.msk [vmem:[#allocation2 + $0x90] sm:$0x1] %vm395, 0.0
      %403 = vst.msk [vmem:[#allocation2 + $0xa8] sm:$0x1] %vm395, 0.0
      %404 = vst.msk [vmem:[#allocation2 + $0xc0] sm:$0x1] %vm395, 0.0
      %405 = vst.msk [vmem:[#allocation2 + $0xd8] sm:$0x1] %vm395, 0.0
      %406 = vst.msk [vmem:[#allocation2 + $0xf0] sm:$0x1] %vm395, 0.0
      %407 = vst.msk [vmem:[#allocation2 + $0x108] sm:$0x1] %vm395, 0.0
      %408 = vst.msk [vmem:[#allocation2 + $0x120] sm:$0x1] %vm395, 0.0
      %409 = vst.msk [vmem:[#allocation2 + $0x138] sm:$0x1] %vm395, 0.0
      %410 = vst.msk [vmem:[#allocation2 + $0x150] sm:$0x1] %vm395, 0.0
      %411 = vst.msk [vmem:[#allocation2 + $0x168] sm:$0x1] %vm395, 0.0
      %412 = vst.msk [vmem:[#allocation2 + $0x180] sm:$0x1] %vm395, 0.0
      %413 = vst.msk [vmem:[#allocation2 + $0x198] sm:$0x1] %vm395, 0.0
      %414 = vst.msk [vmem:[#allocation2 + $0x11] sm:$0x1] %vm395, 0.0
      %415 = vst.msk [vmem:[#allocation2 + $0x29] sm:$0x1] %vm395, 0.0
      %416 = vst.msk [vmem:[#allocation2 + $0x41] sm:$0x1] %vm395, 0.0
      %417 = vst.msk [vmem:[#allocation2 + $0x59] sm:$0x1] %vm395, 0.0
      %418 = vst.msk [vmem:[#allocation2 + $0x71] sm:$0x1] %vm395, 0.0
      %419 = vst.msk [vmem:[#allocation2 + $0x89] sm:$0x1] %vm395, 0.0
      %420 = vst.msk [vmem:[#allocation2 + $0xa1] sm:$0x1] %vm395, 0.0
      %421 = vst.msk [vmem:[#allocation2 + $0xb9] sm:$0x1] %vm395, 0.0
      %422 = vst.msk [vmem:[#allocation2 + $0xd1] sm:$0x1] %vm395, 0.0
      %423 = vst.msk [vmem:[#allocation2 + $0xe9] sm:$0x1] %vm395, 0.0
      %424 = vst.msk [vmem:[#allocation2 + $0x101] sm:$0x1] %vm395, 0.0
      %425 = vst.msk [vmem:[#allocation2 + $0x119] sm:$0x1] %vm395, 0.0
      %426 = vst.msk [vmem:[#allocation2 + $0x131] sm:$0x1] %vm395, 0.0
      %427 = vst.msk [vmem:[#allocation2 + $0x149] sm:$0x1] %vm395, 0.0
      %428 = vst.msk [vmem:[#allocation2 + $0x161] sm:$0x1] %vm395, 0.0
      %429 = vst.msk [vmem:[#allocation2 + $0x179] sm:$0x1] %vm395, 0.0
      %430 = vst.msk [vmem:[#allocation2 + $0x191] sm:$0x1] %vm395, 0.0
      %431 = vst.msk [vmem:[#allocation2 + $0x1a9] sm:$0x1] %vm395, 0.0
      %v432 = vld [vmem:[%s380] sm:$0xff]
      %v433 = vld [vmem:[%s380 + $0x8] sm:$0xff]
      %v434 = vld [vmem:[%s380 + $0x10] sm:$0xff]
      %v435 = vld [vmem:[%s380 + $0x18] sm:$0xff]
      %v436 = vld [vmem:[%s380 + $0x20] sm:$0xff]
      %v437 = vld [vmem:[%s380 + $0x28] sm:$0xff]
      %v438 = vld [vmem:[%s380 + $0x30] sm:$0xff]
      %v439 = vld [vmem:[%s380 + $0x38] sm:$0xff]
      %v440 = vld [vmem:[%s380 + $0x40] sm:$0xff]
      %v441 = vld [vmem:[%s380 + $0x48] sm:$0xff]
      %v442 = vld [vmem:[%s380 + $0x50] sm:$0xff]
      %v443 = vld [vmem:[%s380 + $0x58] sm:$0xff]
      %v444 = vld [vmem:[%s380 + $0x60] sm:$0xff]
      %v445 = vld [vmem:[%s380 + $0x68] sm:$0xff]
      %v446 = vld [vmem:[%s380 + $0x70] sm:$0xff]
      %v447 = vld [vmem:[%s380 + $0x78] sm:$0xff]
      %v448 = vld [vmem:[%s380 + $0x80] sm:$0xff]
      %v449 = vld [vmem:[%s380 + $0x88] sm:$0xff]
      %v450 = vld [vmem:[%s380 + $0x90] sm:$0xff]
      %v451 = vld [vmem:[%s380 + $0x98] sm:$0xff]
      %v452 = vld [vmem:[%s380 + $0xa0] sm:$0xff]
      %v453 = vld [vmem:[%s380 + $0xa8] sm:$0xff]
      %v454 = vld [vmem:[%s380 + $0xb0] sm:$0xff]
      %v455 = vld [vmem:[%s380 + $0xb8] sm:$0xff]
      %v456 = vld [vmem:[%s380 + $0xc0] sm:$0xff]
      %v457 = vld [vmem:[%s380 + $0xc8] sm:$0xff]
      %v458 = vld [vmem:[%s380 + $0xd0] sm:$0xff]
      %v459 = vld [vmem:[%s380 + $0xd8] sm:$0xff]
      %v460 = vld [vmem:[%s380 + $0xe0] sm:$0xff]
      %v461 = vld [vmem:[%s380 + $0xe8] sm:$0xff]
      %v462 = vld [vmem:[%s380 + $0xf0] sm:$0xff]
      %v463 = vld [vmem:[%s380 + $0xf8] sm:$0xff]
      %s464 = scalar_lea.vmem [#allocation2], 24
      %465 = vst.msk [vmem:[%s464 + $0x1] sm:$0xff] %vm386, %v432
      %466 = vst.msk [vmem:[%s464 + $0x9] sm:$0xff] %vm386, %v433
      %467 = vst.msk [vmem:[%s464 + $0x19] sm:$0xff] %vm386, %v434
      %468 = vst.msk [vmem:[%s464 + $0x21] sm:$0xff] %vm386, %v435
      %469 = vst.msk [vmem:[%s464 + $0x31] sm:$0xff] %vm386, %v436
      %470 = vst.msk [vmem:[%s464 + $0x39] sm:$0xff] %vm386, %v437
      %471 = vst.msk [vmem:[%s464 + $0x49] sm:$0xff] %vm386, %v438
      %472 = vst.msk [vmem:[%s464 + $0x51] sm:$0xff] %vm386, %v439
      %473 = vst.msk [vmem:[%s464 + $0x61] sm:$0xff] %vm386, %v440
      %474 = vst.msk [vmem:[%s464 + $0x69] sm:$0xff] %vm386, %v441
      %475 = vst.msk [vmem:[%s464 + $0x79] sm:$0xff] %vm386, %v442
      %476 = vst.msk [vmem:[%s464 + $0x81] sm:$0xff] %vm386, %v443
      %477 = vst.msk [vmem:[%s464 + $0x91] sm:$0xff] %vm386, %v444
      %478 = vst.msk [vmem:[%s464 + $0x99] sm:$0xff] %vm386, %v445
      %479 = vst.msk [vmem:[%s464 + $0xa9] sm:$0xff] %vm386, %v446
      %480 = vst.msk [vmem:[%s464 + $0xb1] sm:$0xff] %vm386, %v447
      %481 = vst.msk [vmem:[%s464 + $0xc1] sm:$0xff] %vm386, %v448
      %482 = vst.msk [vmem:[%s464 + $0xc9] sm:$0xff] %vm386, %v449
      %483 = vst.msk [vmem:[%s464 + $0xd9] sm:$0xff] %vm386, %v450
      %484 = vst.msk [vmem:[%s464 + $0xe1] sm:$0xff] %vm386, %v451
      %485 = vst.msk [vmem:[%s464 + $0xf1] sm:$0xff] %vm386, %v452
      %486 = vst.msk [vmem:[%s464 + $0xf9] sm:$0xff] %vm386, %v453
      %487 = vst.msk [vmem:[%s464 + $0x109] sm:$0xff] %vm386, %v454
      %488 = vst.msk [vmem:[%s464 + $0x111] sm:$0xff] %vm386, %v455
      %489 = vst.msk [vmem:[%s464 + $0x121] sm:$0xff] %vm386, %v456
      %490 = vst.msk [vmem:[%s464 + $0x129] sm:$0xff] %vm386, %v457
      %491 = vst.msk [vmem:[%s464 + $0x139] sm:$0xff] %vm386, %v458
      %492 = vst.msk [vmem:[%s464 + $0x141] sm:$0xff] %vm386, %v459
      %493 = vst.msk [vmem:[%s464 + $0x151] sm:$0xff] %vm386, %v460
      %494 = vst.msk [vmem:[%s464 + $0x159] sm:$0xff] %vm386, %v461
      %495 = vst.msk [vmem:[%s464 + $0x169] sm:$0xff] %vm386, %v462
      %496 = vst.msk [vmem:[%s464 + $0x171] sm:$0xff] %vm386, %v463
      %v497 = vld [vmem:[#allocation2] sm:$0xff]
      %v498 = vld [vmem:[#allocation2 + $0x8] sm:$0xff]
      %v499 = vld [vmem:[#allocation2 + $0x18] sm:$0xff]
      %v500 = vld [vmem:[#allocation2 + $0x20] sm:$0xff]
      %v501 = vld [vmem:[#allocation2 + $0x30] sm:$0xff]
      %v502 = vld [vmem:[#allocation2 + $0x38] sm:$0xff]
      %v503 = vld [vmem:[#allocation2 + $0x48] sm:$0xff]
      %v504 = vld [vmem:[#allocation2 + $0x50] sm:$0xff]
      %v505 = vld [vmem:[#allocation2 + $0x60] sm:$0xff]
      %v506 = vld [vmem:[#allocation2 + $0x68] sm:$0xff]
      %v507 = vld [vmem:[#allocation2 + $0x78] sm:$0xff]
      %v508 = vld [vmem:[#allocation2 + $0x80] sm:$0xff]
      %v509 = vld [vmem:[#allocation2 + $0x90] sm:$0xff]
      %v510 = vld [vmem:[#allocation2 + $0x98] sm:$0xff]
      %v511 = vld [vmem:[#allocation2 + $0xa8] sm:$0xff]
      %v512 = vld [vmem:[#allocation2 + $0xb0] sm:$0xff]
      %v513 = vld [vmem:[#allocation2 + $0xc0] sm:$0xff]
      %v514 = vld [vmem:[#allocation2 + $0xc8] sm:$0xff]
      %v515 = vld [vmem:[#allocation2 + $0xd8] sm:$0xff]
      %v516 = vld [vmem:[#allocation2 + $0xe0] sm:$0xff]
      %v517 = vld [vmem:[#allocation2 + $0xf0] sm:$0xff]
      %v518 = vld [vmem:[#allocation2 + $0xf8] sm:$0xff]
      %v519 = vld [vmem:[#allocation2 + $0x108] sm:$0xff]
      %v520 = vld [vmem:[#allocation2 + $0x110] sm:$0xff]
      %v521 = vld [vmem:[#allocation2 + $0x120] sm:$0xff]
      %v522 = vld [vmem:[#allocation2 + $0x128] sm:$0xff]
      %v523 = vld [vmem:[#allocation2 + $0x138] sm:$0xff]
      %v524 = vld [vmem:[#allocation2 + $0x140] sm:$0xff]
      %v525 = vld [vmem:[#allocation2 + $0x150] sm:$0xff]
      %v526 = vld [vmem:[#allocation2 + $0x158] sm:$0xff]
      %v527 = vld [vmem:[#allocation2 + $0x168] sm:$0xff]
      %v528 = vld [vmem:[#allocation2 + $0x170] sm:$0xff]
      %v529 = vpack.c.bf16 %v497, %v497
      %v530 = vpack.c.bf16 %v498, %v498
      %v531 = vpack.c.bf16 %v499, %v499
      %v532 = vpack.c.bf16 %v500, %v500
      %v533 = vpack.c.bf16 %v501, %v501
      %v534 = vpack.c.bf16 %v502, %v502
      %v535 = vpack.c.bf16 %v503, %v503
      %v536 = vpack.c.bf16 %v504, %v504
      %v537 = vpack.c.bf16 %v505, %v505
      %v538 = vpack.c.bf16 %v506, %v506
      %v539 = vpack.c.bf16 %v507, %v507
      %v540 = vpack.c.bf16 %v508, %v508
      %v541 = vpack.c.bf16 %v509, %v509
      %v542 = vpack.c.bf16 %v510, %v510
      %v543 = vpack.c.bf16 %v511, %v511
      %v544 = vpack.c.bf16 %v512, %v512
      %v545 = vpack.c.bf16 %v513, %v513
      %v546 = vpack.c.bf16 %v514, %v514
      %v547 = vpack.c.bf16 %v515, %v515
      %v548 = vpack.c.bf16 %v516, %v516
      %v549 = vpack.c.bf16 %v517, %v517
      %v550 = vpack.c.bf16 %v518, %v518
      %v551 = vpack.c.bf16 %v519, %v519
      %v552 = vpack.c.bf16 %v520, %v520
      %v553 = vpack.c.bf16 %v521, %v521
      %v554 = vpack.c.bf16 %v522, %v522
      %v555 = vpack.c.bf16 %v523, %v523
      %v556 = vpack.c.bf16 %v524, %v524
      %v557 = vpack.c.bf16 %v525, %v525
      %v558 = vpack.c.bf16 %v526, %v526
      %v559 = vpack.c.bf16 %v527, %v527
      %v560 = vpack.c.bf16 %v528, %v528
      %v561 = vld [vmem:[#allocation2 + $0x1] sm:$0xff]
      %v562 = vld [vmem:[#allocation2 + $0x9] sm:$0xff]
      %v563 = vld [vmem:[#allocation2 + $0x19] sm:$0xff]
      %v564 = vld [vmem:[#allocation2 + $0x21] sm:$0xff]
      %v565 = vld [vmem:[#allocation2 + $0x31] sm:$0xff]
      %v566 = vld [vmem:[#allocation2 + $0x39] sm:$0xff]
      %v567 = vld [vmem:[#allocation2 + $0x49] sm:$0xff]
      %v568 = vld [vmem:[#allocation2 + $0x51] sm:$0xff]
      %v569 = vld [vmem:[#allocation2 + $0x61] sm:$0xff]
      %v570 = vld [vmem:[#allocation2 + $0x69] sm:$0xff]
      %v571 = vld [vmem:[#allocation2 + $0x79] sm:$0xff]
      %v572 = vld [vmem:[#allocation2 + $0x81] sm:$0xff]
      %v573 = vld [vmem:[#allocation2 + $0x91] sm:$0xff]
      %v574 = vld [vmem:[#allocation2 + $0x99] sm:$0xff]
      %v575 = vld [vmem:[#allocation2 + $0xa9] sm:$0xff]
      %v576 = vld [vmem:[#allocation2 + $0xb1] sm:$0xff]
      %v577 = vld [vmem:[#allocation2 + $0xc1] sm:$0xff]
      %v578 = vld [vmem:[#allocation2 + $0xc9] sm:$0xff]
      %v579 = vld [vmem:[#allocation2 + $0xd9] sm:$0xff]
      %v580 = vld [vmem:[#allocation2 + $0xe1] sm:$0xff]
      %v581 = vld [vmem:[#allocation2 + $0xf1] sm:$0xff]
      %v582 = vld [vmem:[#allocation2 + $0xf9] sm:$0xff]
      %v583 = vld [vmem:[#allocation2 + $0x109] sm:$0xff]
      %v584 = vld [vmem:[#allocation2 + $0x111] sm:$0xff]
      %v585 = vld [vmem:[#allocation2 + $0x121] sm:$0xff]
      %v586 = vld [vmem:[#allocation2 + $0x129] sm:$0xff]
      %v587 = vld [vmem:[#allocation2 + $0x139] sm:$0xff]
      %v588 = vld [vmem:[#allocation2 + $0x141] sm:$0xff]
      %v589 = vld [vmem:[#allocation2 + $0x151] sm:$0xff]
      %v590 = vld [vmem:[#allocation2 + $0x159] sm:$0xff]
      %v591 = vld [vmem:[#allocation2 + $0x169] sm:$0xff]
      %v592 = vld [vmem:[#allocation2 + $0x171] sm:$0xff]
      %v593 = vpack.c.bf16 %v561, %v561
      %v594 = vpack.c.bf16 %v562, %v562
      %v595 = vpack.c.bf16 %v563, %v563
      %v596 = vpack.c.bf16 %v564, %v564
      %v597 = vpack.c.bf16 %v565, %v565
      %v598 = vpack.c.bf16 %v566, %v566
      %v599 = vpack.c.bf16 %v567, %v567
      %v600 = vpack.c.bf16 %v568, %v568
      %v601 = vpack.c.bf16 %v569, %v569
      %v602 = vpack.c.bf16 %v570, %v570
      %v603 = vpack.c.bf16 %v571, %v571
      %v604 = vpack.c.bf16 %v572, %v572
      %v605 = vpack.c.bf16 %v573, %v573
      %v606 = vpack.c.bf16 %v574, %v574
      %v607 = vpack.c.bf16 %v575, %v575
      %v608 = vpack.c.bf16 %v576, %v576
      %v609 = vpack.c.bf16 %v577, %v577
      %v610 = vpack.c.bf16 %v578, %v578
      %v611 = vpack.c.bf16 %v579, %v579
      %v612 = vpack.c.bf16 %v580, %v580
      %v613 = vpack.c.bf16 %v581, %v581
      %v614 = vpack.c.bf16 %v582, %v582
      %v615 = vpack.c.bf16 %v583, %v583
      %v616 = vpack.c.bf16 %v584, %v584
      %v617 = vpack.c.bf16 %v585, %v585
      %v618 = vpack.c.bf16 %v586, %v586
      %v619 = vpack.c.bf16 %v587, %v587
      %v620 = vpack.c.bf16 %v588, %v588
      %v621 = vpack.c.bf16 %v589, %v589
      %v622 = vpack.c.bf16 %v590, %v590
      %v623 = vpack.c.bf16 %v591, %v591
      %v624 = vpack.c.bf16 %v592, %v592
      %v625 = vld [vmem:[#allocation2 + $0x2] sm:$0xff]
      %v626 = vld [vmem:[#allocation2 + $0xa] sm:$0xff]
      %v627 = vld [vmem:[#allocation2 + $0x1a] sm:$0xff]
      %v628 = vld [vmem:[#allocation2 + $0x22] sm:$0xff]
      %v629 = vld [vmem:[#allocation2 + $0x32] sm:$0xff]
      %v630 = vld [vmem:[#allocation2 + $0x3a] sm:$0xff]
      %v631 = vld [vmem:[#allocation2 + $0x4a] sm:$0xff]
      %v632 = vld [vmem:[#allocation2 + $0x52] sm:$0xff]
      %v633 = vld [vmem:[#allocation2 + $0x62] sm:$0xff]
      %v634 = vld [vmem:[#allocation2 + $0x6a] sm:$0xff]
      %v635 = vld [vmem:[#allocation2 + $0x7a] sm:$0xff]
      %v636 = vld [vmem:[#allocation2 + $0x82] sm:$0xff]
      %v637 = vld [vmem:[#allocation2 + $0x92] sm:$0xff]
      %v638 = vld [vmem:[#allocation2 + $0x9a] sm:$0xff]
      %v639 = vld [vmem:[#allocation2 + $0xaa] sm:$0xff]
      %v640 = vld [vmem:[#allocation2 + $0xb2] sm:$0xff]
      %v641 = vld [vmem:[#allocation2 + $0xc2] sm:$0xff]
      %v642 = vld [vmem:[#allocation2 + $0xca] sm:$0xff]
      %v643 = vld [vmem:[#allocation2 + $0xda] sm:$0xff]
      %v644 = vld [vmem:[#allocation2 + $0xe2] sm:$0xff]
      %v645 = vld [vmem:[#allocation2 + $0xf2] sm:$0xff]
      %v646 = vld [vmem:[#allocation2 + $0xfa] sm:$0xff]
      %v647 = vld [vmem:[#allocation2 + $0x10a] sm:$0xff]
      %v648 = vld [vmem:[#allocation2 + $0x112] sm:$0xff]
      %v649 = vld [vmem:[#allocation2 + $0x122] sm:$0xff]
      %v650 = vld [vmem:[#allocation2 + $0x12a] sm:$0xff]
      %v651 = vld [vmem:[#allocation2 + $0x13a] sm:$0xff]
      %v652 = vld [vmem:[#allocation2 + $0x142] sm:$0xff]
      %v653 = vld [vmem:[#allocation2 + $0x152] sm:$0xff]
      %v654 = vld [vmem:[#allocation2 + $0x15a] sm:$0xff]
      %v655 = vld [vmem:[#allocation2 + $0x16a] sm:$0xff]
      %v656 = vld [vmem:[#allocation2 + $0x172] sm:$0xff]
      %v657 = vpack.c.bf16 %v625, %v625
      %v658 = vpack.c.bf16 %v626, %v626
      %v659 = vpack.c.bf16 %v627, %v627
      %v660 = vpack.c.bf16 %v628, %v628
      %v661 = vpack.c.bf16 %v629, %v629
      %v662 = vpack.c.bf16 %v630, %v630
      %v663 = vpack.c.bf16 %v631, %v631
      %v664 = vpack.c.bf16 %v632, %v632
      %v665 = vpack.c.bf16 %v633, %v633
      %v666 = vpack.c.bf16 %v634, %v634
      %v667 = vpack.c.bf16 %v635, %v635
      %v668 = vpack.c.bf16 %v636, %v636
      %v669 = vpack.c.bf16 %v637, %v637
      %v670 = vpack.c.bf16 %v638, %v638
      %v671 = vpack.c.bf16 %v639, %v639
      %v672 = vpack.c.bf16 %v640, %v640
      %v673 = vpack.c.bf16 %v641, %v641
      %v674 = vpack.c.bf16 %v642, %v642
      %v675 = vpack.c.bf16 %v643, %v643
      %v676 = vpack.c.bf16 %v644, %v644
      %v677 = vpack.c.bf16 %v645, %v645
      %v678 = vpack.c.bf16 %v646, %v646
      %v679 = vpack.c.bf16 %v647, %v647
      %v680 = vpack.c.bf16 %v648, %v648
      %v681 = vpack.c.bf16 %v649, %v649
      %v682 = vpack.c.bf16 %v650, %v650
      %v683 = vpack.c.bf16 %v651, %v651
      %v684 = vpack.c.bf16 %v652, %v652
      %v685 = vpack.c.bf16 %v653, %v653
      %v686 = vpack.c.bf16 %v654, %v654
      %v687 = vpack.c.bf16 %v655, %v655
      %v688 = vpack.c.bf16 %v656, %v656
      %v689 = vld [vmem:[%s464] sm:$0xff]
      %v690 = vld [vmem:[%s464 + $0x8] sm:$0xff]
      %v691 = vld [vmem:[%s464 + $0x18] sm:$0xff]
      %v692 = vld [vmem:[%s464 + $0x20] sm:$0xff]
      %v693 = vld [vmem:[%s464 + $0x30] sm:$0xff]
      %v694 = vld [vmem:[%s464 + $0x38] sm:$0xff]
      %v695 = vld [vmem:[%s464 + $0x48] sm:$0xff]
      %v696 = vld [vmem:[%s464 + $0x50] sm:$0xff]
      %v697 = vld [vmem:[%s464 + $0x60] sm:$0xff]
      %v698 = vld [vmem:[%s464 + $0x68] sm:$0xff]
      %v699 = vld [vmem:[%s464 + $0x78] sm:$0xff]
      %v700 = vld [vmem:[%s464 + $0x80] sm:$0xff]
      %v701 = vld [vmem:[%s464 + $0x90] sm:$0xff]
      %v702 = vld [vmem:[%s464 + $0x98] sm:$0xff]
      %v703 = vld [vmem:[%s464 + $0xa8] sm:$0xff]
      %v704 = vld [vmem:[%s464 + $0xb0] sm:$0xff]
      %v705 = vld [vmem:[%s464 + $0xc0] sm:$0xff]
      %v706 = vld [vmem:[%s464 + $0xc8] sm:$0xff]
      %v707 = vld [vmem:[%s464 + $0xd8] sm:$0xff]
      %v708 = vld [vmem:[%s464 + $0xe0] sm:$0xff]
      %v709 = vld [vmem:[%s464 + $0xf0] sm:$0xff]
      %v710 = vld [vmem:[%s464 + $0xf8] sm:$0xff]
      %v711 = vld [vmem:[%s464 + $0x108] sm:$0xff]
      %v712 = vld [vmem:[%s464 + $0x110] sm:$0xff]
      %v713 = vld [vmem:[%s464 + $0x120] sm:$0xff]
      %v714 = vld [vmem:[%s464 + $0x128] sm:$0xff]
      %v715 = vld [vmem:[%s464 + $0x138] sm:$0xff]
      %v716 = vld [vmem:[%s464 + $0x140] sm:$0xff]
      %v717 = vld [vmem:[%s464 + $0x150] sm:$0xff]
      %v718 = vld [vmem:[%s464 + $0x158] sm:$0xff]
      %v719 = vld [vmem:[%s464 + $0x168] sm:$0xff]
      %v720 = vld [vmem:[%s464 + $0x170] sm:$0xff]
      %v721 = vpack.c.bf16 %v689, %v689
      %v722 = vpack.c.bf16 %v690, %v690
      %v723 = vpack.c.bf16 %v691, %v691
      %v724 = vpack.c.bf16 %v692, %v692
      %v725 = vpack.c.bf16 %v693, %v693
      %v726 = vpack.c.bf16 %v694, %v694
      %v727 = vpack.c.bf16 %v695, %v695
      %v728 = vpack.c.bf16 %v696, %v696
      %v729 = vpack.c.bf16 %v697, %v697
      %v730 = vpack.c.bf16 %v698, %v698
      %v731 = vpack.c.bf16 %v699, %v699
      %v732 = vpack.c.bf16 %v700, %v700
      %v733 = vpack.c.bf16 %v701, %v701
      %v734 = vpack.c.bf16 %v702, %v702
      %v735 = vpack.c.bf16 %v703, %v703
      %v736 = vpack.c.bf16 %v704, %v704
      %v737 = vpack.c.bf16 %v705, %v705
      %v738 = vpack.c.bf16 %v706, %v706
      %v739 = vpack.c.bf16 %v707, %v707
      %v740 = vpack.c.bf16 %v708, %v708
      %v741 = vpack.c.bf16 %v709, %v709
      %v742 = vpack.c.bf16 %v710, %v710
      %v743 = vpack.c.bf16 %v711, %v711
      %v744 = vpack.c.bf16 %v712, %v712
      %v745 = vpack.c.bf16 %v713, %v713
      %v746 = vpack.c.bf16 %v714, %v714
      %v747 = vpack.c.bf16 %v715, %v715
      %v748 = vpack.c.bf16 %v716, %v716
      %v749 = vpack.c.bf16 %v717, %v717
      %v750 = vpack.c.bf16 %v718, %v718
      %v751 = vpack.c.bf16 %v719, %v719
      %v752 = vpack.c.bf16 %v720, %v720
      %v753 = vld [vmem:[%s464 + $0x1] sm:$0xff]
      %v754 = vld [vmem:[%s464 + $0x9] sm:$0xff]
      %v755 = vld [vmem:[%s464 + $0x19] sm:$0xff]
      %v756 = vld [vmem:[%s464 + $0x21] sm:$0xff]
      %v757 = vld [vmem:[%s464 + $0x31] sm:$0xff]
      %v758 = vld [vmem:[%s464 + $0x39] sm:$0xff]
      %v759 = vld [vmem:[%s464 + $0x49] sm:$0xff]
      %v760 = vld [vmem:[%s464 + $0x51] sm:$0xff]
      %v761 = vld [vmem:[%s464 + $0x61] sm:$0xff]
      %v762 = vld [vmem:[%s464 + $0x69] sm:$0xff]
      %v763 = vld [vmem:[%s464 + $0x79] sm:$0xff]
      %v764 = vld [vmem:[%s464 + $0x81] sm:$0xff]
      %v765 = vld [vmem:[%s464 + $0x91] sm:$0xff]
      %v766 = vld [vmem:[%s464 + $0x99] sm:$0xff]
      %v767 = vld [vmem:[%s464 + $0xa9] sm:$0xff]
      %v768 = vld [vmem:[%s464 + $0xb1] sm:$0xff]
      %v769 = vld [vmem:[%s464 + $0xc1] sm:$0xff]
      %v770 = vld [vmem:[%s464 + $0xc9] sm:$0xff]
      %v771 = vld [vmem:[%s464 + $0xd9] sm:$0xff]
      %v772 = vld [vmem:[%s464 + $0xe1] sm:$0xff]
      %v773 = vld [vmem:[%s464 + $0xf1] sm:$0xff]
      %v774 = vld [vmem:[%s464 + $0xf9] sm:$0xff]
      %v775 = vld [vmem:[%s464 + $0x109] sm:$0xff]
      %v776 = vld [vmem:[%s464 + $0x111] sm:$0xff]
      %v777 = vld [vmem:[%s464 + $0x121] sm:$0xff]
      %v778 = vld [vmem:[%s464 + $0x129] sm:$0xff]
      %v779 = vld [vmem:[%s464 + $0x139] sm:$0xff]
      %v780 = vld [vmem:[%s464 + $0x141] sm:$0xff]
      %v781 = vld [vmem:[%s464 + $0x151] sm:$0xff]
      %v782 = vld [vmem:[%s464 + $0x159] sm:$0xff]
      %v783 = vld [vmem:[%s464 + $0x169] sm:$0xff]
      %v784 = vld [vmem:[%s464 + $0x171] sm:$0xff]
      %v785 = vpack.c.bf16 %v753, %v753
      %v786 = vpack.c.bf16 %v754, %v754
      %v787 = vpack.c.bf16 %v755, %v755
      %v788 = vpack.c.bf16 %v756, %v756
      %v789 = vpack.c.bf16 %v757, %v757
      %v790 = vpack.c.bf16 %v758, %v758
      %v791 = vpack.c.bf16 %v759, %v759
      %v792 = vpack.c.bf16 %v760, %v760
      %v793 = vpack.c.bf16 %v761, %v761
      %v794 = vpack.c.bf16 %v762, %v762
      %v795 = vpack.c.bf16 %v763, %v763
      %v796 = vpack.c.bf16 %v764, %v764
      %v797 = vpack.c.bf16 %v765, %v765
      %v798 = vpack.c.bf16 %v766, %v766
      %v799 = vpack.c.bf16 %v767, %v767
      %v800 = vpack.c.bf16 %v768, %v768
      %v801 = vpack.c.bf16 %v769, %v769
      %v802 = vpack.c.bf16 %v770, %v770
      %v803 = vpack.c.bf16 %v771, %v771
      %v804 = vpack.c.bf16 %v772, %v772
      %v805 = vpack.c.bf16 %v773, %v773
      %v806 = vpack.c.bf16 %v774, %v774
      %v807 = vpack.c.bf16 %v775, %v775
      %v808 = vpack.c.bf16 %v776, %v776
      %v809 = vpack.c.bf16 %v777, %v777
      %v810 = vpack.c.bf16 %v778, %v778
      %v811 = vpack.c.bf16 %v779, %v779
      %v812 = vpack.c.bf16 %v780, %v780
      %v813 = vpack.c.bf16 %v781, %v781
      %v814 = vpack.c.bf16 %v782, %v782
      %v815 = vpack.c.bf16 %v783, %v783
      %v816 = vpack.c.bf16 %v784, %v784
      %v817 = vld [vmem:[%s464 + $0x2] sm:$0xff]
      %v818 = vld [vmem:[%s464 + $0xa] sm:$0xff]
      %v819 = vld [vmem:[%s464 + $0x1a] sm:$0xff]
      %v820 = vld [vmem:[%s464 + $0x22] sm:$0xff]
      %v821 = vld [vmem:[%s464 + $0x32] sm:$0xff]
      %v822 = vld [vmem:[%s464 + $0x3a] sm:$0xff]
      %v823 = vld [vmem:[%s464 + $0x4a] sm:$0xff]
      %v824 = vld [vmem:[%s464 + $0x52] sm:$0xff]
      %v825 = vld [vmem:[%s464 + $0x62] sm:$0xff]
      %v826 = vld [vmem:[%s464 + $0x6a] sm:$0xff]
      %v827 = vld [vmem:[%s464 + $0x7a] sm:$0xff]
      %v828 = vld [vmem:[%s464 + $0x82] sm:$0xff]
      %v829 = vld [vmem:[%s464 + $0x92] sm:$0xff]
      %v830 = vld [vmem:[%s464 + $0x9a] sm:$0xff]
      %v831 = vld [vmem:[%s464 + $0xaa] sm:$0xff]
      %v832 = vld [vmem:[%s464 + $0xb2] sm:$0xff]
      %v833 = vld [vmem:[%s464 + $0xc2] sm:$0xff]
      %v834 = vld [vmem:[%s464 + $0xca] sm:$0xff]
      %v835 = vld [vmem:[%s464 + $0xda] sm:$0xff]
      %v836 = vld [vmem:[%s464 + $0xe2] sm:$0xff]
      %v837 = vld [vmem:[%s464 + $0xf2] sm:$0xff]
      %v838 = vld [vmem:[%s464 + $0xfa] sm:$0xff]
      %v839 = vld [vmem:[%s464 + $0x10a] sm:$0xff]
      %v840 = vld [vmem:[%s464 + $0x112] sm:$0xff]
      %v841 = vld [vmem:[%s464 + $0x122] sm:$0xff]
      %v842 = vld [vmem:[%s464 + $0x12a] sm:$0xff]
      %v843 = vld [vmem:[%s464 + $0x13a] sm:$0xff]
      %v844 = vld [vmem:[%s464 + $0x142] sm:$0xff]
      %v845 = vld [vmem:[%s464 + $0x152] sm:$0xff]
      %v846 = vld [vmem:[%s464 + $0x15a] sm:$0xff]
      %v847 = vld [vmem:[%s464 + $0x16a] sm:$0xff]
      %v848 = vld [vmem:[%s464 + $0x172] sm:$0xff]
      %v849 = vpack.c.bf16 %v817, %v817
      %v850 = vpack.c.bf16 %v818, %v818
      %v851 = vpack.c.bf16 %v819, %v819
      %v852 = vpack.c.bf16 %v820, %v820
      %v853 = vpack.c.bf16 %v821, %v821
      %v854 = vpack.c.bf16 %v822, %v822
      %v855 = vpack.c.bf16 %v823, %v823
      %v856 = vpack.c.bf16 %v824, %v824
      %v857 = vpack.c.bf16 %v825, %v825
      %v858 = vpack.c.bf16 %v826, %v826
      %v859 = vpack.c.bf16 %v827, %v827
      %v860 = vpack.c.bf16 %v828, %v828
      %v861 = vpack.c.bf16 %v829, %v829
      %v862 = vpack.c.bf16 %v830, %v830
      %v863 = vpack.c.bf16 %v831, %v831
      %v864 = vpack.c.bf16 %v832, %v832
      %v865 = vpack.c.bf16 %v833, %v833
      %v866 = vpack.c.bf16 %v834, %v834
      %v867 = vpack.c.bf16 %v835, %v835
      %v868 = vpack.c.bf16 %v836, %v836
      %v869 = vpack.c.bf16 %v837, %v837
      %v870 = vpack.c.bf16 %v838, %v838
      %v871 = vpack.c.bf16 %v839, %v839
      %v872 = vpack.c.bf16 %v840, %v840
      %v873 = vpack.c.bf16 %v841, %v841
      %v874 = vpack.c.bf16 %v842, %v842
      %v875 = vpack.c.bf16 %v843, %v843
      %v876 = vpack.c.bf16 %v844, %v844
      %v877 = vpack.c.bf16 %v845, %v845
      %v878 = vpack.c.bf16 %v846, %v846
      %v879 = vpack.c.bf16 %v847, %v847
      %v880 = vpack.c.bf16 %v848, %v848
      %s881 = scalar_lea.vmem [#allocation2], 48
      %v882 = vld [vmem:[%s881] sm:$0xff]
      %v883 = vld [vmem:[%s881 + $0x8] sm:$0xff]
      %v884 = vld [vmem:[%s881 + $0x18] sm:$0xff]
      %v885 = vld [vmem:[%s881 + $0x20] sm:$0xff]
      %v886 = vld [vmem:[%s881 + $0x30] sm:$0xff]
      %v887 = vld [vmem:[%s881 + $0x38] sm:$0xff]
      %v888 = vld [vmem:[%s881 + $0x48] sm:$0xff]
      %v889 = vld [vmem:[%s881 + $0x50] sm:$0xff]
      %v890 = vld [vmem:[%s881 + $0x60] sm:$0xff]
      %v891 = vld [vmem:[%s881 + $0x68] sm:$0xff]
      %v892 = vld [vmem:[%s881 + $0x78] sm:$0xff]
      %v893 = vld [vmem:[%s881 + $0x80] sm:$0xff]
      %v894 = vld [vmem:[%s881 + $0x90] sm:$0xff]
      %v895 = vld [vmem:[%s881 + $0x98] sm:$0xff]
      %v896 = vld [vmem:[%s881 + $0xa8] sm:$0xff]
      %v897 = vld [vmem:[%s881 + $0xb0] sm:$0xff]
      %v898 = vld [vmem:[%s881 + $0xc0] sm:$0xff]
      %v899 = vld [vmem:[%s881 + $0xc8] sm:$0xff]
      %v900 = vld [vmem:[%s881 + $0xd8] sm:$0xff]
      %v901 = vld [vmem:[%s881 + $0xe0] sm:$0xff]
      %v902 = vld [vmem:[%s881 + $0xf0] sm:$0xff]
      %v903 = vld [vmem:[%s881 + $0xf8] sm:$0xff]
      %v904 = vld [vmem:[%s881 + $0x108] sm:$0xff]
      %v905 = vld [vmem:[%s881 + $0x110] sm:$0xff]
      %v906 = vld [vmem:[%s881 + $0x120] sm:$0xff]
      %v907 = vld [vmem:[%s881 + $0x128] sm:$0xff]
      %v908 = vld [vmem:[%s881 + $0x138] sm:$0xff]
      %v909 = vld [vmem:[%s881 + $0x140] sm:$0xff]
      %v910 = vld [vmem:[%s881 + $0x150] sm:$0xff]
      %v911 = vld [vmem:[%s881 + $0x158] sm:$0xff]
      %v912 = vld [vmem:[%s881 + $0x168] sm:$0xff]
      %v913 = vld [vmem:[%s881 + $0x170] sm:$0xff]
      %v914 = vpack.c.bf16 %v882, %v882
      %v915 = vpack.c.bf16 %v883, %v883
      %v916 = vpack.c.bf16 %v884, %v884
      %v917 = vpack.c.bf16 %v885, %v885
      %v918 = vpack.c.bf16 %v886, %v886
      %v919 = vpack.c.bf16 %v887, %v887
      %v920 = vpack.c.bf16 %v888, %v888
      %v921 = vpack.c.bf16 %v889, %v889
      %v922 = vpack.c.bf16 %v890, %v890
      %v923 = vpack.c.bf16 %v891, %v891
      %v924 = vpack.c.bf16 %v892, %v892
      %v925 = vpack.c.bf16 %v893, %v893
      %v926 = vpack.c.bf16 %v894, %v894
      %v927 = vpack.c.bf16 %v895, %v895
      %v928 = vpack.c.bf16 %v896, %v896
      %v929 = vpack.c.bf16 %v897, %v897
      %v930 = vpack.c.bf16 %v898, %v898
      %v931 = vpack.c.bf16 %v899, %v899
      %v932 = vpack.c.bf16 %v900, %v900
      %v933 = vpack.c.bf16 %v901, %v901
      %v934 = vpack.c.bf16 %v902, %v902
      %v935 = vpack.c.bf16 %v903, %v903
      %v936 = vpack.c.bf16 %v904, %v904
      %v937 = vpack.c.bf16 %v905, %v905
      %v938 = vpack.c.bf16 %v906, %v906
      %v939 = vpack.c.bf16 %v907, %v907
      %v940 = vpack.c.bf16 %v908, %v908
      %v941 = vpack.c.bf16 %v909, %v909
      %v942 = vpack.c.bf16 %v910, %v910
      %v943 = vpack.c.bf16 %v911, %v911
      %v944 = vpack.c.bf16 %v912, %v912
      %v945 = vpack.c.bf16 %v913, %v913
      %v946 = vld [vmem:[%s881 + $0x1] sm:$0xff]
      %v947 = vld [vmem:[%s881 + $0x9] sm:$0xff]
      %v948 = vld [vmem:[%s881 + $0x19] sm:$0xff]
      %v949 = vld [vmem:[%s881 + $0x21] sm:$0xff]
      %v950 = vld [vmem:[%s881 + $0x31] sm:$0xff]
      %v951 = vld [vmem:[%s881 + $0x39] sm:$0xff]
      %v952 = vld [vmem:[%s881 + $0x49] sm:$0xff]
      %v953 = vld [vmem:[%s881 + $0x51] sm:$0xff]
      %v954 = vld [vmem:[%s881 + $0x61] sm:$0xff]
      %v955 = vld [vmem:[%s881 + $0x69] sm:$0xff]
      %v956 = vld [vmem:[%s881 + $0x79] sm:$0xff]
      %v957 = vld [vmem:[%s881 + $0x81] sm:$0xff]
      %v958 = vld [vmem:[%s881 + $0x91] sm:$0xff]
      %v959 = vld [vmem:[%s881 + $0x99] sm:$0xff]
      %v960 = vld [vmem:[%s881 + $0xa9] sm:$0xff]
      %v961 = vld [vmem:[%s881 + $0xb1] sm:$0xff]
      %v962 = vld [vmem:[%s881 + $0xc1] sm:$0xff]
      %v963 = vld [vmem:[%s881 + $0xc9] sm:$0xff]
      %v964 = vld [vmem:[%s881 + $0xd9] sm:$0xff]
      %v965 = vld [vmem:[%s881 + $0xe1] sm:$0xff]
      %v966 = vld [vmem:[%s881 + $0xf1] sm:$0xff]
      %v967 = vld [vmem:[%s881 + $0xf9] sm:$0xff]
      %v968 = vld [vmem:[%s881 + $0x109] sm:$0xff]
      %v969 = vld [vmem:[%s881 + $0x111] sm:$0xff]
      %v970 = vld [vmem:[%s881 + $0x121] sm:$0xff]
      %v971 = vld [vmem:[%s881 + $0x129] sm:$0xff]
      %v972 = vld [vmem:[%s881 + $0x139] sm:$0xff]
      %v973 = vld [vmem:[%s881 + $0x141] sm:$0xff]
      %v974 = vld [vmem:[%s881 + $0x151] sm:$0xff]
      %v975 = vld [vmem:[%s881 + $0x159] sm:$0xff]
      %v976 = vld [vmem:[%s881 + $0x169] sm:$0xff]
      %v977 = vld [vmem:[%s881 + $0x171] sm:$0xff]
      %v978 = vpack.c.bf16 %v946, %v946
      %v979 = vpack.c.bf16 %v947, %v947
      %v980 = vpack.c.bf16 %v948, %v948
      %v981 = vpack.c.bf16 %v949, %v949
      %v982 = vpack.c.bf16 %v950, %v950
      %v983 = vpack.c.bf16 %v951, %v951
      %v984 = vpack.c.bf16 %v952, %v952
      %v985 = vpack.c.bf16 %v953, %v953
      %v986 = vpack.c.bf16 %v954, %v954
      %v987 = vpack.c.bf16 %v955, %v955
      %v988 = vpack.c.bf16 %v956, %v956
      %v989 = vpack.c.bf16 %v957, %v957
      %v990 = vpack.c.bf16 %v958, %v958
      %v991 = vpack.c.bf16 %v959, %v959
      %v992 = vpack.c.bf16 %v960, %v960
      %v993 = vpack.c.bf16 %v961, %v961
      %v994 = vpack.c.bf16 %v962, %v962
      %v995 = vpack.c.bf16 %v963, %v963
      %v996 = vpack.c.bf16 %v964, %v964
      %v997 = vpack.c.bf16 %v965, %v965
      %v998 = vpack.c.bf16 %v966, %v966
      %v999 = vpack.c.bf16 %v967, %v967
      %v1000 = vpack.c.bf16 %v968, %v968
      %v1001 = vpack.c.bf16 %v969, %v969
      %v1002 = vpack.c.bf16 %v970, %v970
      %v1003 = vpack.c.bf16 %v971, %v971
      %v1004 = vpack.c.bf16 %v972, %v972
      %v1005 = vpack.c.bf16 %v973, %v973
      %v1006 = vpack.c.bf16 %v974, %v974
      %v1007 = vpack.c.bf16 %v975, %v975
      %v1008 = vpack.c.bf16 %v976, %v976
      %v1009 = vpack.c.bf16 %v977, %v977
      %v1010 = vld [vmem:[%s881 + $0x2] sm:$0xff]
      %v1011 = vld [vmem:[%s881 + $0xa] sm:$0xff]
      %v1012 = vld [vmem:[%s881 + $0x1a] sm:$0xff]
      %v1013 = vld [vmem:[%s881 + $0x22] sm:$0xff]
      %v1014 = vld [vmem:[%s881 + $0x32] sm:$0xff]
      %v1015 = vld [vmem:[%s881 + $0x3a] sm:$0xff]
      %v1016 = vld [vmem:[%s881 + $0x4a] sm:$0xff]
      %v1017 = vld [vmem:[%s881 + $0x52] sm:$0xff]
      %v1018 = vld [vmem:[%s881 + $0x62] sm:$0xff]
      %v1019 = vld [vmem:[%s881 + $0x6a] sm:$0xff]
      %v1020 = vld [vmem:[%s881 + $0x7a] sm:$0xff]
      %v1021 = vld [vmem:[%s881 + $0x82] sm:$0xff]
      %v1022 = vld [vmem:[%s881 + $0x92] sm:$0xff]
      %v1023 = vld [vmem:[%s881 + $0x9a] sm:$0xff]
      %v1024 = vld [vmem:[%s881 + $0xaa] sm:$0xff]
      %v1025 = vld [vmem:[%s881 + $0xb2] sm:$0xff]
      %v1026 = vld [vmem:[%s881 + $0xc2] sm:$0xff]
      %v1027 = vld [vmem:[%s881 + $0xca] sm:$0xff]
      %v1028 = vld [vmem:[%s881 + $0xda] sm:$0xff]
      %v1029 = vld [vmem:[%s881 + $0xe2] sm:$0xff]
      %v1030 = vld [vmem:[%s881 + $0xf2] sm:$0xff]
      %v1031 = vld [vmem:[%s881 + $0xfa] sm:$0xff]
      %v1032 = vld [vmem:[%s881 + $0x10a] sm:$0xff]
      %v1033 = vld [vmem:[%s881 + $0x112] sm:$0xff]
      %v1034 = vld [vmem:[%s881 + $0x122] sm:$0xff]
      %v1035 = vld [vmem:[%s881 + $0x12a] sm:$0xff]
      %v1036 = vld [vmem:[%s881 + $0x13a] sm:$0xff]
      %v1037 = vld [vmem:[%s881 + $0x142] sm:$0xff]
      %v1038 = vld [vmem:[%s881 + $0x152] sm:$0xff]
      %v1039 = vld [vmem:[%s881 + $0x15a] sm:$0xff]
      %v1040 = vld [vmem:[%s881 + $0x16a] sm:$0xff]
      %v1041 = vld [vmem:[%s881 + $0x172] sm:$0xff]
      %v1042 = vpack.c.bf16 %v1010, %v1010
      %v1043 = vpack.c.bf16 %v1011, %v1011
      %v1044 = vpack.c.bf16 %v1012, %v1012
      %v1045 = vpack.c.bf16 %v1013, %v1013
      %v1046 = vpack.c.bf16 %v1014, %v1014
      %v1047 = vpack.c.bf16 %v1015, %v1015
      %v1048 = vpack.c.bf16 %v1016, %v1016
      %v1049 = vpack.c.bf16 %v1017, %v1017
      %v1050 = vpack.c.bf16 %v1018, %v1018
      %v1051 = vpack.c.bf16 %v1019, %v1019
      %v1052 = vpack.c.bf16 %v1020, %v1020
      %v1053 = vpack.c.bf16 %v1021, %v1021
      %v1054 = vpack.c.bf16 %v1022, %v1022
      %v1055 = vpack.c.bf16 %v1023, %v1023
      %v1056 = vpack.c.bf16 %v1024, %v1024
      %v1057 = vpack.c.bf16 %v1025, %v1025
      %v1058 = vpack.c.bf16 %v1026, %v1026
      %v1059 = vpack.c.bf16 %v1027, %v1027
      %v1060 = vpack.c.bf16 %v1028, %v1028
      %v1061 = vpack.c.bf16 %v1029, %v1029
      %v1062 = vpack.c.bf16 %v1030, %v1030
      %v1063 = vpack.c.bf16 %v1031, %v1031
      %v1064 = vpack.c.bf16 %v1032, %v1032
      %v1065 = vpack.c.bf16 %v1033, %v1033
      %v1066 = vpack.c.bf16 %v1034, %v1034
      %v1067 = vpack.c.bf16 %v1035, %v1035
      %v1068 = vpack.c.bf16 %v1036, %v1036
      %v1069 = vpack.c.bf16 %v1037, %v1037
      %v1070 = vpack.c.bf16 %v1038, %v1038
      %v1071 = vpack.c.bf16 %v1039, %v1039
      %v1072 = vpack.c.bf16 %v1040, %v1040
      %v1073 = vpack.c.bf16 %v1041, %v1041
      %v1106 = vunpack.c.l.b16 %v529
      %v1107 = vunpack.c.l.b16 %v530
      %v1108 = vunpack.c.l.b16 %v531
      %v1109 = vunpack.c.l.b16 %v532
      %v1110 = vunpack.c.l.b16 %v533
      %v1111 = vunpack.c.l.b16 %v534
      %v1112 = vunpack.c.l.b16 %v535
      %v1113 = vunpack.c.l.b16 %v536
      %v1114 = vunpack.c.l.b16 %v537
      %v1115 = vunpack.c.l.b16 %v538
      %v1116 = vunpack.c.l.b16 %v539
      %v1117 = vunpack.c.l.b16 %v540
      %v1118 = vunpack.c.l.b16 %v541
      %v1119 = vunpack.c.l.b16 %v542
      %v1120 = vunpack.c.l.b16 %v543
      %v1121 = vunpack.c.l.b16 %v544
      %v1122 = vunpack.c.l.b16 %v545
      %v1123 = vunpack.c.l.b16 %v546
      %v1124 = vunpack.c.l.b16 %v547
      %v1125 = vunpack.c.l.b16 %v548
      %v1126 = vunpack.c.l.b16 %v549
      %v1127 = vunpack.c.l.b16 %v550
      %v1128 = vunpack.c.l.b16 %v551
      %v1129 = vunpack.c.l.b16 %v552
      %v1130 = vunpack.c.l.b16 %v553
      %v1131 = vunpack.c.l.b16 %v554
      %v1132 = vunpack.c.l.b16 %v555
      %v1133 = vunpack.c.l.b16 %v556
      %v1134 = vunpack.c.l.b16 %v557
      %v1135 = vunpack.c.l.b16 %v558
      %v1136 = vunpack.c.l.b16 %v559
      %v1137 = vunpack.c.l.b16 %v560
      %v1138 = vpack.c.b16 %v1107, %v1106
      %v1139 = vpack.c.b16 %v1109, %v1108
      %v1140 = vpack.c.b16 %v1111, %v1110
      %v1141 = vpack.c.b16 %v1113, %v1112
      %v1142 = vpack.c.b16 %v1115, %v1114
      %v1143 = vpack.c.b16 %v1117, %v1116
      %v1144 = vpack.c.b16 %v1119, %v1118
      %v1145 = vpack.c.b16 %v1121, %v1120
      %v1146 = vpack.c.b16 %v1123, %v1122
      %v1147 = vpack.c.b16 %v1125, %v1124
      %v1148 = vpack.c.b16 %v1127, %v1126
      %v1149 = vpack.c.b16 %v1129, %v1128
      %v1150 = vpack.c.b16 %v1131, %v1130
      %v1151 = vpack.c.b16 %v1133, %v1132
      %v1152 = vpack.c.b16 %v1135, %v1134
      %v1153 = vpack.c.b16 %v1137, %v1136
      %v1186 = vunpack.c.l.b16 %v593
      %v1187 = vunpack.c.l.b16 %v594
      %v1188 = vunpack.c.l.b16 %v595
      %v1189 = vunpack.c.l.b16 %v596
      %v1190 = vunpack.c.l.b16 %v597
      %v1191 = vunpack.c.l.b16 %v598
      %v1192 = vunpack.c.l.b16 %v599
      %v1193 = vunpack.c.l.b16 %v600
      %v1194 = vunpack.c.l.b16 %v601
      %v1195 = vunpack.c.l.b16 %v602
      %v1196 = vunpack.c.l.b16 %v603
      %v1197 = vunpack.c.l.b16 %v604
      %v1198 = vunpack.c.l.b16 %v605
      %v1199 = vunpack.c.l.b16 %v606
      %v1200 = vunpack.c.l.b16 %v607
      %v1201 = vunpack.c.l.b16 %v608
      %v1202 = vunpack.c.l.b16 %v609
      %v1203 = vunpack.c.l.b16 %v610
      %v1204 = vunpack.c.l.b16 %v611
      %v1205 = vunpack.c.l.b16 %v612
      %v1206 = vunpack.c.l.b16 %v613
      %v1207 = vunpack.c.l.b16 %v614
      %v1208 = vunpack.c.l.b16 %v615
      %v1209 = vunpack.c.l.b16 %v616
      %v1210 = vunpack.c.l.b16 %v617
      %v1211 = vunpack.c.l.b16 %v618
      %v1212 = vunpack.c.l.b16 %v619
      %v1213 = vunpack.c.l.b16 %v620
      %v1214 = vunpack.c.l.b16 %v621
      %v1215 = vunpack.c.l.b16 %v622
      %v1216 = vunpack.c.l.b16 %v623
      %v1217 = vunpack.c.l.b16 %v624
      %v1218 = vpack.c.b16 %v1187, %v1186
      %v1219 = vpack.c.b16 %v1189, %v1188
      %v1220 = vpack.c.b16 %v1191, %v1190
      %v1221 = vpack.c.b16 %v1193, %v1192
      %v1222 = vpack.c.b16 %v1195, %v1194
      %v1223 = vpack.c.b16 %v1197, %v1196
      %v1224 = vpack.c.b16 %v1199, %v1198
      %v1225 = vpack.c.b16 %v1201, %v1200
      %v1226 = vpack.c.b16 %v1203, %v1202
      %v1227 = vpack.c.b16 %v1205, %v1204
      %v1228 = vpack.c.b16 %v1207, %v1206
      %v1229 = vpack.c.b16 %v1209, %v1208
      %v1230 = vpack.c.b16 %v1211, %v1210
      %v1231 = vpack.c.b16 %v1213, %v1212
      %v1232 = vpack.c.b16 %v1215, %v1214
      %v1233 = vpack.c.b16 %v1217, %v1216
      %1234 = vrot.lane.b32.xlu0 %v1218, 4
      %v1235 = vpop.permute.xlu0 %1234
      %1236 = vrot.lane.b32.xlu0 %v1219, 4
      %v1237 = vpop.permute.xlu0 %1236
      %1238 = vrot.lane.b32.xlu0 %v1220, 4
      %v1239 = vpop.permute.xlu0 %1238
      %1240 = vrot.lane.b32.xlu0 %v1221, 4
      %v1241 = vpop.permute.xlu0 %1240
      %1242 = vrot.lane.b32.xlu0 %v1222, 4
      %v1243 = vpop.permute.xlu0 %1242
      %1244 = vrot.lane.b32.xlu0 %v1223, 4
      %v1245 = vpop.permute.xlu0 %1244
      %1246 = vrot.lane.b32.xlu0 %v1224, 4
      %v1247 = vpop.permute.xlu0 %1246
      %1248 = vrot.lane.b32.xlu0 %v1225, 4
      %v1249 = vpop.permute.xlu0 %1248
      %1250 = vrot.lane.b32.xlu0 %v1226, 4
      %v1251 = vpop.permute.xlu0 %1250
      %1252 = vrot.lane.b32.xlu0 %v1227, 4
      %v1253 = vpop.permute.xlu0 %1252
      %1254 = vrot.lane.b32.xlu0 %v1228, 4
      %v1255 = vpop.permute.xlu0 %1254
      %1256 = vrot.lane.b32.xlu0 %v1229, 4
      %v1257 = vpop.permute.xlu0 %1256
      %1258 = vrot.lane.b32.xlu0 %v1230, 4
      %v1259 = vpop.permute.xlu0 %1258
      %1260 = vrot.lane.b32.xlu0 %v1231, 4
      %v1261 = vpop.permute.xlu0 %1260
      %1262 = vrot.lane.b32.xlu0 %v1232, 4
      %v1263 = vpop.permute.xlu0 %1262
      %1264 = vrot.lane.b32.xlu0 %v1233, 4
      %v1265 = vpop.permute.xlu0 %1264
      %v1298 = vunpack.c.l.b16 %v657
      %v1299 = vunpack.c.l.b16 %v658
      %v1300 = vunpack.c.l.b16 %v659
      %v1301 = vunpack.c.l.b16 %v660
      %v1302 = vunpack.c.l.b16 %v661
      %v1303 = vunpack.c.l.b16 %v662
      %v1304 = vunpack.c.l.b16 %v663
      %v1305 = vunpack.c.l.b16 %v664
      %v1306 = vunpack.c.l.b16 %v665
      %v1307 = vunpack.c.l.b16 %v666
      %v1308 = vunpack.c.l.b16 %v667
      %v1309 = vunpack.c.l.b16 %v668
      %v1310 = vunpack.c.l.b16 %v669
      %v1311 = vunpack.c.l.b16 %v670
      %v1312 = vunpack.c.l.b16 %v671
      %v1313 = vunpack.c.l.b16 %v672
      %v1314 = vunpack.c.l.b16 %v673
      %v1315 = vunpack.c.l.b16 %v674
      %v1316 = vunpack.c.l.b16 %v675
      %v1317 = vunpack.c.l.b16 %v676
      %v1318 = vunpack.c.l.b16 %v677
      %v1319 = vunpack.c.l.b16 %v678
      %v1320 = vunpack.c.l.b16 %v679
      %v1321 = vunpack.c.l.b16 %v680
      %v1322 = vunpack.c.l.b16 %v681
      %v1323 = vunpack.c.l.b16 %v682
      %v1324 = vunpack.c.l.b16 %v683
      %v1325 = vunpack.c.l.b16 %v684
      %v1326 = vunpack.c.l.b16 %v685
      %v1327 = vunpack.c.l.b16 %v686
      %v1328 = vunpack.c.l.b16 %v687
      %v1329 = vunpack.c.l.b16 %v688
      %v1330 = vpack.c.b16 %v1299, %v1298
      %v1331 = vpack.c.b16 %v1301, %v1300
      %v1332 = vpack.c.b16 %v1303, %v1302
      %v1333 = vpack.c.b16 %v1305, %v1304
      %v1334 = vpack.c.b16 %v1307, %v1306
      %v1335 = vpack.c.b16 %v1309, %v1308
      %v1336 = vpack.c.b16 %v1311, %v1310
      %v1337 = vpack.c.b16 %v1313, %v1312
      %v1338 = vpack.c.b16 %v1315, %v1314
      %v1339 = vpack.c.b16 %v1317, %v1316
      %v1340 = vpack.c.b16 %v1319, %v1318
      %v1341 = vpack.c.b16 %v1321, %v1320
      %v1342 = vpack.c.b16 %v1323, %v1322
      %v1343 = vpack.c.b16 %v1325, %v1324
      %v1344 = vpack.c.b16 %v1327, %v1326
      %v1345 = vpack.c.b16 %v1329, %v1328
      %1346 = vrot.lane.b32.xlu0 %v1330, 8
      %v1347 = vpop.permute.xlu0 %1346
      %1348 = vrot.lane.b32.xlu0 %v1331, 8
      %v1349 = vpop.permute.xlu0 %1348
      %1350 = vrot.lane.b32.xlu0 %v1332, 8
      %v1351 = vpop.permute.xlu0 %1350
      %1352 = vrot.lane.b32.xlu0 %v1333, 8
      %v1353 = vpop.permute.xlu0 %1352
      %1354 = vrot.lane.b32.xlu0 %v1334, 8
      %v1355 = vpop.permute.xlu0 %1354
      %1356 = vrot.lane.b32.xlu0 %v1335, 8
      %v1357 = vpop.permute.xlu0 %1356
      %1358 = vrot.lane.b32.xlu0 %v1336, 8
      %v1359 = vpop.permute.xlu0 %1358
      %1360 = vrot.lane.b32.xlu0 %v1337, 8
      %v1361 = vpop.permute.xlu0 %1360
      %1362 = vrot.lane.b32.xlu0 %v1338, 8
      %v1363 = vpop.permute.xlu0 %1362
      %1364 = vrot.lane.b32.xlu0 %v1339, 8
      %v1365 = vpop.permute.xlu0 %1364
      %1366 = vrot.lane.b32.xlu0 %v1340, 8
      %v1367 = vpop.permute.xlu0 %1366
      %1368 = vrot.lane.b32.xlu0 %v1341, 8
      %v1369 = vpop.permute.xlu0 %1368
      %1370 = vrot.lane.b32.xlu0 %v1342, 8
      %v1371 = vpop.permute.xlu0 %1370
      %1372 = vrot.lane.b32.xlu0 %v1343, 8
      %v1373 = vpop.permute.xlu0 %1372
      %1374 = vrot.lane.b32.xlu0 %v1344, 8
      %v1375 = vpop.permute.xlu0 %1374
      %1376 = vrot.lane.b32.xlu0 %v1345, 8
      %v1377 = vpop.permute.xlu0 %1376
      %v1410 = vunpack.c.l.b16 %v721
      %v1411 = vunpack.c.l.b16 %v722
      %v1412 = vunpack.c.l.b16 %v723
      %v1413 = vunpack.c.l.b16 %v724
      %v1414 = vunpack.c.l.b16 %v725
      %v1415 = vunpack.c.l.b16 %v726
      %v1416 = vunpack.c.l.b16 %v727
      %v1417 = vunpack.c.l.b16 %v728
      %v1418 = vunpack.c.l.b16 %v729
      %v1419 = vunpack.c.l.b16 %v730
      %v1420 = vunpack.c.l.b16 %v731
      %v1421 = vunpack.c.l.b16 %v732
      %v1422 = vunpack.c.l.b16 %v733
      %v1423 = vunpack.c.l.b16 %v734
      %v1424 = vunpack.c.l.b16 %v735
      %v1425 = vunpack.c.l.b16 %v736
      %v1426 = vunpack.c.l.b16 %v737
      %v1427 = vunpack.c.l.b16 %v738
      %v1428 = vunpack.c.l.b16 %v739
      %v1429 = vunpack.c.l.b16 %v740
      %v1430 = vunpack.c.l.b16 %v741
      %v1431 = vunpack.c.l.b16 %v742
      %v1432 = vunpack.c.l.b16 %v743
      %v1433 = vunpack.c.l.b16 %v744
      %v1434 = vunpack.c.l.b16 %v745
      %v1435 = vunpack.c.l.b16 %v746
      %v1436 = vunpack.c.l.b16 %v747
      %v1437 = vunpack.c.l.b16 %v748
      %v1438 = vunpack.c.l.b16 %v749
      %v1439 = vunpack.c.l.b16 %v750
      %v1440 = vunpack.c.l.b16 %v751
      %v1441 = vunpack.c.l.b16 %v752
      %v1442 = vpack.c.b16 %v1411, %v1410
      %v1443 = vpack.c.b16 %v1413, %v1412
      %v1444 = vpack.c.b16 %v1415, %v1414
      %v1445 = vpack.c.b16 %v1417, %v1416
      %v1446 = vpack.c.b16 %v1419, %v1418
      %v1447 = vpack.c.b16 %v1421, %v1420
      %v1448 = vpack.c.b16 %v1423, %v1422
      %v1449 = vpack.c.b16 %v1425, %v1424
      %v1450 = vpack.c.b16 %v1427, %v1426
      %v1451 = vpack.c.b16 %v1429, %v1428
      %v1452 = vpack.c.b16 %v1431, %v1430
      %v1453 = vpack.c.b16 %v1433, %v1432
      %v1454 = vpack.c.b16 %v1435, %v1434
      %v1455 = vpack.c.b16 %v1437, %v1436
      %v1456 = vpack.c.b16 %v1439, %v1438
      %v1457 = vpack.c.b16 %v1441, %v1440
      %1458 = vrot.lane.b32.xlu0 %v1442, 12
      %v1459 = vpop.permute.xlu0 %1458
      %1460 = vrot.lane.b32.xlu0 %v1443, 12
      %v1461 = vpop.permute.xlu0 %1460
      %1462 = vrot.lane.b32.xlu0 %v1444, 12
      %v1463 = vpop.permute.xlu0 %1462
      %1464 = vrot.lane.b32.xlu0 %v1445, 12
      %v1465 = vpop.permute.xlu0 %1464
      %1466 = vrot.lane.b32.xlu0 %v1446, 12
      %v1467 = vpop.permute.xlu0 %1466
      %1468 = vrot.lane.b32.xlu0 %v1447, 12
      %v1469 = vpop.permute.xlu0 %1468
      %1470 = vrot.lane.b32.xlu0 %v1448, 12
      %v1471 = vpop.permute.xlu0 %1470
      %1472 = vrot.lane.b32.xlu0 %v1449, 12
      %v1473 = vpop.permute.xlu0 %1472
      %1474 = vrot.lane.b32.xlu0 %v1450, 12
      %v1475 = vpop.permute.xlu0 %1474
      %1476 = vrot.lane.b32.xlu0 %v1451, 12
      %v1477 = vpop.permute.xlu0 %1476
      %1478 = vrot.lane.b32.xlu0 %v1452, 12
      %v1479 = vpop.permute.xlu0 %1478
      %1480 = vrot.lane.b32.xlu0 %v1453, 12
      %v1481 = vpop.permute.xlu0 %1480
      %1482 = vrot.lane.b32.xlu0 %v1454, 12
      %v1483 = vpop.permute.xlu0 %1482
      %1484 = vrot.lane.b32.xlu0 %v1455, 12
      %v1485 = vpop.permute.xlu0 %1484
      %1486 = vrot.lane.b32.xlu0 %v1456, 12
      %v1487 = vpop.permute.xlu0 %1486
      %1488 = vrot.lane.b32.xlu0 %v1457, 12
      %v1489 = vpop.permute.xlu0 %1488
      %v1522 = vunpack.c.l.b16 %v785
      %v1523 = vunpack.c.l.b16 %v786
      %v1524 = vunpack.c.l.b16 %v787
      %v1525 = vunpack.c.l.b16 %v788
      %v1526 = vunpack.c.l.b16 %v789
      %v1527 = vunpack.c.l.b16 %v790
      %v1528 = vunpack.c.l.b16 %v791
      %v1529 = vunpack.c.l.b16 %v792
      %v1530 = vunpack.c.l.b16 %v793
      %v1531 = vunpack.c.l.b16 %v794
      %v1532 = vunpack.c.l.b16 %v795
      %v1533 = vunpack.c.l.b16 %v796
      %v1534 = vunpack.c.l.b16 %v797
      %v1535 = vunpack.c.l.b16 %v798
      %v1536 = vunpack.c.l.b16 %v799
      %v1537 = vunpack.c.l.b16 %v800
      %v1538 = vunpack.c.l.b16 %v801
      %v1539 = vunpack.c.l.b16 %v802
      %v1540 = vunpack.c.l.b16 %v803
      %v1541 = vunpack.c.l.b16 %v804
      %v1542 = vunpack.c.l.b16 %v805
      %v1543 = vunpack.c.l.b16 %v806
      %v1544 = vunpack.c.l.b16 %v807
      %v1545 = vunpack.c.l.b16 %v808
      %v1546 = vunpack.c.l.b16 %v809
      %v1547 = vunpack.c.l.b16 %v810
      %v1548 = vunpack.c.l.b16 %v811
      %v1549 = vunpack.c.l.b16 %v812
      %v1550 = vunpack.c.l.b16 %v813
      %v1551 = vunpack.c.l.b16 %v814
      %v1552 = vunpack.c.l.b16 %v815
      %v1553 = vunpack.c.l.b16 %v816
      %v1554 = vpack.c.b16 %v1523, %v1522
      %v1555 = vpack.c.b16 %v1525, %v1524
      %v1556 = vpack.c.b16 %v1527, %v1526
      %v1557 = vpack.c.b16 %v1529, %v1528
      %v1558 = vpack.c.b16 %v1531, %v1530
      %v1559 = vpack.c.b16 %v1533, %v1532
      %v1560 = vpack.c.b16 %v1535, %v1534
      %v1561 = vpack.c.b16 %v1537, %v1536
      %v1562 = vpack.c.b16 %v1539, %v1538
      %v1563 = vpack.c.b16 %v1541, %v1540
      %v1564 = vpack.c.b16 %v1543, %v1542
      %v1565 = vpack.c.b16 %v1545, %v1544
      %v1566 = vpack.c.b16 %v1547, %v1546
      %v1567 = vpack.c.b16 %v1549, %v1548
      %v1568 = vpack.c.b16 %v1551, %v1550
      %v1569 = vpack.c.b16 %v1553, %v1552
      %1570 = vrot.lane.b32.xlu0 %v1554, 16
      %v1571 = vpop.permute.xlu0 %1570
      %1572 = vrot.lane.b32.xlu0 %v1555, 16
      %v1573 = vpop.permute.xlu0 %1572
      %1574 = vrot.lane.b32.xlu0 %v1556, 16
      %v1575 = vpop.permute.xlu0 %1574
      %1576 = vrot.lane.b32.xlu0 %v1557, 16
      %v1577 = vpop.permute.xlu0 %1576
      %1578 = vrot.lane.b32.xlu0 %v1558, 16
      %v1579 = vpop.permute.xlu0 %1578
      %1580 = vrot.lane.b32.xlu0 %v1559, 16
      %v1581 = vpop.permute.xlu0 %1580
      %1582 = vrot.lane.b32.xlu0 %v1560, 16
      %v1583 = vpop.permute.xlu0 %1582
      %1584 = vrot.lane.b32.xlu0 %v1561, 16
      %v1585 = vpop.permute.xlu0 %1584
      %1586 = vrot.lane.b32.xlu0 %v1562, 16
      %v1587 = vpop.permute.xlu0 %1586
      %1588 = vrot.lane.b32.xlu0 %v1563, 16
      %v1589 = vpop.permute.xlu0 %1588
      %1590 = vrot.lane.b32.xlu0 %v1564, 16
      %v1591 = vpop.permute.xlu0 %1590
      %1592 = vrot.lane.b32.xlu0 %v1565, 16
      %v1593 = vpop.permute.xlu0 %1592
      %1594 = vrot.lane.b32.xlu0 %v1566, 16
      %v1595 = vpop.permute.xlu0 %1594
      %1596 = vrot.lane.b32.xlu0 %v1567, 16
      %v1597 = vpop.permute.xlu0 %1596
      %1598 = vrot.lane.b32.xlu0 %v1568, 16
      %v1599 = vpop.permute.xlu0 %1598
      %1600 = vrot.lane.b32.xlu0 %v1569, 16
      %v1601 = vpop.permute.xlu0 %1600
      %v1634 = vunpack.c.l.b16 %v849
      %v1635 = vunpack.c.l.b16 %v850
      %v1636 = vunpack.c.l.b16 %v851
      %v1637 = vunpack.c.l.b16 %v852
      %v1638 = vunpack.c.l.b16 %v853
      %v1639 = vunpack.c.l.b16 %v854
      %v1640 = vunpack.c.l.b16 %v855
      %v1641 = vunpack.c.l.b16 %v856
      %v1642 = vunpack.c.l.b16 %v857
      %v1643 = vunpack.c.l.b16 %v858
      %v1644 = vunpack.c.l.b16 %v859
      %v1645 = vunpack.c.l.b16 %v860
      %v1646 = vunpack.c.l.b16 %v861
      %v1647 = vunpack.c.l.b16 %v862
      %v1648 = vunpack.c.l.b16 %v863
      %v1649 = vunpack.c.l.b16 %v864
      %v1650 = vunpack.c.l.b16 %v865
      %v1651 = vunpack.c.l.b16 %v866
      %v1652 = vunpack.c.l.b16 %v867
      %v1653 = vunpack.c.l.b16 %v868
      %v1654 = vunpack.c.l.b16 %v869
      %v1655 = vunpack.c.l.b16 %v870
      %v1656 = vunpack.c.l.b16 %v871
      %v1657 = vunpack.c.l.b16 %v872
      %v1658 = vunpack.c.l.b16 %v873
      %v1659 = vunpack.c.l.b16 %v874
      %v1660 = vunpack.c.l.b16 %v875
      %v1661 = vunpack.c.l.b16 %v876
      %v1662 = vunpack.c.l.b16 %v877
      %v1663 = vunpack.c.l.b16 %v878
      %v1664 = vunpack.c.l.b16 %v879
      %v1665 = vunpack.c.l.b16 %v880
      %v1666 = vpack.c.b16 %v1635, %v1634
      %v1667 = vpack.c.b16 %v1637, %v1636
      %v1668 = vpack.c.b16 %v1639, %v1638
      %v1669 = vpack.c.b16 %v1641, %v1640
      %v1670 = vpack.c.b16 %v1643, %v1642
      %v1671 = vpack.c.b16 %v1645, %v1644
      %v1672 = vpack.c.b16 %v1647, %v1646
      %v1673 = vpack.c.b16 %v1649, %v1648
      %v1674 = vpack.c.b16 %v1651, %v1650
      %v1675 = vpack.c.b16 %v1653, %v1652
      %v1676 = vpack.c.b16 %v1655, %v1654
      %v1677 = vpack.c.b16 %v1657, %v1656
      %v1678 = vpack.c.b16 %v1659, %v1658
      %v1679 = vpack.c.b16 %v1661, %v1660
      %v1680 = vpack.c.b16 %v1663, %v1662
      %v1681 = vpack.c.b16 %v1665, %v1664
      %1682 = vrot.lane.b32.xlu0 %v1666, 20
      %v1683 = vpop.permute.xlu0 %1682
      %1684 = vrot.lane.b32.xlu0 %v1667, 20
      %v1685 = vpop.permute.xlu0 %1684
      %1686 = vrot.lane.b32.xlu0 %v1668, 20
      %v1687 = vpop.permute.xlu0 %1686
      %1688 = vrot.lane.b32.xlu0 %v1669, 20
      %v1689 = vpop.permute.xlu0 %1688
      %1690 = vrot.lane.b32.xlu0 %v1670, 20
      %v1691 = vpop.permute.xlu0 %1690
      %1692 = vrot.lane.b32.xlu0 %v1671, 20
      %v1693 = vpop.permute.xlu0 %1692
      %1694 = vrot.lane.b32.xlu0 %v1672, 20
      %v1695 = vpop.permute.xlu0 %1694
      %1696 = vrot.lane.b32.xlu0 %v1673, 20
      %v1697 = vpop.permute.xlu0 %1696
      %1698 = vrot.lane.b32.xlu0 %v1674, 20
      %v1699 = vpop.permute.xlu0 %1698
      %1700 = vrot.lane.b32.xlu0 %v1675, 20
      %v1701 = vpop.permute.xlu0 %1700
      %1702 = vrot.lane.b32.xlu0 %v1676, 20
      %v1703 = vpop.permute.xlu0 %1702
      %1704 = vrot.lane.b32.xlu0 %v1677, 20
      %v1705 = vpop.permute.xlu0 %1704
      %1706 = vrot.lane.b32.xlu0 %v1678, 20
      %v1707 = vpop.permute.xlu0 %1706
      %1708 = vrot.lane.b32.xlu0 %v1679, 20
      %v1709 = vpop.permute.xlu0 %1708
      %1710 = vrot.lane.b32.xlu0 %v1680, 20
      %v1711 = vpop.permute.xlu0 %1710
      %1712 = vrot.lane.b32.xlu0 %v1681, 20
      %v1713 = vpop.permute.xlu0 %1712
      %v1746 = vunpack.c.l.b16 %v914
      %v1747 = vunpack.c.l.b16 %v915
      %v1748 = vunpack.c.l.b16 %v916
      %v1749 = vunpack.c.l.b16 %v917
      %v1750 = vunpack.c.l.b16 %v918
      %v1751 = vunpack.c.l.b16 %v919
      %v1752 = vunpack.c.l.b16 %v920
      %v1753 = vunpack.c.l.b16 %v921
      %v1754 = vunpack.c.l.b16 %v922
      %v1755 = vunpack.c.l.b16 %v923
      %v1756 = vunpack.c.l.b16 %v924
      %v1757 = vunpack.c.l.b16 %v925
      %v1758 = vunpack.c.l.b16 %v926
      %v1759 = vunpack.c.l.b16 %v927
      %v1760 = vunpack.c.l.b16 %v928
      %v1761 = vunpack.c.l.b16 %v929
      %v1762 = vunpack.c.l.b16 %v930
      %v1763 = vunpack.c.l.b16 %v931
      %v1764 = vunpack.c.l.b16 %v932
      %v1765 = vunpack.c.l.b16 %v933
      %v1766 = vunpack.c.l.b16 %v934
      %v1767 = vunpack.c.l.b16 %v935
      %v1768 = vunpack.c.l.b16 %v936
      %v1769 = vunpack.c.l.b16 %v937
      %v1770 = vunpack.c.l.b16 %v938
      %v1771 = vunpack.c.l.b16 %v939
      %v1772 = vunpack.c.l.b16 %v940
      %v1773 = vunpack.c.l.b16 %v941
      %v1774 = vunpack.c.l.b16 %v942
      %v1775 = vunpack.c.l.b16 %v943
      %v1776 = vunpack.c.l.b16 %v944
      %v1777 = vunpack.c.l.b16 %v945
      %v1778 = vpack.c.b16 %v1747, %v1746
      %v1779 = vpack.c.b16 %v1749, %v1748
      %v1780 = vpack.c.b16 %v1751, %v1750
      %v1781 = vpack.c.b16 %v1753, %v1752
      %v1782 = vpack.c.b16 %v1755, %v1754
      %v1783 = vpack.c.b16 %v1757, %v1756
      %v1784 = vpack.c.b16 %v1759, %v1758
      %v1785 = vpack.c.b16 %v1761, %v1760
      %v1786 = vpack.c.b16 %v1763, %v1762
      %v1787 = vpack.c.b16 %v1765, %v1764
      %v1788 = vpack.c.b16 %v1767, %v1766
      %v1789 = vpack.c.b16 %v1769, %v1768
      %v1790 = vpack.c.b16 %v1771, %v1770
      %v1791 = vpack.c.b16 %v1773, %v1772
      %v1792 = vpack.c.b16 %v1775, %v1774
      %v1793 = vpack.c.b16 %v1777, %v1776
      %1794 = vrot.lane.b32.xlu0 %v1778, 24
      %v1795 = vpop.permute.xlu0 %1794
      %1796 = vrot.lane.b32.xlu0 %v1779, 24
      %v1797 = vpop.permute.xlu0 %1796
      %1798 = vrot.lane.b32.xlu0 %v1780, 24
      %v1799 = vpop.permute.xlu0 %1798
      %1800 = vrot.lane.b32.xlu0 %v1781, 24
      %v1801 = vpop.permute.xlu0 %1800
      %1802 = vrot.lane.b32.xlu0 %v1782, 24
      %v1803 = vpop.permute.xlu0 %1802
      %1804 = vrot.lane.b32.xlu0 %v1783, 24
      %v1805 = vpop.permute.xlu0 %1804
      %1806 = vrot.lane.b32.xlu0 %v1784, 24
      %v1807 = vpop.permute.xlu0 %1806
      %1808 = vrot.lane.b32.xlu0 %v1785, 24
      %v1809 = vpop.permute.xlu0 %1808
      %1810 = vrot.lane.b32.xlu0 %v1786, 24
      %v1811 = vpop.permute.xlu0 %1810
      %1812 = vrot.lane.b32.xlu0 %v1787, 24
      %v1813 = vpop.permute.xlu0 %1812
      %1814 = vrot.lane.b32.xlu0 %v1788, 24
      %v1815 = vpop.permute.xlu0 %1814
      %1816 = vrot.lane.b32.xlu0 %v1789, 24
      %v1817 = vpop.permute.xlu0 %1816
      %1818 = vrot.lane.b32.xlu0 %v1790, 24
      %v1819 = vpop.permute.xlu0 %1818
      %1820 = vrot.lane.b32.xlu0 %v1791, 24
      %v1821 = vpop.permute.xlu0 %1820
      %1822 = vrot.lane.b32.xlu0 %v1792, 24
      %v1823 = vpop.permute.xlu0 %1822
      %1824 = vrot.lane.b32.xlu0 %v1793, 24
      %v1825 = vpop.permute.xlu0 %1824
      %v1858 = vunpack.c.l.b16 %v978
      %v1859 = vunpack.c.l.b16 %v979
      %v1860 = vunpack.c.l.b16 %v980
      %v1861 = vunpack.c.l.b16 %v981
      %v1862 = vunpack.c.l.b16 %v982
      %v1863 = vunpack.c.l.b16 %v983
      %v1864 = vunpack.c.l.b16 %v984
      %v1865 = vunpack.c.l.b16 %v985
      %v1866 = vunpack.c.l.b16 %v986
      %v1867 = vunpack.c.l.b16 %v987
      %v1868 = vunpack.c.l.b16 %v988
      %v1869 = vunpack.c.l.b16 %v989
      %v1870 = vunpack.c.l.b16 %v990
      %v1871 = vunpack.c.l.b16 %v991
      %v1872 = vunpack.c.l.b16 %v992
      %v1873 = vunpack.c.l.b16 %v993
      %v1874 = vunpack.c.l.b16 %v994
      %v1875 = vunpack.c.l.b16 %v995
      %v1876 = vunpack.c.l.b16 %v996
      %v1877 = vunpack.c.l.b16 %v997
      %v1878 = vunpack.c.l.b16 %v998
      %v1879 = vunpack.c.l.b16 %v999
      %v1880 = vunpack.c.l.b16 %v1000
      %v1881 = vunpack.c.l.b16 %v1001
      %v1882 = vunpack.c.l.b16 %v1002
      %v1883 = vunpack.c.l.b16 %v1003
      %v1884 = vunpack.c.l.b16 %v1004
      %v1885 = vunpack.c.l.b16 %v1005
      %v1886 = vunpack.c.l.b16 %v1006
      %v1887 = vunpack.c.l.b16 %v1007
      %v1888 = vunpack.c.l.b16 %v1008
      %v1889 = vunpack.c.l.b16 %v1009
      %v1890 = vpack.c.b16 %v1859, %v1858
      %v1891 = vpack.c.b16 %v1861, %v1860
      %v1892 = vpack.c.b16 %v1863, %v1862
      %v1893 = vpack.c.b16 %v1865, %v1864
      %v1894 = vpack.c.b16 %v1867, %v1866
      %v1895 = vpack.c.b16 %v1869, %v1868
      %v1896 = vpack.c.b16 %v1871, %v1870
      %v1897 = vpack.c.b16 %v1873, %v1872
      %v1898 = vpack.c.b16 %v1875, %v1874
      %v1899 = vpack.c.b16 %v1877, %v1876
      %v1900 = vpack.c.b16 %v1879, %v1878
      %v1901 = vpack.c.b16 %v1881, %v1880
      %v1902 = vpack.c.b16 %v1883, %v1882
      %v1903 = vpack.c.b16 %v1885, %v1884
      %v1904 = vpack.c.b16 %v1887, %v1886
      %v1905 = vpack.c.b16 %v1889, %v1888
      %1906 = vrot.lane.b32.xlu0 %v1890, 28
      %v1907 = vpop.permute.xlu0 %1906
      %1908 = vrot.lane.b32.xlu0 %v1891, 28
      %v1909 = vpop.permute.xlu0 %1908
      %1910 = vrot.lane.b32.xlu0 %v1892, 28
      %v1911 = vpop.permute.xlu0 %1910
      %1912 = vrot.lane.b32.xlu0 %v1893, 28
      %v1913 = vpop.permute.xlu0 %1912
      %1914 = vrot.lane.b32.xlu0 %v1894, 28
      %v1915 = vpop.permute.xlu0 %1914
      %1916 = vrot.lane.b32.xlu0 %v1895, 28
      %v1917 = vpop.permute.xlu0 %1916
      %1918 = vrot.lane.b32.xlu0 %v1896, 28
      %v1919 = vpop.permute.xlu0 %1918
      %1920 = vrot.lane.b32.xlu0 %v1897, 28
      %v1921 = vpop.permute.xlu0 %1920
      %1922 = vrot.lane.b32.xlu0 %v1898, 28
      %v1923 = vpop.permute.xlu0 %1922
      %1924 = vrot.lane.b32.xlu0 %v1899, 28
      %v1925 = vpop.permute.xlu0 %1924
      %1926 = vrot.lane.b32.xlu0 %v1900, 28
      %v1927 = vpop.permute.xlu0 %1926
      %1928 = vrot.lane.b32.xlu0 %v1901, 28
      %v1929 = vpop.permute.xlu0 %1928
      %1930 = vrot.lane.b32.xlu0 %v1902, 28
      %v1931 = vpop.permute.xlu0 %1930
      %1932 = vrot.lane.b32.xlu0 %v1903, 28
      %v1933 = vpop.permute.xlu0 %1932
      %1934 = vrot.lane.b32.xlu0 %v1904, 28
      %v1935 = vpop.permute.xlu0 %1934
      %1936 = vrot.lane.b32.xlu0 %v1905, 28
      %v1937 = vpop.permute.xlu0 %1936
      %v1970 = vunpack.c.l.b16 %v1042
      %v1971 = vunpack.c.l.b16 %v1043
      %v1972 = vunpack.c.l.b16 %v1044
      %v1973 = vunpack.c.l.b16 %v1045
      %v1974 = vunpack.c.l.b16 %v1046
      %v1975 = vunpack.c.l.b16 %v1047
      %v1976 = vunpack.c.l.b16 %v1048
      %v1977 = vunpack.c.l.b16 %v1049
      %v1978 = vunpack.c.l.b16 %v1050
      %v1979 = vunpack.c.l.b16 %v1051
      %v1980 = vunpack.c.l.b16 %v1052
      %v1981 = vunpack.c.l.b16 %v1053
      %v1982 = vunpack.c.l.b16 %v1054
      %v1983 = vunpack.c.l.b16 %v1055
      %v1984 = vunpack.c.l.b16 %v1056
      %v1985 = vunpack.c.l.b16 %v1057
      %v1986 = vunpack.c.l.b16 %v1058
      %v1987 = vunpack.c.l.b16 %v1059
      %v1988 = vunpack.c.l.b16 %v1060
      %v1989 = vunpack.c.l.b16 %v1061
      %v1990 = vunpack.c.l.b16 %v1062
      %v1991 = vunpack.c.l.b16 %v1063
      %v1992 = vunpack.c.l.b16 %v1064
      %v1993 = vunpack.c.l.b16 %v1065
      %v1994 = vunpack.c.l.b16 %v1066
      %v1995 = vunpack.c.l.b16 %v1067
      %v1996 = vunpack.c.l.b16 %v1068
      %v1997 = vunpack.c.l.b16 %v1069
      %v1998 = vunpack.c.l.b16 %v1070
      %v1999 = vunpack.c.l.b16 %v1071
      %v2000 = vunpack.c.l.b16 %v1072
      %v2001 = vunpack.c.l.b16 %v1073
      %v2002 = vpack.c.b16 %v1971, %v1970
      %v2003 = vpack.c.b16 %v1973, %v1972
      %v2004 = vpack.c.b16 %v1975, %v1974
      %v2005 = vpack.c.b16 %v1977, %v1976
      %v2006 = vpack.c.b16 %v1979, %v1978
      %v2007 = vpack.c.b16 %v1981, %v1980
      %v2008 = vpack.c.b16 %v1983, %v1982
      %v2009 = vpack.c.b16 %v1985, %v1984
      %v2010 = vpack.c.b16 %v1987, %v1986
      %v2011 = vpack.c.b16 %v1989, %v1988
      %v2012 = vpack.c.b16 %v1991, %v1990
      %v2013 = vpack.c.b16 %v1993, %v1992
      %v2014 = vpack.c.b16 %v1995, %v1994
      %v2015 = vpack.c.b16 %v1997, %v1996
      %v2016 = vpack.c.b16 %v1999, %v1998
      %v2017 = vpack.c.b16 %v2001, %v2000
      %2018 = vrot.lane.b32.xlu0 %v2002, 32
      %v2019 = vpop.permute.xlu0 %2018
      %2020 = vrot.lane.b32.xlu0 %v2003, 32
      %v2021 = vpop.permute.xlu0 %2020
      %2022 = vrot.lane.b32.xlu0 %v2004, 32
      %v2023 = vpop.permute.xlu0 %2022
      %2024 = vrot.lane.b32.xlu0 %v2005, 32
      %v2025 = vpop.permute.xlu0 %2024
      %2026 = vrot.lane.b32.xlu0 %v2006, 32
      %v2027 = vpop.permute.xlu0 %2026
      %2028 = vrot.lane.b32.xlu0 %v2007, 32
      %v2029 = vpop.permute.xlu0 %2028
      %2030 = vrot.lane.b32.xlu0 %v2008, 32
      %v2031 = vpop.permute.xlu0 %2030
      %2032 = vrot.lane.b32.xlu0 %v2009, 32
      %v2033 = vpop.permute.xlu0 %2032
      %2034 = vrot.lane.b32.xlu0 %v2010, 32
      %v2035 = vpop.permute.xlu0 %2034
      %2036 = vrot.lane.b32.xlu0 %v2011, 32
      %v2037 = vpop.permute.xlu0 %2036
      %2038 = vrot.lane.b32.xlu0 %v2012, 32
      %v2039 = vpop.permute.xlu0 %2038
      %2040 = vrot.lane.b32.xlu0 %v2013, 32
      %v2041 = vpop.permute.xlu0 %2040
      %2042 = vrot.lane.b32.xlu0 %v2014, 32
      %v2043 = vpop.permute.xlu0 %2042
      %2044 = vrot.lane.b32.xlu0 %v2015, 32
      %v2045 = vpop.permute.xlu0 %2044
      %2046 = vrot.lane.b32.xlu0 %v2016, 32
      %v2047 = vpop.permute.xlu0 %2046
      %2048 = vrot.lane.b32.xlu0 %v2017, 32
      %v2049 = vpop.permute.xlu0 %2048
      %v2052 = vsel %vm386, %v1138, %v1235
      %v2055 = vsel %vm386, %v1139, %v1237
      %v2058 = vsel %vm386, %v1140, %v1239
      %v2061 = vsel %vm386, %v1141, %v1241
      %v2064 = vsel %vm386, %v1142, %v1243
      %v2067 = vsel %vm386, %v1143, %v1245
      %v2070 = vsel %vm386, %v1144, %v1247
      %v2073 = vsel %vm386, %v1145, %v1249
      %v2076 = vsel %vm386, %v1146, %v1251
      %v2079 = vsel %vm386, %v1147, %v1253
      %v2082 = vsel %vm386, %v1148, %v1255
      %v2085 = vsel %vm386, %v1149, %v1257
      %v2088 = vsel %vm386, %v1150, %v1259
      %v2091 = vsel %vm386, %v1151, %v1261
      %v2094 = vsel %vm386, %v1152, %v1263
      %v2097 = vsel %vm386, %v1153, %v1265
      %vm2098 = vcmask 64512
      %v2100 = vsel %vm2098, %v2052, %v1347
      %v2102 = vsel %vm2098, %v2055, %v1349
      %v2104 = vsel %vm2098, %v2058, %v1351
      %v2106 = vsel %vm2098, %v2061, %v1353
      %v2108 = vsel %vm2098, %v2064, %v1355
      %v2110 = vsel %vm2098, %v2067, %v1357
      %v2112 = vsel %vm2098, %v2070, %v1359
      %v2114 = vsel %vm2098, %v2073, %v1361
      %v2116 = vsel %vm2098, %v2076, %v1363
      %v2118 = vsel %vm2098, %v2079, %v1365
      %v2120 = vsel %vm2098, %v2082, %v1367
      %v2122 = vsel %vm2098, %v2085, %v1369
      %v2124 = vsel %vm2098, %v2088, %v1371
      %v2126 = vsel %vm2098, %v2091, %v1373
      %v2128 = vsel %vm2098, %v2094, %v1375
      %v2130 = vsel %vm2098, %v2097, %v1377
      %vm2131 = vcmask 97280
      %v2133 = vsel %vm2131, %v2100, %v1459
      %v2135 = vsel %vm2131, %v2102, %v1461
      %v2137 = vsel %vm2131, %v2104, %v1463
      %v2139 = vsel %vm2131, %v2106, %v1465
      %v2141 = vsel %vm2131, %v2108, %v1467
      %v2143 = vsel %vm2131, %v2110, %v1469
      %v2145 = vsel %vm2131, %v2112, %v1471
      %v2147 = vsel %vm2131, %v2114, %v1473
      %v2149 = vsel %vm2131, %v2116, %v1475
      %v2151 = vsel %vm2131, %v2118, %v1477
      %v2153 = vsel %vm2131, %v2120, %v1479
      %v2155 = vsel %vm2131, %v2122, %v1481
      %v2157 = vsel %vm2131, %v2124, %v1483
      %v2159 = vsel %vm2131, %v2126, %v1485
      %v2161 = vsel %vm2131, %v2128, %v1487
      %v2163 = vsel %vm2131, %v2130, %v1489
      %vm2164 = vcmask 130048
      %v2166 = vsel %vm2164, %v2133, %v1571
      %v2168 = vsel %vm2164, %v2135, %v1573
      %v2170 = vsel %vm2164, %v2137, %v1575
      %v2172 = vsel %vm2164, %v2139, %v1577
      %v2174 = vsel %vm2164, %v2141, %v1579
      %v2176 = vsel %vm2164, %v2143, %v1581
      %v2178 = vsel %vm2164, %v2145, %v1583
      %v2180 = vsel %vm2164, %v2147, %v1585
      %v2182 = vsel %vm2164, %v2149, %v1587
      %v2184 = vsel %vm2164, %v2151, %v1589
      %v2186 = vsel %vm2164, %v2153, %v1591
      %v2188 = vsel %vm2164, %v2155, %v1593
      %v2190 = vsel %vm2164, %v2157, %v1595
      %v2192 = vsel %vm2164, %v2159, %v1597
      %v2194 = vsel %vm2164, %v2161, %v1599
      %v2196 = vsel %vm2164, %v2163, %v1601
      %vm2197 = vcmask 162816
      %v2199 = vsel %vm2197, %v2166, %v1683
      %v2201 = vsel %vm2197, %v2168, %v1685
      %v2203 = vsel %vm2197, %v2170, %v1687
      %v2205 = vsel %vm2197, %v2172, %v1689
      %v2207 = vsel %vm2197, %v2174, %v1691
      %v2209 = vsel %vm2197, %v2176, %v1693
      %v2211 = vsel %vm2197, %v2178, %v1695
      %v2213 = vsel %vm2197, %v2180, %v1697
      %v2215 = vsel %vm2197, %v2182, %v1699
      %v2217 = vsel %vm2197, %v2184, %v1701
      %v2219 = vsel %vm2197, %v2186, %v1703
      %v2221 = vsel %vm2197, %v2188, %v1705
      %v2223 = vsel %vm2197, %v2190, %v1707
      %v2225 = vsel %vm2197, %v2192, %v1709
      %v2227 = vsel %vm2197, %v2194, %v1711
      %v2229 = vsel %vm2197, %v2196, %v1713
      %vm2230 = vcmask 195584
      %v2232 = vsel %vm2230, %v2199, %v1795
      %v2234 = vsel %vm2230, %v2201, %v1797
      %v2236 = vsel %vm2230, %v2203, %v1799
      %v2238 = vsel %vm2230, %v2205, %v1801
      %v2240 = vsel %vm2230, %v2207, %v1803
      %v2242 = vsel %vm2230, %v2209, %v1805
      %v2244 = vsel %vm2230, %v2211, %v1807
      %v2246 = vsel %vm2230, %v2213, %v1809
      %v2248 = vsel %vm2230, %v2215, %v1811
      %v2250 = vsel %vm2230, %v2217, %v1813
      %v2252 = vsel %vm2230, %v2219, %v1815
      %v2254 = vsel %vm2230, %v2221, %v1817
      %v2256 = vsel %vm2230, %v2223, %v1819
      %v2258 = vsel %vm2230, %v2225, %v1821
      %v2260 = vsel %vm2230, %v2227, %v1823
      %v2262 = vsel %vm2230, %v2229, %v1825
      %vm2263 = vcmask 228352
      %v2265 = vsel %vm2263, %v2232, %v1907
      %v2267 = vsel %vm2263, %v2234, %v1909
      %v2269 = vsel %vm2263, %v2236, %v1911
      %v2271 = vsel %vm2263, %v2238, %v1913
      %v2273 = vsel %vm2263, %v2240, %v1915
      %v2275 = vsel %vm2263, %v2242, %v1917
      %v2277 = vsel %vm2263, %v2244, %v1919
      %v2279 = vsel %vm2263, %v2246, %v1921
      %v2281 = vsel %vm2263, %v2248, %v1923
      %v2283 = vsel %vm2263, %v2250, %v1925
      %v2285 = vsel %vm2263, %v2252, %v1927
      %v2287 = vsel %vm2263, %v2254, %v1929
      %v2289 = vsel %vm2263, %v2256, %v1931
      %v2291 = vsel %vm2263, %v2258, %v1933
      %v2293 = vsel %vm2263, %v2260, %v1935
      %v2295 = vsel %vm2263, %v2262, %v1937
      %vm2296 = vcmask 261120
      %v2298 = vsel %vm2296, %v2265, %v2019
      %v2300 = vsel %vm2296, %v2267, %v2021
      %v2302 = vsel %vm2296, %v2269, %v2023
      %v2304 = vsel %vm2296, %v2271, %v2025
      %v2306 = vsel %vm2296, %v2273, %v2027
      %v2308 = vsel %vm2296, %v2275, %v2029
      %v2310 = vsel %vm2296, %v2277, %v2031
      %v2312 = vsel %vm2296, %v2279, %v2033
      %v2314 = vsel %vm2296, %v2281, %v2035
      %v2316 = vsel %vm2296, %v2283, %v2037
      %v2318 = vsel %vm2296, %v2285, %v2039
      %v2320 = vsel %vm2296, %v2287, %v2041
      %v2322 = vsel %vm2296, %v2289, %v2043
      %v2324 = vsel %vm2296, %v2291, %v2045
      %v2326 = vsel %vm2296, %v2293, %v2047
      %v2328 = vsel %vm2296, %v2295, %v2049
      %v2329 = vld [vmem:[%s1] sm:$0xff]
      %v2330 = vld [vmem:[%s1 + $0x8] sm:$0xff]
      %v2331 = vld [vmem:[%s1 + $0x10] sm:$0xff]
      %v2332 = vld [vmem:[%s1 + $0x18] sm:$0xff]
      %v2333 = vld [vmem:[%s1 + $0x20] sm:$0xf]
      %v2334 = vpack.c.bf16 %v2330, %v2329
      %v2335 = vpack.c.bf16 %v2332, %v2331
      %v2336 = vpack.c.bf16 %v2333, %v2333
      %v2337 = vld [vmem:[%s2] sm:$0x1]
      %v2339 = vperm.slane %v2337, 0
      %vm2341 = vcmask 293888
      %v2342 = vsel %vm2341, %v2298, 0
      %v2344 = vsel %vm2341, %v2300, 0
      %v2346 = vsel %vm2341, %v2302, 0
      %v2348 = vsel %vm2341, %v2304, 0
      %v2350 = vsel %vm2341, %v2306, 0
      %v2352 = vsel %vm2341, %v2308, 0
      %v2354 = vsel %vm2341, %v2310, 0
      %v2356 = vsel %vm2341, %v2312, 0
      %v2358 = vsel %vm2341, %v2314, 0
      %v2360 = vsel %vm2341, %v2316, 0
      %v2362 = vsel %vm2341, %v2318, 0
      %v2364 = vsel %vm2341, %v2320, 0
      %v2366 = vsel %vm2341, %v2322, 0
      %v2368 = vsel %vm2341, %v2324, 0
      %v2370 = vsel %vm2341, %v2326, 0
      %v2372 = vsel %vm2341, %v2328, 0
      %vm2374 = vcmask 1041408
      %v2376 = vsel %vm2374, %v2336, 0
      %2378 = vmatpush.bf16.msra.mxu0 0
      %2379 = vmatpush.bf16.msra.mxu0 0
      %2380 = vmatpush.bf16.msra.mxu0 0
      %2381 = vmatpush.bf16.msra.mxu0 0
      %2382 = vmatpush.bf16.msra.mxu0 0
      %2383 = vmatpush.bf16.msra.mxu0 %v2376
      %2384 = vmatpush.bf16.msra.mxu0 %v2335
      %2385 = vmatpush.bf16.msra.mxu0 %v2334
      %2386 = vmatmul.bf16.gmra.mxu0 %v2342
      %v2387 = vpop.f32.mrf.mxu0
      %v2388 = vadd.f32 %v2339, %v2387
      %v2389 = vpop.f32.mrf.mxu0
      %v2390 = vadd.f32 %v2339, %v2389
      %2391 = vmatmul.bf16.gmra.mxu0 %v2344
      %v2392 = vpop.f32.mrf.mxu0
      %v2393 = vadd.f32 %v2339, %v2392
      %v2394 = vpop.f32.mrf.mxu0
      %v2395 = vadd.f32 %v2339, %v2394
      %2396 = vmatmul.bf16.gmra.mxu0 %v2346
      %v2397 = vpop.f32.mrf.mxu0
      %v2398 = vadd.f32 %v2339, %v2397
      %v2399 = vpop.f32.mrf.mxu0
      %v2400 = vadd.f32 %v2339, %v2399
      %2401 = vmatmul.bf16.gmra.mxu0 %v2348
      %v2402 = vpop.f32.mrf.mxu0
      %v2403 = vadd.f32 %v2339, %v2402
      %v2404 = vpop.f32.mrf.mxu0
      %v2405 = vadd.f32 %v2339, %v2404
      %2406 = vmatmul.bf16.gmra.mxu0 %v2350
      %v2407 = vpop.f32.mrf.mxu0
      %v2408 = vadd.f32 %v2339, %v2407
      %v2409 = vpop.f32.mrf.mxu0
      %v2410 = vadd.f32 %v2339, %v2409
      %2411 = vmatmul.bf16.gmra.mxu0 %v2352
      %v2412 = vpop.f32.mrf.mxu0
      %v2413 = vadd.f32 %v2339, %v2412
      %v2414 = vpop.f32.mrf.mxu0
      %v2415 = vadd.f32 %v2339, %v2414
      %2416 = vmatmul.bf16.gmra.mxu0 %v2354
      %v2417 = vpop.f32.mrf.mxu0
      %v2418 = vadd.f32 %v2339, %v2417
      %v2419 = vpop.f32.mrf.mxu0
      %v2420 = vadd.f32 %v2339, %v2419
      %2421 = vmatmul.bf16.gmra.mxu0 %v2356
      %v2422 = vpop.f32.mrf.mxu0
      %v2423 = vadd.f32 %v2339, %v2422
      %v2424 = vpop.f32.mrf.mxu0
      %v2425 = vadd.f32 %v2339, %v2424
      %2426 = vmatmul.bf16.gmra.mxu0 %v2358
      %v2427 = vpop.f32.mrf.mxu0
      %v2428 = vadd.f32 %v2339, %v2427
      %v2429 = vpop.f32.mrf.mxu0
      %v2430 = vadd.f32 %v2339, %v2429
      %2431 = vmatmul.bf16.gmra.mxu0 %v2360
      %v2432 = vpop.f32.mrf.mxu0
      %v2433 = vadd.f32 %v2339, %v2432
      %v2434 = vpop.f32.mrf.mxu0
      %v2435 = vadd.f32 %v2339, %v2434
      %2436 = vmatmul.bf16.gmra.mxu0 %v2362
      %v2437 = vpop.f32.mrf.mxu0
      %v2438 = vadd.f32 %v2339, %v2437
      %v2439 = vpop.f32.mrf.mxu0
      %v2440 = vadd.f32 %v2339, %v2439
      %2441 = vmatmul.bf16.gmra.mxu0 %v2364
      %v2442 = vpop.f32.mrf.mxu0
      %v2443 = vadd.f32 %v2339, %v2442
      %v2444 = vpop.f32.mrf.mxu0
      %v2445 = vadd.f32 %v2339, %v2444
      %2446 = vmatmul.bf16.gmra.mxu0 %v2366
      %v2447 = vpop.f32.mrf.mxu0
      %v2448 = vadd.f32 %v2339, %v2447
      %v2449 = vpop.f32.mrf.mxu0
      %v2450 = vadd.f32 %v2339, %v2449
      %2451 = vmatmul.bf16.gmra.mxu0 %v2368
      %v2452 = vpop.f32.mrf.mxu0
      %v2453 = vadd.f32 %v2339, %v2452
      %v2454 = vpop.f32.mrf.mxu0
      %v2455 = vadd.f32 %v2339, %v2454
      %2456 = vmatmul.bf16.gmra.mxu0 %v2370
      %v2457 = vpop.f32.mrf.mxu0
      %v2458 = vadd.f32 %v2339, %v2457
      %v2459 = vpop.f32.mrf.mxu0
      %v2460 = vadd.f32 %v2339, %v2459
      %2461 = vmatmul.bf16.gmra.mxu0 %v2372
      %v2462 = vpop.f32.mrf.mxu0
      %v2463 = vadd.f32 %v2339, %v2462
      %v2464 = vpop.f32.mrf.mxu0
      %v2465 = vadd.f32 %v2339, %v2464
      %2466 = vdwg.mxu0
      %2467 = vst.msk [vmem:[#allocation3] sm:$0xff] %vm2098, -inf
      %2468 = vst.msk [vmem:[#allocation3 + $0x8] sm:$0xff] %vm2098, -inf
      %vm2469 = vcmask 57344
      %2470 = vst.msk [vmem:[#allocation3 + $0x10] sm:$0x1] %vm2469, -inf
      %2471 = vst.msk [vmem:[#allocation3] sm:$0x1] %vm2469, -inf
      %2472 = vst.msk [vmem:[#allocation3 + $0x18] sm:$0x1] %vm2469, -inf
      %2473 = vst.msk [vmem:[#allocation3 + $0x30] sm:$0x1] %vm2469, -inf
      %2474 = vst.msk [vmem:[#allocation3 + $0x48] sm:$0x1] %vm2469, -inf
      %2475 = vst.msk [vmem:[#allocation3 + $0x60] sm:$0x1] %vm2469, -inf
      %2476 = vst.msk [vmem:[#allocation3 + $0x78] sm:$0x1] %vm2469, -inf
      %2477 = vst.msk [vmem:[#allocation3 + $0x90] sm:$0x1] %vm2469, -inf
      %2478 = vst.msk [vmem:[#allocation3 + $0xa8] sm:$0x1] %vm2469, -inf
      %2479 = vst.msk [vmem:[#allocation3 + $0xc0] sm:$0x1] %vm2469, -inf
      %2480 = vst.msk [vmem:[#allocation3 + $0xd8] sm:$0x1] %vm2469, -inf
      %2481 = vst.msk [vmem:[#allocation3 + $0xf0] sm:$0x1] %vm2469, -inf
      %2482 = vst.msk [vmem:[#allocation3 + $0x108] sm:$0x1] %vm2469, -inf
      %2483 = vst.msk [vmem:[#allocation3 + $0x120] sm:$0x1] %vm2469, -inf
      %2484 = vst.msk [vmem:[#allocation3 + $0x138] sm:$0x1] %vm2469, -inf
      %2485 = vst.msk [vmem:[#allocation3 + $0x150] sm:$0x1] %vm2469, -inf
      %2486 = vst.msk [vmem:[#allocation3 + $0x168] sm:$0x1] %vm2469, -inf
      %2487 = vst.msk [vmem:[#allocation3 + $0x180] sm:$0x1] %vm2469, -inf
      %s2488 = scalar_lea.vmem [#allocation3], 24
      %2489 = vst.msk [vmem:[%s2488 + $0x1] sm:$0xff] %vm2098, %v2388
      %2490 = vst.msk [vmem:[%s2488 + $0x9] sm:$0xff] %vm2098, %v2390
      %2491 = vst.msk [vmem:[%s2488 + $0x19] sm:$0xff] %vm2098, %v2393
      %2492 = vst.msk [vmem:[%s2488 + $0x21] sm:$0xff] %vm2098, %v2395
      %2493 = vst.msk [vmem:[%s2488 + $0x31] sm:$0xff] %vm2098, %v2398
      %2494 = vst.msk [vmem:[%s2488 + $0x39] sm:$0xff] %vm2098, %v2400
      %2495 = vst.msk [vmem:[%s2488 + $0x49] sm:$0xff] %vm2098, %v2403
      %2496 = vst.msk [vmem:[%s2488 + $0x51] sm:$0xff] %vm2098, %v2405
      %2497 = vst.msk [vmem:[%s2488 + $0x61] sm:$0xff] %vm2098, %v2408
      %2498 = vst.msk [vmem:[%s2488 + $0x69] sm:$0xff] %vm2098, %v2410
      %2499 = vst.msk [vmem:[%s2488 + $0x79] sm:$0xff] %vm2098, %v2413
      %2500 = vst.msk [vmem:[%s2488 + $0x81] sm:$0xff] %vm2098, %v2415
      %2501 = vst.msk [vmem:[%s2488 + $0x91] sm:$0xff] %vm2098, %v2418
      %2502 = vst.msk [vmem:[%s2488 + $0x99] sm:$0xff] %vm2098, %v2420
      %2503 = vst.msk [vmem:[%s2488 + $0xa9] sm:$0xff] %vm2098, %v2423
      %2504 = vst.msk [vmem:[%s2488 + $0xb1] sm:$0xff] %vm2098, %v2425
      %2505 = vst.msk [vmem:[%s2488 + $0xc1] sm:$0xff] %vm2098, %v2428
      %2506 = vst.msk [vmem:[%s2488 + $0xc9] sm:$0xff] %vm2098, %v2430
      %2507 = vst.msk [vmem:[%s2488 + $0xd9] sm:$0xff] %vm2098, %v2433
      %2508 = vst.msk [vmem:[%s2488 + $0xe1] sm:$0xff] %vm2098, %v2435
      %2509 = vst.msk [vmem:[%s2488 + $0xf1] sm:$0xff] %vm2098, %v2438
      %2510 = vst.msk [vmem:[%s2488 + $0xf9] sm:$0xff] %vm2098, %v2440
      %2511 = vst.msk [vmem:[%s2488 + $0x109] sm:$0xff] %vm2098, %v2443
      %2512 = vst.msk [vmem:[%s2488 + $0x111] sm:$0xff] %vm2098, %v2445
      %2513 = vst.msk [vmem:[%s2488 + $0x121] sm:$0xff] %vm2098, %v2448
      %2514 = vst.msk [vmem:[%s2488 + $0x129] sm:$0xff] %vm2098, %v2450
      %2515 = vst.msk [vmem:[%s2488 + $0x139] sm:$0xff] %vm2098, %v2453
      %2516 = vst.msk [vmem:[%s2488 + $0x141] sm:$0xff] %vm2098, %v2455
      %2517 = vst.msk [vmem:[%s2488 + $0x151] sm:$0xff] %vm2098, %v2458
      %2518 = vst.msk [vmem:[%s2488 + $0x159] sm:$0xff] %vm2098, %v2460
      %2519 = vst.msk [vmem:[%s2488 + $0x169] sm:$0xff] %vm2098, %v2463
      %2520 = vst.msk [vmem:[%s2488 + $0x171] sm:$0xff] %vm2098, %v2465
      %v2521 = vld [vmem:[#allocation3] sm:$0xff]
      %v2522 = vld [vmem:[#allocation3 + $0x8] sm:$0xff]
      %v2523 = vld [vmem:[#allocation3 + $0x10] sm:$0x1]
      %v2524 = vld [vmem:[#allocation3 + $0x18] sm:$0xff]
      %v2525 = vld [vmem:[#allocation3 + $0x20] sm:$0xff]
      %v2526 = vld [vmem:[#allocation3 + $0x28] sm:$0x1]
      %v2527 = vld [vmem:[#allocation3 + $0x30] sm:$0xff]
      %v2528 = vld [vmem:[#allocation3 + $0x38] sm:$0xff]
      %v2529 = vld [vmem:[#allocation3 + $0x40] sm:$0x1]
      %v2530 = vld [vmem:[#allocation3 + $0x48] sm:$0xff]
      %v2531 = vld [vmem:[#allocation3 + $0x50] sm:$0xff]
      %v2532 = vld [vmem:[#allocation3 + $0x58] sm:$0x1]
      %v2533 = vld [vmem:[#allocation3 + $0x60] sm:$0xff]
      %v2534 = vld [vmem:[#allocation3 + $0x68] sm:$0xff]
      %v2535 = vld [vmem:[#allocation3 + $0x70] sm:$0x1]
      %v2536 = vld [vmem:[#allocation3 + $0x78] sm:$0xff]
      %v2537 = vld [vmem:[#allocation3 + $0x80] sm:$0xff]
      %v2538 = vld [vmem:[#allocation3 + $0x88] sm:$0x1]
      %v2539 = vld [vmem:[#allocation3 + $0x90] sm:$0xff]
      %v2540 = vld [vmem:[#allocation3 + $0x98] sm:$0xff]
      %v2541 = vld [vmem:[#allocation3 + $0xa0] sm:$0x1]
      %v2542 = vld [vmem:[#allocation3 + $0xa8] sm:$0xff]
      %v2543 = vld [vmem:[#allocation3 + $0xb0] sm:$0xff]
      %v2544 = vld [vmem:[#allocation3 + $0xb8] sm:$0x1]
      %v2545 = vld [vmem:[#allocation3 + $0xc0] sm:$0xff]
      %v2546 = vld [vmem:[#allocation3 + $0xc8] sm:$0xff]
      %v2547 = vld [vmem:[#allocation3 + $0xd0] sm:$0x1]
      %v2548 = vld [vmem:[#allocation3 + $0xd8] sm:$0xff]
      %v2549 = vld [vmem:[#allocation3 + $0xe0] sm:$0xff]
      %v2550 = vld [vmem:[#allocation3 + $0xe8] sm:$0x1]
      %v2551 = vld [vmem:[#allocation3 + $0xf0] sm:$0xff]
      %v2552 = vld [vmem:[#allocation3 + $0xf8] sm:$0xff]
      %v2553 = vld [vmem:[#allocation3 + $0x100] sm:$0x1]
      %v2554 = vld [vmem:[#allocation3 + $0x108] sm:$0xff]
      %v2555 = vld [vmem:[#allocation3 + $0x110] sm:$0xff]
      %v2556 = vld [vmem:[#allocation3 + $0x118] sm:$0x1]
      %v2557 = vld [vmem:[#allocation3 + $0x120] sm:$0xff]
      %v2558 = vld [vmem:[#allocation3 + $0x128] sm:$0xff]
      %v2559 = vld [vmem:[#allocation3 + $0x130] sm:$0x1]
      %v2560 = vld [vmem:[#allocation3 + $0x138] sm:$0xff]
      %v2561 = vld [vmem:[#allocation3 + $0x140] sm:$0xff]
      %v2562 = vld [vmem:[#allocation3 + $0x148] sm:$0x1]
      %v2563 = vld [vmem:[#allocation3 + $0x150] sm:$0xff]
      %v2564 = vld [vmem:[#allocation3 + $0x158] sm:$0xff]
      %v2565 = vld [vmem:[#allocation3 + $0x160] sm:$0x1]
      %v2566 = vld [vmem:[%s2488] sm:$0xff]
      %v2567 = vld [vmem:[%s2488 + $0x8] sm:$0xff]
      %v2568 = vld [vmem:[%s2488 + $0x10] sm:$0x1]
      %v2569 = vld [vmem:[%s2488 + $0x18] sm:$0xff]
      %v2570 = vld [vmem:[%s2488 + $0x20] sm:$0xff]
      %v2571 = vld [vmem:[%s2488 + $0x28] sm:$0x1]
      %v2572 = vld [vmem:[%s2488 + $0x30] sm:$0xff]
      %v2573 = vld [vmem:[%s2488 + $0x38] sm:$0xff]
      %v2574 = vld [vmem:[%s2488 + $0x40] sm:$0x1]
      %v2575 = vld [vmem:[%s2488 + $0x48] sm:$0xff]
      %v2576 = vld [vmem:[%s2488 + $0x50] sm:$0xff]
      %v2577 = vld [vmem:[%s2488 + $0x58] sm:$0x1]
      %v2578 = vld [vmem:[%s2488 + $0x60] sm:$0xff]
      %v2579 = vld [vmem:[%s2488 + $0x68] sm:$0xff]
      %v2580 = vld [vmem:[%s2488 + $0x70] sm:$0x1]
      %v2581 = vld [vmem:[%s2488 + $0x78] sm:$0xff]
      %v2582 = vld [vmem:[%s2488 + $0x80] sm:$0xff]
      %v2583 = vld [vmem:[%s2488 + $0x88] sm:$0x1]
      %v2584 = vld [vmem:[%s2488 + $0x90] sm:$0xff]
      %v2585 = vld [vmem:[%s2488 + $0x98] sm:$0xff]
      %v2586 = vld [vmem:[%s2488 + $0xa0] sm:$0x1]
      %v2587 = vld [vmem:[%s2488 + $0xa8] sm:$0xff]
      %v2588 = vld [vmem:[%s2488 + $0xb0] sm:$0xff]
      %v2589 = vld [vmem:[%s2488 + $0xb8] sm:$0x1]
      %v2590 = vld [vmem:[%s2488 + $0xc0] sm:$0xff]
      %v2591 = vld [vmem:[%s2488 + $0xc8] sm:$0xff]
      %v2592 = vld [vmem:[%s2488 + $0xd0] sm:$0x1]
      %v2593 = vld [vmem:[%s2488 + $0xd8] sm:$0xff]
      %v2594 = vld [vmem:[%s2488 + $0xe0] sm:$0xff]
      %v2595 = vld [vmem:[%s2488 + $0xe8] sm:$0x1]
      %v2596 = vld [vmem:[%s2488 + $0xf0] sm:$0xff]
      %v2597 = vld [vmem:[%s2488 + $0xf8] sm:$0xff]
      %v2598 = vld [vmem:[%s2488 + $0x100] sm:$0x1]
      %v2599 = vld [vmem:[%s2488 + $0x108] sm:$0xff]
      %v2600 = vld [vmem:[%s2488 + $0x110] sm:$0xff]
      %v2601 = vld [vmem:[%s2488 + $0x118] sm:$0x1]
      %v2602 = vld [vmem:[%s2488 + $0x120] sm:$0xff]
      %v2603 = vld [vmem:[%s2488 + $0x128] sm:$0xff]
      %v2604 = vld [vmem:[%s2488 + $0x130] sm:$0x1]
      %v2605 = vld [vmem:[%s2488 + $0x138] sm:$0xff]
      %v2606 = vld [vmem:[%s2488 + $0x140] sm:$0xff]
      %v2607 = vld [vmem:[%s2488 + $0x148] sm:$0x1]
      %v2608 = vld [vmem:[%s2488 + $0x150] sm:$0xff]
      %v2609 = vld [vmem:[%s2488 + $0x158] sm:$0xff]
      %v2610 = vld [vmem:[%s2488 + $0x160] sm:$0x1]
      %v2611 = vmax.f32 %v2521, %v2566
      %v2612 = vmax.f32 %v2522, %v2567
      %v2613 = vmax.f32 %v2523, %v2568
      %v2614 = vmax.f32 %v2524, %v2569
      %v2615 = vmax.f32 %v2525, %v2570
      %v2616 = vmax.f32 %v2526, %v2571
      %v2617 = vmax.f32 %v2527, %v2572
      %v2618 = vmax.f32 %v2528, %v2573
      %v2619 = vmax.f32 %v2529, %v2574
      %v2620 = vmax.f32 %v2530, %v2575
      %v2621 = vmax.f32 %v2531, %v2576
      %v2622 = vmax.f32 %v2532, %v2577
      %v2623 = vmax.f32 %v2533, %v2578
      %v2624 = vmax.f32 %v2534, %v2579
      %v2625 = vmax.f32 %v2535, %v2580
      %v2626 = vmax.f32 %v2536, %v2581
      %v2627 = vmax.f32 %v2537, %v2582
      %v2628 = vmax.f32 %v2538, %v2583
      %v2629 = vmax.f32 %v2539, %v2584
      %v2630 = vmax.f32 %v2540, %v2585
      %v2631 = vmax.f32 %v2541, %v2586
      %v2632 = vmax.f32 %v2542, %v2587
      %v2633 = vmax.f32 %v2543, %v2588
      %v2634 = vmax.f32 %v2544, %v2589
      %v2635 = vmax.f32 %v2545, %v2590
      %v2636 = vmax.f32 %v2546, %v2591
      %v2637 = vmax.f32 %v2547, %v2592
      %v2638 = vmax.f32 %v2548, %v2593
      %v2639 = vmax.f32 %v2549, %v2594
      %v2640 = vmax.f32 %v2550, %v2595
      %v2641 = vmax.f32 %v2551, %v2596
      %v2642 = vmax.f32 %v2552, %v2597
      %v2643 = vmax.f32 %v2553, %v2598
      %v2644 = vmax.f32 %v2554, %v2599
      %v2645 = vmax.f32 %v2555, %v2600
      %v2646 = vmax.f32 %v2556, %v2601
      %v2647 = vmax.f32 %v2557, %v2602
      %v2648 = vmax.f32 %v2558, %v2603
      %v2649 = vmax.f32 %v2559, %v2604
      %v2650 = vmax.f32 %v2560, %v2605
      %v2651 = vmax.f32 %v2561, %v2606
      %v2652 = vmax.f32 %v2562, %v2607
      %v2653 = vmax.f32 %v2563, %v2608
      %v2654 = vmax.f32 %v2564, %v2609
      %v2655 = vmax.f32 %v2565, %v2610
      %s2656 = scalar_lea.vmem [#allocation3], 48
      %v2657 = vld [vmem:[%s2656] sm:$0xff]
      %v2658 = vld [vmem:[%s2656 + $0x8] sm:$0xff]
      %v2659 = vld [vmem:[%s2656 + $0x10] sm:$0x1]
      %v2660 = vld [vmem:[%s2656 + $0x18] sm:$0xff]
      %v2661 = vld [vmem:[%s2656 + $0x20] sm:$0xff]
      %v2662 = vld [vmem:[%s2656 + $0x28] sm:$0x1]
      %v2663 = vld [vmem:[%s2656 + $0x30] sm:$0xff]
      %v2664 = vld [vmem:[%s2656 + $0x38] sm:$0xff]
      %v2665 = vld [vmem:[%s2656 + $0x40] sm:$0x1]
      %v2666 = vld [vmem:[%s2656 + $0x48] sm:$0xff]
      %v2667 = vld [vmem:[%s2656 + $0x50] sm:$0xff]
      %v2668 = vld [vmem:[%s2656 + $0x58] sm:$0x1]
      %v2669 = vld [vmem:[%s2656 + $0x60] sm:$0xff]
      %v2670 = vld [vmem:[%s2656 + $0x68] sm:$0xff]
      %v2671 = vld [vmem:[%s2656 + $0x70] sm:$0x1]
      %v2672 = vld [vmem:[%s2656 + $0x78] sm:$0xff]
      %v2673 = vld [vmem:[%s2656 + $0x80] sm:$0xff]
      %v2674 = vld [vmem:[%s2656 + $0x88] sm:$0x1]
      %v2675 = vld [vmem:[%s2656 + $0x90] sm:$0xff]
      %v2676 = vld [vmem:[%s2656 + $0x98] sm:$0xff]
      %v2677 = vld [vmem:[%s2656 + $0xa0] sm:$0x1]
      %v2678 = vld [vmem:[%s2656 + $0xa8] sm:$0xff]
      %v2679 = vld [vmem:[%s2656 + $0xb0] sm:$0xff]
      %v2680 = vld [vmem:[%s2656 + $0xb8] sm:$0x1]
      %v2681 = vld [vmem:[%s2656 + $0xc0] sm:$0xff]
      %v2682 = vld [vmem:[%s2656 + $0xc8] sm:$0xff]
      %v2683 = vld [vmem:[%s2656 + $0xd0] sm:$0x1]
      %v2684 = vld [vmem:[%s2656 + $0xd8] sm:$0xff]
      %v2685 = vld [vmem:[%s2656 + $0xe0] sm:$0xff]
      %v2686 = vld [vmem:[%s2656 + $0xe8] sm:$0x1]
      %v2687 = vld [vmem:[%s2656 + $0xf0] sm:$0xff]
      %v2688 = vld [vmem:[%s2656 + $0xf8] sm:$0xff]
      %v2689 = vld [vmem:[%s2656 + $0x100] sm:$0x1]
      %v2690 = vld [vmem:[%s2656 + $0x108] sm:$0xff]
      %v2691 = vld [vmem:[%s2656 + $0x110] sm:$0xff]
      %v2692 = vld [vmem:[%s2656 + $0x118] sm:$0x1]
      %v2693 = vld [vmem:[%s2656 + $0x120] sm:$0xff]
      %v2694 = vld [vmem:[%s2656 + $0x128] sm:$0xff]
      %v2695 = vld [vmem:[%s2656 + $0x130] sm:$0x1]
      %v2696 = vld [vmem:[%s2656 + $0x138] sm:$0xff]
      %v2697 = vld [vmem:[%s2656 + $0x140] sm:$0xff]
      %v2698 = vld [vmem:[%s2656 + $0x148] sm:$0x1]
      %v2699 = vld [vmem:[%s2656 + $0x150] sm:$0xff]
      %v2700 = vld [vmem:[%s2656 + $0x158] sm:$0xff]
      %v2701 = vld [vmem:[%s2656 + $0x160] sm:$0x1]
      %v2702 = vmax.f32 %v2611, %v2657
      %v2703 = vmax.f32 %v2612, %v2658
      %v2704 = vmax.f32 %v2613, %v2659
      %v2705 = vmax.f32 %v2614, %v2660
      %v2706 = vmax.f32 %v2615, %v2661
      %v2707 = vmax.f32 %v2616, %v2662
      %v2708 = vmax.f32 %v2617, %v2663
      %v2709 = vmax.f32 %v2618, %v2664
      %v2710 = vmax.f32 %v2619, %v2665
      %v2711 = vmax.f32 %v2620, %v2666
      %v2712 = vmax.f32 %v2621, %v2667
      %v2713 = vmax.f32 %v2622, %v2668
      %v2714 = vmax.f32 %v2623, %v2669
      %v2715 = vmax.f32 %v2624, %v2670
      %v2716 = vmax.f32 %v2625, %v2671
      %v2717 = vmax.f32 %v2626, %v2672
      %v2718 = vmax.f32 %v2627, %v2673
      %v2719 = vmax.f32 %v2628, %v2674
      %v2720 = vmax.f32 %v2629, %v2675
      %v2721 = vmax.f32 %v2630, %v2676
      %v2722 = vmax.f32 %v2631, %v2677
      %v2723 = vmax.f32 %v2632, %v2678
      %v2724 = vmax.f32 %v2633, %v2679
      %v2725 = vmax.f32 %v2634, %v2680
      %v2726 = vmax.f32 %v2635, %v2681
      %v2727 = vmax.f32 %v2636, %v2682
      %v2728 = vmax.f32 %v2637, %v2683
      %v2729 = vmax.f32 %v2638, %v2684
      %v2730 = vmax.f32 %v2639, %v2685
      %v2731 = vmax.f32 %v2640, %v2686
      %v2732 = vmax.f32 %v2641, %v2687
      %v2733 = vmax.f32 %v2642, %v2688
      %v2734 = vmax.f32 %v2643, %v2689
      %v2735 = vmax.f32 %v2644, %v2690
      %v2736 = vmax.f32 %v2645, %v2691
      %v2737 = vmax.f32 %v2646, %v2692
      %v2738 = vmax.f32 %v2647, %v2693
      %v2739 = vmax.f32 %v2648, %v2694
      %v2740 = vmax.f32 %v2649, %v2695
      %v2741 = vmax.f32 %v2650, %v2696
      %v2742 = vmax.f32 %v2651, %v2697
      %v2743 = vmax.f32 %v2652, %v2698
      %v2744 = vmax.f32 %v2653, %v2699
      %v2745 = vmax.f32 %v2654, %v2700
      %v2746 = vmax.f32 %v2655, %v2701
      %vm2777 = vcmask 1046528
      %v2778 = vrot.slane %v2702, 1
      %v2779 = vrot.slane %v2703, 1
      %v2780 = vsel %vm2777, %v2778, %v2779
      %v2781 = vrot.slane %v2705, 1
      %v2782 = vrot.slane %v2706, 1
      %v2783 = vsel %vm2777, %v2781, %v2782
      %v2784 = vrot.slane %v2708, 1
      %v2785 = vrot.slane %v2709, 1
      %v2786 = vsel %vm2777, %v2784, %v2785
      %v2787 = vrot.slane %v2711, 1
      %v2788 = vrot.slane %v2712, 1
      %v2789 = vsel %vm2777, %v2787, %v2788
      %v2790 = vrot.slane %v2714, 1
      %v2791 = vrot.slane %v2715, 1
      %v2792 = vsel %vm2777, %v2790, %v2791
      %v2793 = vrot.slane %v2717, 1
      %v2794 = vrot.slane %v2718, 1
      %v2795 = vsel %vm2777, %v2793, %v2794
      %v2796 = vrot.slane %v2720, 1
      %v2797 = vrot.slane %v2721, 1
      %v2798 = vsel %vm2777, %v2796, %v2797
      %v2799 = vrot.slane %v2723, 1
      %v2800 = vrot.slane %v2724, 1
      %v2801 = vsel %vm2777, %v2799, %v2800
      %v2802 = vrot.slane %v2726, 1
      %v2803 = vrot.slane %v2727, 1
      %v2804 = vsel %vm2777, %v2802, %v2803
      %v2805 = vrot.slane %v2729, 1
      %v2806 = vrot.slane %v2730, 1
      %v2807 = vsel %vm2777, %v2805, %v2806
      %v2808 = vrot.slane %v2732, 1
      %v2809 = vrot.slane %v2733, 1
      %v2810 = vsel %vm2777, %v2808, %v2809
      %v2811 = vrot.slane %v2735, 1
      %v2812 = vrot.slane %v2736, 1
      %v2813 = vsel %vm2777, %v2811, %v2812
      %v2814 = vrot.slane %v2738, 1
      %v2815 = vrot.slane %v2739, 1
      %v2816 = vsel %vm2777, %v2814, %v2815
      %v2817 = vrot.slane %v2741, 1
      %v2818 = vrot.slane %v2742, 1
      %v2819 = vsel %vm2777, %v2817, %v2818
      %v2820 = vrot.slane %v2744, 1
      %v2821 = vrot.slane %v2745, 1
      %v2822 = vsel %vm2777, %v2820, %v2821
      %v2853 = vmax.f32 %v2702, %v2780
      %v2854 = vmax.f32 %v2703, %v2779
      %v2855 = vmax.f32 %v2705, %v2783
      %v2856 = vmax.f32 %v2706, %v2782
      %v2857 = vmax.f32 %v2708, %v2786
      %v2858 = vmax.f32 %v2709, %v2785
      %v2859 = vmax.f32 %v2711, %v2789
      %v2860 = vmax.f32 %v2712, %v2788
      %v2861 = vmax.f32 %v2714, %v2792
      %v2862 = vmax.f32 %v2715, %v2791
      %v2863 = vmax.f32 %v2717, %v2795
      %v2864 = vmax.f32 %v2718, %v2794
      %v2865 = vmax.f32 %v2720, %v2798
      %v2866 = vmax.f32 %v2721, %v2797
      %v2867 = vmax.f32 %v2723, %v2801
      %v2868 = vmax.f32 %v2724, %v2800
      %v2869 = vmax.f32 %v2726, %v2804
      %v2870 = vmax.f32 %v2727, %v2803
      %v2871 = vmax.f32 %v2729, %v2807
      %v2872 = vmax.f32 %v2730, %v2806
      %v2873 = vmax.f32 %v2732, %v2810
      %v2874 = vmax.f32 %v2733, %v2809
      %v2875 = vmax.f32 %v2735, %v2813
      %v2876 = vmax.f32 %v2736, %v2812
      %v2877 = vmax.f32 %v2738, %v2816
      %v2878 = vmax.f32 %v2739, %v2815
      %v2879 = vmax.f32 %v2741, %v2819
      %v2880 = vmax.f32 %v2742, %v2818
      %v2881 = vmax.f32 %v2744, %v2822
      %v2882 = vmax.f32 %v2745, %v2821
      %vm2898 = vcmask 1045504
      %v2899 = vrot.slane %v2702, 2
      %v2900 = vrot.slane %v2703, 2
      %v2901 = vsel %vm2898, %v2899, %v2900
      %v2902 = vrot.slane %v2704, 2
      %v2903 = vsel %vm2898, %v2900, %v2902
      %v2904 = vrot.slane %v2705, 2
      %v2905 = vrot.slane %v2706, 2
      %v2906 = vsel %vm2898, %v2904, %v2905
      %v2907 = vrot.slane %v2707, 2
      %v2908 = vsel %vm2898, %v2905, %v2907
      %v2909 = vrot.slane %v2708, 2
      %v2910 = vrot.slane %v2709, 2
      %v2911 = vsel %vm2898, %v2909, %v2910
      %v2912 = vrot.slane %v2710, 2
      %v2913 = vsel %vm2898, %v2910, %v2912
      %v2914 = vrot.slane %v2711, 2
      %v2915 = vrot.slane %v2712, 2
      %v2916 = vsel %vm2898, %v2914, %v2915
      %v2917 = vrot.slane %v2713, 2
      %v2918 = vsel %vm2898, %v2915, %v2917
      %v2919 = vrot.slane %v2714, 2
      %v2920 = vrot.slane %v2715, 2
      %v2921 = vsel %vm2898, %v2919, %v2920
      %v2922 = vrot.slane %v2716, 2
      %v2923 = vsel %vm2898, %v2920, %v2922
      %v2924 = vrot.slane %v2717, 2
      %v2925 = vrot.slane %v2718, 2
      %v2926 = vsel %vm2898, %v2924, %v2925
      %v2927 = vrot.slane %v2719, 2
      %v2928 = vsel %vm2898, %v2925, %v2927
      %v2929 = vrot.slane %v2720, 2
      %v2930 = vrot.slane %v2721, 2
      %v2931 = vsel %vm2898, %v2929, %v2930
      %v2932 = vrot.slane %v2722, 2
      %v2933 = vsel %vm2898, %v2930, %v2932
      %v2934 = vrot.slane %v2723, 2
      %v2935 = vrot.slane %v2724, 2
      %v2936 = vsel %vm2898, %v2934, %v2935
      %v2937 = vrot.slane %v2725, 2
      %v2938 = vsel %vm2898, %v2935, %v2937
      %v2939 = vrot.slane %v2726, 2
      %v2940 = vrot.slane %v2727, 2
      %v2941 = vsel %vm2898, %v2939, %v2940
      %v2942 = vrot.slane %v2728, 2
      %v2943 = vsel %vm2898, %v2940, %v2942
      %v2944 = vrot.slane %v2729, 2
      %v2945 = vrot.slane %v2730, 2
      %v2946 = vsel %vm2898, %v2944, %v2945
      %v2947 = vrot.slane %v2731, 2
      %v2948 = vsel %vm2898, %v2945, %v2947
      %v2949 = vrot.slane %v2732, 2
      %v2950 = vrot.slane %v2733, 2
      %v2951 = vsel %vm2898, %v2949, %v2950
      %v2952 = vrot.slane %v2734, 2
      %v2953 = vsel %vm2898, %v2950, %v2952
      %v2954 = vrot.slane %v2735, 2
      %v2955 = vrot.slane %v2736, 2
      %v2956 = vsel %vm2898, %v2954, %v2955
      %v2957 = vrot.slane %v2737, 2
      %v2958 = vsel %vm2898, %v2955, %v2957
      %v2959 = vrot.slane %v2738, 2
      %v2960 = vrot.slane %v2739, 2
      %v2961 = vsel %vm2898, %v2959, %v2960
      %v2962 = vrot.slane %v2740, 2
      %v2963 = vsel %vm2898, %v2960, %v2962
      %v2964 = vrot.slane %v2741, 2
      %v2965 = vrot.slane %v2742, 2
      %v2966 = vsel %vm2898, %v2964, %v2965
      %v2967 = vrot.slane %v2743, 2
      %v2968 = vsel %vm2898, %v2965, %v2967
      %v2969 = vrot.slane %v2744, 2
      %v2970 = vrot.slane %v2745, 2
      %v2971 = vsel %vm2898, %v2969, %v2970
      %v2972 = vrot.slane %v2746, 2
      %v2973 = vsel %vm2898, %v2970, %v2972
      %v3004 = vmax.f32 %v2853, %v2901
      %v3005 = vmax.f32 %v2854, %v2903
      %v3006 = vmax.f32 %v2855, %v2906
      %v3007 = vmax.f32 %v2856, %v2908
      %v3008 = vmax.f32 %v2857, %v2911
      %v3009 = vmax.f32 %v2858, %v2913
      %v3010 = vmax.f32 %v2859, %v2916
      %v3011 = vmax.f32 %v2860, %v2918
      %v3012 = vmax.f32 %v2861, %v2921
      %v3013 = vmax.f32 %v2862, %v2923
      %v3014 = vmax.f32 %v2863, %v2926
      %v3015 = vmax.f32 %v2864, %v2928
      %v3016 = vmax.f32 %v2865, %v2931
      %v3017 = vmax.f32 %v2866, %v2933
      %v3018 = vmax.f32 %v2867, %v2936
      %v3019 = vmax.f32 %v2868, %v2938
      %v3020 = vmax.f32 %v2869, %v2941
      %v3021 = vmax.f32 %v2870, %v2943
      %v3022 = vmax.f32 %v2871, %v2946
      %v3023 = vmax.f32 %v2872, %v2948
      %v3024 = vmax.f32 %v2873, %v2951
      %v3025 = vmax.f32 %v2874, %v2953
      %v3026 = vmax.f32 %v2875, %v2956
      %v3027 = vmax.f32 %v2876, %v2958
      %v3028 = vmax.f32 %v2877, %v2961
      %v3029 = vmax.f32 %v2878, %v2963
      %v3030 = vmax.f32 %v2879, %v2966
      %v3031 = vmax.f32 %v2880, %v2968
      %v3032 = vmax.f32 %v2881, %v2971
      %v3033 = vmax.f32 %v2882, %v2973
      %3034 = vst.msk [vmem:[#allocation3] sm:$0xff] %vm2098, %v3004
      %vm3035 = vcmask 63488
      %3036 = vst.msk [vmem:[#allocation3 + $0x8] sm:$0x7f] %vm3035, %v3005
      %3037 = vst.msk [vmem:[#allocation3 + $0x18] sm:$0xff] %vm2098, %v3006
      %3038 = vst.msk [vmem:[#allocation3 + $0x20] sm:$0x7f] %vm3035, %v3007
      %3039 = vst.msk [vmem:[#allocation3 + $0x30] sm:$0xff] %vm2098, %v3008
      %3040 = vst.msk [vmem:[#allocation3 + $0x38] sm:$0x7f] %vm3035, %v3009
      %3041 = vst.msk [vmem:[#allocation3 + $0x48] sm:$0xff] %vm2098, %v3010
      %3042 = vst.msk [vmem:[#allocation3 + $0x50] sm:$0x7f] %vm3035, %v3011
      %3043 = vst.msk [vmem:[#allocation3 + $0x60] sm:$0xff] %vm2098, %v3012
      %3044 = vst.msk [vmem:[#allocation3 + $0x68] sm:$0x7f] %vm3035, %v3013
      %3045 = vst.msk [vmem:[#allocation3 + $0x78] sm:$0xff] %vm2098, %v3014
      %3046 = vst.msk [vmem:[#allocation3 + $0x80] sm:$0x7f] %vm3035, %v3015
      %3047 = vst.msk [vmem:[#allocation3 + $0x90] sm:$0xff] %vm2098, %v3016
      %3048 = vst.msk [vmem:[#allocation3 + $0x98] sm:$0x7f] %vm3035, %v3017
      %3049 = vst.msk [vmem:[#allocation3 + $0xa8] sm:$0xff] %vm2098, %v3018
      %3050 = vst.msk [vmem:[#allocation3 + $0xb0] sm:$0x7f] %vm3035, %v3019
      %3051 = vst.msk [vmem:[#allocation3 + $0xc0] sm:$0xff] %vm2098, %v3020
      %3052 = vst.msk [vmem:[#allocation3 + $0xc8] sm:$0x7f] %vm3035, %v3021
      %3053 = vst.msk [vmem:[#allocation3 + $0xd8] sm:$0xff] %vm2098, %v3022
      %3054 = vst.msk [vmem:[#allocation3 + $0xe0] sm:$0x7f] %vm3035, %v3023
      %3055 = vst.msk [vmem:[#allocation3 + $0xf0] sm:$0xff] %vm2098, %v3024
      %3056 = vst.msk [vmem:[#allocation3 + $0xf8] sm:$0x7f] %vm3035, %v3025
      %3057 = vst.msk [vmem:[#allocation3 + $0x108] sm:$0xff] %vm2098, %v3026
      %3058 = vst.msk [vmem:[#allocation3 + $0x110] sm:$0x7f] %vm3035, %v3027
      %3059 = vst.msk [vmem:[#allocation3 + $0x120] sm:$0xff] %vm2098, %v3028
      %3060 = vst.msk [vmem:[#allocation3 + $0x128] sm:$0x7f] %vm3035, %v3029
      %3061 = vst.msk [vmem:[#allocation3 + $0x138] sm:$0xff] %vm2098, %v3030
      %3062 = vst.msk [vmem:[#allocation3 + $0x140] sm:$0x7f] %vm3035, %v3031
      %3063 = vst.msk [vmem:[#allocation3 + $0x150] sm:$0xff] %vm2098, %v3032
      %3064 = vst.msk [vmem:[#allocation3 + $0x158] sm:$0x7f] %vm3035, %v3033
      %v3065 = vld [vmem:[#allocation3] ss:$2 sm:$0xff]
      %s3066 = scalar_lea.vmem [#allocation3], 48
      %v3067 = vld [vmem:[%s3066] ss:$2 sm:$0xff]
      %s3068 = scalar_lea.vmem [#allocation3], 96
      %v3069 = vld [vmem:[%s3068] ss:$2 sm:$0xff]
      %s3070 = scalar_lea.vmem [#allocation3], 144
      %v3071 = vld [vmem:[%s3070] ss:$2 sm:$0xff]
      %s3072 = scalar_lea.vmem [#allocation3], 192
      %v3073 = vld [vmem:[%s3072] ss:$2 sm:$0xff]
      %s3074 = scalar_lea.vmem [#allocation3], 240
      %v3075 = vld [vmem:[%s3074] ss:$2 sm:$0xff]
      %s3076 = scalar_lea.vmem [#allocation3], 288
      %v3077 = vld [vmem:[%s3076] ss:$2 sm:$0xff]
      %s3078 = scalar_lea.vmem [#allocation3], 336
      %v3079 = vld [vmem:[%s3078] ss:$2 sm:$0xff]
      %3080 = vst.msk [vmem:[#allocation5] sm:$0xff] %vm2098, %v3065
      %3081 = vst.msk [vmem:[#allocation5 + $0x8] sm:$0xff] %vm2098, %v3067
      %3082 = vst.msk [vmem:[#allocation5 + $0x10] sm:$0xff] %vm2098, %v3069
      %3083 = vst.msk [vmem:[#allocation5 + $0x18] sm:$0xff] %vm2098, %v3071
      %3084 = vst.msk [vmem:[#allocation5 + $0x20] sm:$0xff] %vm2098, %v3073
      %3085 = vst.msk [vmem:[#allocation5 + $0x28] sm:$0xff] %vm2098, %v3075
      %3086 = vst.msk [vmem:[#allocation5 + $0x30] sm:$0xff] %vm2098, %v3077
      %3087 = vst.msk [vmem:[#allocation5 + $0x38] sm:$0xff] %vm2098, %v3079
      %3088 = vst.msk [vmem:[#allocation4] sm:$0xff] %vm2098, 0.0
      %vm3089 = vcmask 58368
      %3090 = vst.msk [vmem:[#allocation4 + $0x8] sm:$0x3] %vm3089, 0.0
      %s3091 = scalar_lea.vmem [#allocation4], 144
      %3092 = vst.msk [vmem:[%s3091] sm:$0xff] %vm2098, 0.0
      %3093 = vst.msk [vmem:[%s3091 + $0x8] sm:$0x3] %vm3089, 0.0
      %3094 = vst.msk [vmem:[#allocation4] sm:$0x1] %vm2469, 0.0
      %3095 = vst.msk [vmem:[#allocation4 + $0x10] sm:$0x1] %vm2469, 0.0
      %3096 = vst.msk [vmem:[#allocation4 + $0x20] sm:$0x1] %vm2469, 0.0
      %3097 = vst.msk [vmem:[#allocation4 + $0x30] sm:$0x1] %vm2469, 0.0
      %3098 = vst.msk [vmem:[#allocation4 + $0x40] sm:$0x1] %vm2469, 0.0
      %3099 = vst.msk [vmem:[#allocation4 + $0x50] sm:$0x1] %vm2469, 0.0
      %3100 = vst.msk [vmem:[#allocation4 + $0x60] sm:$0x1] %vm2469, 0.0
      %3101 = vst.msk [vmem:[#allocation4 + $0x70] sm:$0x1] %vm2469, 0.0
      %3102 = vst.msk [vmem:[#allocation4 + $0x80] sm:$0x1] %vm2469, 0.0
      %3103 = vst.msk [vmem:[#allocation4 + $0x90] sm:$0x1] %vm2469, 0.0
      %3104 = vst.msk [vmem:[#allocation4 + $0x9] sm:$0x1] %vm2469, 0.0
      %3105 = vst.msk [vmem:[#allocation4 + $0x19] sm:$0x1] %vm2469, 0.0
      %3106 = vst.msk [vmem:[#allocation4 + $0x29] sm:$0x1] %vm2469, 0.0
      %3107 = vst.msk [vmem:[#allocation4 + $0x39] sm:$0x1] %vm2469, 0.0
      %3108 = vst.msk [vmem:[#allocation4 + $0x49] sm:$0x1] %vm2469, 0.0
      %3109 = vst.msk [vmem:[#allocation4 + $0x59] sm:$0x1] %vm2469, 0.0
      %3110 = vst.msk [vmem:[#allocation4 + $0x69] sm:$0x1] %vm2469, 0.0
      %3111 = vst.msk [vmem:[#allocation4 + $0x79] sm:$0x1] %vm2469, 0.0
      %3112 = vst.msk [vmem:[#allocation4 + $0x89] sm:$0x1] %vm2469, 0.0
      %3113 = vst.msk [vmem:[#allocation4 + $0x99] sm:$0x1] %vm2469, 0.0
      %v3114 = vld [vmem:[#allocation5] sm:$0xff]
      %v3115 = vld [vmem:[#allocation5 + $0x8] sm:$0xff]
      %v3116 = vld [vmem:[#allocation5 + $0x10] sm:$0xff]
      %v3117 = vld [vmem:[#allocation5 + $0x18] sm:$0xff]
      %v3118 = vld [vmem:[#allocation5 + $0x20] sm:$0xff]
      %v3119 = vld [vmem:[#allocation5 + $0x28] sm:$0xff]
      %v3120 = vld [vmem:[#allocation5 + $0x30] sm:$0xff]
      %v3121 = vld [vmem:[#allocation5 + $0x38] sm:$0xff]
      %v3122 = vmax.f32 %v3114, 0.0
      %v3123 = vmax.f32 %v3115, 0.0
      %v3124 = vmax.f32 %v3116, 0.0
      %v3125 = vmax.f32 %v3117, 0.0
      %v3126 = vmax.f32 %v3118, 0.0
      %v3127 = vmax.f32 %v3119, 0.0
      %v3128 = vmax.f32 %v3120, 0.0
      %v3129 = vmax.f32 %v3121, 0.0
      %s3130 = scalar_lea.vmem [#allocation4], 16
      %3131 = vst.msk [vmem:[%s3130 + $0x1] sm:$0xff] %vm2098, %v3122
      %3132 = vst.msk [vmem:[%s3130 + $0x11] sm:$0xff] %vm2098, %v3123
      %3133 = vst.msk [vmem:[%s3130 + $0x21] sm:$0xff] %vm2098, %v3124
      %3134 = vst.msk [vmem:[%s3130 + $0x31] sm:$0xff] %vm2098, %v3125
      %3135 = vst.msk [vmem:[%s3130 + $0x41] sm:$0xff] %vm2098, %v3126
      %3136 = vst.msk [vmem:[%s3130 + $0x51] sm:$0xff] %vm2098, %v3127
      %3137 = vst.msk [vmem:[%s3130 + $0x61] sm:$0xff] %vm2098, %v3128
      %3138 = vst.msk [vmem:[%s3130 + $0x71] sm:$0xff] %vm2098, %v3129
      %v3139 = vld [vmem:[#allocation4] sm:$0xff]
      %v3140 = vld [vmem:[#allocation4 + $0x10] sm:$0xff]
      %v3141 = vld [vmem:[#allocation4 + $0x20] sm:$0xff]
      %v3142 = vld [vmem:[#allocation4 + $0x30] sm:$0xff]
      %v3143 = vld [vmem:[#allocation4 + $0x40] sm:$0xff]
      %v3144 = vld [vmem:[#allocation4 + $0x50] sm:$0xff]
      %v3145 = vld [vmem:[#allocation4 + $0x60] sm:$0xff]
      %v3146 = vld [vmem:[#allocation4 + $0x70] sm:$0xff]
      %v3147 = vpack.c.bf16 %v3139, %v3139
      %v3148 = vpack.c.bf16 %v3140, %v3140
      %v3149 = vpack.c.bf16 %v3141, %v3141
      %v3150 = vpack.c.bf16 %v3142, %v3142
      %v3151 = vpack.c.bf16 %v3143, %v3143
      %v3152 = vpack.c.bf16 %v3144, %v3144
      %v3153 = vpack.c.bf16 %v3145, %v3145
      %v3154 = vpack.c.bf16 %v3146, %v3146
      %v3155 = vld [vmem:[#allocation4 + $0x1] sm:$0xff]
      %v3156 = vld [vmem:[#allocation4 + $0x11] sm:$0xff]
      %v3157 = vld [vmem:[#allocation4 + $0x21] sm:$0xff]
      %v3158 = vld [vmem:[#allocation4 + $0x31] sm:$0xff]
      %v3159 = vld [vmem:[#allocation4 + $0x41] sm:$0xff]
      %v3160 = vld [vmem:[#allocation4 + $0x51] sm:$0xff]
      %v3161 = vld [vmem:[#allocation4 + $0x61] sm:$0xff]
      %v3162 = vld [vmem:[#allocation4 + $0x71] sm:$0xff]
      %v3163 = vpack.c.bf16 %v3155, %v3155
      %v3164 = vpack.c.bf16 %v3156, %v3156
      %v3165 = vpack.c.bf16 %v3157, %v3157
      %v3166 = vpack.c.bf16 %v3158, %v3158
      %v3167 = vpack.c.bf16 %v3159, %v3159
      %v3168 = vpack.c.bf16 %v3160, %v3160
      %v3169 = vpack.c.bf16 %v3161, %v3161
      %v3170 = vpack.c.bf16 %v3162, %v3162
      %v3171 = vld [vmem:[#allocation4 + $0x2] sm:$0xff]
      %v3172 = vld [vmem:[#allocation4 + $0x12] sm:$0xff]
      %v3173 = vld [vmem:[#allocation4 + $0x22] sm:$0xff]
      %v3174 = vld [vmem:[#allocation4 + $0x32] sm:$0xff]
      %v3175 = vld [vmem:[#allocation4 + $0x42] sm:$0xff]
      %v3176 = vld [vmem:[#allocation4 + $0x52] sm:$0xff]
      %v3177 = vld [vmem:[#allocation4 + $0x62] sm:$0xff]
      %v3178 = vld [vmem:[#allocation4 + $0x72] sm:$0xff]
      %v3179 = vpack.c.bf16 %v3171, %v3171
      %v3180 = vpack.c.bf16 %v3172, %v3172
      %v3181 = vpack.c.bf16 %v3173, %v3173
      %v3182 = vpack.c.bf16 %v3174, %v3174
      %v3183 = vpack.c.bf16 %v3175, %v3175
      %v3184 = vpack.c.bf16 %v3176, %v3176
      %v3185 = vpack.c.bf16 %v3177, %v3177
      %v3186 = vpack.c.bf16 %v3178, %v3178
      %v3187 = vld [vmem:[%s3130] sm:$0xff]
      %v3188 = vld [vmem:[%s3130 + $0x10] sm:$0xff]
      %v3189 = vld [vmem:[%s3130 + $0x20] sm:$0xff]
      %v3190 = vld [vmem:[%s3130 + $0x30] sm:$0xff]
      %v3191 = vld [vmem:[%s3130 + $0x40] sm:$0xff]
      %v3192 = vld [vmem:[%s3130 + $0x50] sm:$0xff]
      %v3193 = vld [vmem:[%s3130 + $0x60] sm:$0xff]
      %v3194 = vld [vmem:[%s3130 + $0x70] sm:$0xff]
      %v3195 = vpack.c.bf16 %v3187, %v3187
      %v3196 = vpack.c.bf16 %v3188, %v3188
      %v3197 = vpack.c.bf16 %v3189, %v3189
      %v3198 = vpack.c.bf16 %v3190, %v3190
      %v3199 = vpack.c.bf16 %v3191, %v3191
      %v3200 = vpack.c.bf16 %v3192, %v3192
      %v3201 = vpack.c.bf16 %v3193, %v3193
      %v3202 = vpack.c.bf16 %v3194, %v3194
      %v3203 = vld [vmem:[%s3130 + $0x1] sm:$0xff]
      %v3204 = vld [vmem:[%s3130 + $0x11] sm:$0xff]
      %v3205 = vld [vmem:[%s3130 + $0x21] sm:$0xff]
      %v3206 = vld [vmem:[%s3130 + $0x31] sm:$0xff]
      %v3207 = vld [vmem:[%s3130 + $0x41] sm:$0xff]
      %v3208 = vld [vmem:[%s3130 + $0x51] sm:$0xff]
      %v3209 = vld [vmem:[%s3130 + $0x61] sm:$0xff]
      %v3210 = vld [vmem:[%s3130 + $0x71] sm:$0xff]
      %v3211 = vpack.c.bf16 %v3203, %v3203
      %v3212 = vpack.c.bf16 %v3204, %v3204
      %v3213 = vpack.c.bf16 %v3205, %v3205
      %v3214 = vpack.c.bf16 %v3206, %v3206
      %v3215 = vpack.c.bf16 %v3207, %v3207
      %v3216 = vpack.c.bf16 %v3208, %v3208
      %v3217 = vpack.c.bf16 %v3209, %v3209
      %v3218 = vpack.c.bf16 %v3210, %v3210
      %v3219 = vld [vmem:[%s3130 + $0x2] sm:$0xff]
      %v3220 = vld [vmem:[%s3130 + $0x12] sm:$0xff]
      %v3221 = vld [vmem:[%s3130 + $0x22] sm:$0xff]
      %v3222 = vld [vmem:[%s3130 + $0x32] sm:$0xff]
      %v3223 = vld [vmem:[%s3130 + $0x42] sm:$0xff]
      %v3224 = vld [vmem:[%s3130 + $0x52] sm:$0xff]
      %v3225 = vld [vmem:[%s3130 + $0x62] sm:$0xff]
      %v3226 = vld [vmem:[%s3130 + $0x72] sm:$0xff]
      %v3227 = vpack.c.bf16 %v3219, %v3219
      %v3228 = vpack.c.bf16 %v3220, %v3220
      %v3229 = vpack.c.bf16 %v3221, %v3221
      %v3230 = vpack.c.bf16 %v3222, %v3222
      %v3231 = vpack.c.bf16 %v3223, %v3223
      %v3232 = vpack.c.bf16 %v3224, %v3224
      %v3233 = vpack.c.bf16 %v3225, %v3225
      %v3234 = vpack.c.bf16 %v3226, %v3226
      %s3235 = scalar_lea.vmem [#allocation4], 32
      %v3236 = vld [vmem:[%s3235] sm:$0xff]
      %v3237 = vld [vmem:[%s3235 + $0x10] sm:$0xff]
      %v3238 = vld [vmem:[%s3235 + $0x20] sm:$0xff]
      %v3239 = vld [vmem:[%s3235 + $0x30] sm:$0xff]
      %v3240 = vld [vmem:[%s3235 + $0x40] sm:$0xff]
      %v3241 = vld [vmem:[%s3235 + $0x50] sm:$0xff]
      %v3242 = vld [vmem:[%s3235 + $0x60] sm:$0xff]
      %v3243 = vld [vmem:[%s3235 + $0x70] sm:$0xff]
      %v3244 = vpack.c.bf16 %v3236, %v3236
      %v3245 = vpack.c.bf16 %v3237, %v3237
      %v3246 = vpack.c.bf16 %v3238, %v3238
      %v3247 = vpack.c.bf16 %v3239, %v3239
      %v3248 = vpack.c.bf16 %v3240, %v3240
      %v3249 = vpack.c.bf16 %v3241, %v3241
      %v3250 = vpack.c.bf16 %v3242, %v3242
      %v3251 = vpack.c.bf16 %v3243, %v3243
      %v3252 = vld [vmem:[%s3235 + $0x1] sm:$0xff]
      %v3253 = vld [vmem:[%s3235 + $0x11] sm:$0xff]
      %v3254 = vld [vmem:[%s3235 + $0x21] sm:$0xff]
      %v3255 = vld [vmem:[%s3235 + $0x31] sm:$0xff]
      %v3256 = vld [vmem:[%s3235 + $0x41] sm:$0xff]
      %v3257 = vld [vmem:[%s3235 + $0x51] sm:$0xff]
      %v3258 = vld [vmem:[%s3235 + $0x61] sm:$0xff]
      %v3259 = vld [vmem:[%s3235 + $0x71] sm:$0xff]
      %v3260 = vpack.c.bf16 %v3252, %v3252
      %v3261 = vpack.c.bf16 %v3253, %v3253
      %v3262 = vpack.c.bf16 %v3254, %v3254
      %v3263 = vpack.c.bf16 %v3255, %v3255
      %v3264 = vpack.c.bf16 %v3256, %v3256
      %v3265 = vpack.c.bf16 %v3257, %v3257
      %v3266 = vpack.c.bf16 %v3258, %v3258
      %v3267 = vpack.c.bf16 %v3259, %v3259
      %v3268 = vld [vmem:[%s3235 + $0x2] sm:$0xff]
      %v3269 = vld [vmem:[%s3235 + $0x12] sm:$0xff]
      %v3270 = vld [vmem:[%s3235 + $0x22] sm:$0xff]
      %v3271 = vld [vmem:[%s3235 + $0x32] sm:$0xff]
      %v3272 = vld [vmem:[%s3235 + $0x42] sm:$0xff]
      %v3273 = vld [vmem:[%s3235 + $0x52] sm:$0xff]
      %v3274 = vld [vmem:[%s3235 + $0x62] sm:$0xff]
      %v3275 = vld [vmem:[%s3235 + $0x72] sm:$0xff]
      %v3276 = vpack.c.bf16 %v3268, %v3268
      %v3277 = vpack.c.bf16 %v3269, %v3269
      %v3278 = vpack.c.bf16 %v3270, %v3270
      %v3279 = vpack.c.bf16 %v3271, %v3271
      %v3280 = vpack.c.bf16 %v3272, %v3272
      %v3281 = vpack.c.bf16 %v3273, %v3273
      %v3282 = vpack.c.bf16 %v3274, %v3274
      %v3283 = vpack.c.bf16 %v3275, %v3275
      %v3292 = vunpack.c.l.b16 %v3147
      %v3293 = vunpack.c.l.b16 %v3148
      %v3294 = vunpack.c.l.b16 %v3149
      %v3295 = vunpack.c.l.b16 %v3150
      %v3296 = vunpack.c.l.b16 %v3151
      %v3297 = vunpack.c.l.b16 %v3152
      %v3298 = vunpack.c.l.b16 %v3153
      %v3299 = vunpack.c.l.b16 %v3154
      %v3300 = vpack.c.b16 %v3293, %v3292
      %v3301 = vpack.c.b16 %v3295, %v3294
      %v3302 = vpack.c.b16 %v3297, %v3296
      %v3303 = vpack.c.b16 %v3299, %v3298
      %v3312 = vunpack.c.l.b16 %v3163
      %v3313 = vunpack.c.l.b16 %v3164
      %v3314 = vunpack.c.l.b16 %v3165
      %v3315 = vunpack.c.l.b16 %v3166
      %v3316 = vunpack.c.l.b16 %v3167
      %v3317 = vunpack.c.l.b16 %v3168
      %v3318 = vunpack.c.l.b16 %v3169
      %v3319 = vunpack.c.l.b16 %v3170
      %v3320 = vpack.c.b16 %v3313, %v3312
      %v3321 = vpack.c.b16 %v3315, %v3314
      %v3322 = vpack.c.b16 %v3317, %v3316
      %v3323 = vpack.c.b16 %v3319, %v3318
      %3324 = vrot.lane.b32.xlu0 %v3320, 8
      %v3325 = vpop.permute.xlu0 %3324
      %3326 = vrot.lane.b32.xlu0 %v3321, 8
      %v3327 = vpop.permute.xlu0 %3326
      %3328 = vrot.lane.b32.xlu0 %v3322, 8
      %v3329 = vpop.permute.xlu0 %3328
      %3330 = vrot.lane.b32.xlu0 %v3323, 8
      %v3331 = vpop.permute.xlu0 %3330
      %v3340 = vunpack.c.l.b16 %v3179
      %v3341 = vunpack.c.l.b16 %v3180
      %v3342 = vunpack.c.l.b16 %v3181
      %v3343 = vunpack.c.l.b16 %v3182
      %v3344 = vunpack.c.l.b16 %v3183
      %v3345 = vunpack.c.l.b16 %v3184
      %v3346 = vunpack.c.l.b16 %v3185
      %v3347 = vunpack.c.l.b16 %v3186
      %v3348 = vpack.c.b16 %v3341, %v3340
      %v3349 = vpack.c.b16 %v3343, %v3342
      %v3350 = vpack.c.b16 %v3345, %v3344
      %v3351 = vpack.c.b16 %v3347, %v3346
      %3352 = vrot.lane.b32.xlu0 %v3348, 16
      %v3353 = vpop.permute.xlu0 %3352
      %3354 = vrot.lane.b32.xlu0 %v3349, 16
      %v3355 = vpop.permute.xlu0 %3354
      %3356 = vrot.lane.b32.xlu0 %v3350, 16
      %v3357 = vpop.permute.xlu0 %3356
      %3358 = vrot.lane.b32.xlu0 %v3351, 16
      %v3359 = vpop.permute.xlu0 %3358
      %v3368 = vunpack.c.l.b16 %v3195
      %v3369 = vunpack.c.l.b16 %v3196
      %v3370 = vunpack.c.l.b16 %v3197
      %v3371 = vunpack.c.l.b16 %v3198
      %v3372 = vunpack.c.l.b16 %v3199
      %v3373 = vunpack.c.l.b16 %v3200
      %v3374 = vunpack.c.l.b16 %v3201
      %v3375 = vunpack.c.l.b16 %v3202
      %v3376 = vpack.c.b16 %v3369, %v3368
      %v3377 = vpack.c.b16 %v3371, %v3370
      %v3378 = vpack.c.b16 %v3373, %v3372
      %v3379 = vpack.c.b16 %v3375, %v3374
      %3380 = vrot.lane.b32.xlu0 %v3376, 24
      %v3381 = vpop.permute.xlu0 %3380
      %3382 = vrot.lane.b32.xlu0 %v3377, 24
      %v3383 = vpop.permute.xlu0 %3382
      %3384 = vrot.lane.b32.xlu0 %v3378, 24
      %v3385 = vpop.permute.xlu0 %3384
      %3386 = vrot.lane.b32.xlu0 %v3379, 24
      %v3387 = vpop.permute.xlu0 %3386
      %v3396 = vunpack.c.l.b16 %v3211
      %v3397 = vunpack.c.l.b16 %v3212
      %v3398 = vunpack.c.l.b16 %v3213
      %v3399 = vunpack.c.l.b16 %v3214
      %v3400 = vunpack.c.l.b16 %v3215
      %v3401 = vunpack.c.l.b16 %v3216
      %v3402 = vunpack.c.l.b16 %v3217
      %v3403 = vunpack.c.l.b16 %v3218
      %v3404 = vpack.c.b16 %v3397, %v3396
      %v3405 = vpack.c.b16 %v3399, %v3398
      %v3406 = vpack.c.b16 %v3401, %v3400
      %v3407 = vpack.c.b16 %v3403, %v3402
      %3408 = vrot.lane.b32.xlu0 %v3404, 32
      %v3409 = vpop.permute.xlu0 %3408
      %3410 = vrot.lane.b32.xlu0 %v3405, 32
      %v3411 = vpop.permute.xlu0 %3410
      %3412 = vrot.lane.b32.xlu0 %v3406, 32
      %v3413 = vpop.permute.xlu0 %3412
      %3414 = vrot.lane.b32.xlu0 %v3407, 32
      %v3415 = vpop.permute.xlu0 %3414
      %v3424 = vunpack.c.l.b16 %v3227
      %v3425 = vunpack.c.l.b16 %v3228
      %v3426 = vunpack.c.l.b16 %v3229
      %v3427 = vunpack.c.l.b16 %v3230
      %v3428 = vunpack.c.l.b16 %v3231
      %v3429 = vunpack.c.l.b16 %v3232
      %v3430 = vunpack.c.l.b16 %v3233
      %v3431 = vunpack.c.l.b16 %v3234
      %v3432 = vpack.c.b16 %v3425, %v3424
      %v3433 = vpack.c.b16 %v3427, %v3426
      %v3434 = vpack.c.b16 %v3429, %v3428
      %v3435 = vpack.c.b16 %v3431, %v3430
      %3436 = vrot.lane.b32.xlu0 %v3432, 40
      %v3437 = vpop.permute.xlu0 %3436
      %3438 = vrot.lane.b32.xlu0 %v3433, 40
      %v3439 = vpop.permute.xlu0 %3438
      %3440 = vrot.lane.b32.xlu0 %v3434, 40
      %v3441 = vpop.permute.xlu0 %3440
      %3442 = vrot.lane.b32.xlu0 %v3435, 40
      %v3443 = vpop.permute.xlu0 %3442
      %v3452 = vunpack.c.l.b16 %v3244
      %v3453 = vunpack.c.l.b16 %v3245
      %v3454 = vunpack.c.l.b16 %v3246
      %v3455 = vunpack.c.l.b16 %v3247
      %v3456 = vunpack.c.l.b16 %v3248
      %v3457 = vunpack.c.l.b16 %v3249
      %v3458 = vunpack.c.l.b16 %v3250
      %v3459 = vunpack.c.l.b16 %v3251
      %v3460 = vpack.c.b16 %v3453, %v3452
      %v3461 = vpack.c.b16 %v3455, %v3454
      %v3462 = vpack.c.b16 %v3457, %v3456
      %v3463 = vpack.c.b16 %v3459, %v3458
      %3464 = vrot.lane.b32.xlu0 %v3460, 48
      %v3465 = vpop.permute.xlu0 %3464
      %3466 = vrot.lane.b32.xlu0 %v3461, 48
      %v3467 = vpop.permute.xlu0 %3466
      %3468 = vrot.lane.b32.xlu0 %v3462, 48
      %v3469 = vpop.permute.xlu0 %3468
      %3470 = vrot.lane.b32.xlu0 %v3463, 48
      %v3471 = vpop.permute.xlu0 %3470
      %v3480 = vunpack.c.l.b16 %v3260
      %v3481 = vunpack.c.l.b16 %v3261
      %v3482 = vunpack.c.l.b16 %v3262
      %v3483 = vunpack.c.l.b16 %v3263
      %v3484 = vunpack.c.l.b16 %v3264
      %v3485 = vunpack.c.l.b16 %v3265
      %v3486 = vunpack.c.l.b16 %v3266
      %v3487 = vunpack.c.l.b16 %v3267
      %v3488 = vpack.c.b16 %v3481, %v3480
      %v3489 = vpack.c.b16 %v3483, %v3482
      %v3490 = vpack.c.b16 %v3485, %v3484
      %v3491 = vpack.c.b16 %v3487, %v3486
      %3492 = vrot.lane.b32.xlu0 %v3488, 56
      %v3493 = vpop.permute.xlu0 %3492
      %3494 = vrot.lane.b32.xlu0 %v3489, 56
      %v3495 = vpop.permute.xlu0 %3494
      %3496 = vrot.lane.b32.xlu0 %v3490, 56
      %v3497 = vpop.permute.xlu0 %3496
      %3498 = vrot.lane.b32.xlu0 %v3491, 56
      %v3499 = vpop.permute.xlu0 %3498
      %v3508 = vunpack.c.l.b16 %v3276
      %v3509 = vunpack.c.l.b16 %v3277
      %v3510 = vunpack.c.l.b16 %v3278
      %v3511 = vunpack.c.l.b16 %v3279
      %v3512 = vunpack.c.l.b16 %v3280
      %v3513 = vunpack.c.l.b16 %v3281
      %v3514 = vunpack.c.l.b16 %v3282
      %v3515 = vunpack.c.l.b16 %v3283
      %v3516 = vpack.c.b16 %v3509, %v3508
      %v3517 = vpack.c.b16 %v3511, %v3510
      %v3518 = vpack.c.b16 %v3513, %v3512
      %v3519 = vpack.c.b16 %v3515, %v3514
      %3520 = vrot.lane.b32.xlu0 %v3516, 64
      %v3521 = vpop.permute.xlu0 %3520
      %3522 = vrot.lane.b32.xlu0 %v3517, 64
      %v3523 = vpop.permute.xlu0 %3522
      %3524 = vrot.lane.b32.xlu0 %v3518, 64
      %v3525 = vpop.permute.xlu0 %3524
      %3526 = vrot.lane.b32.xlu0 %v3519, 64
      %v3527 = vpop.permute.xlu0 %3526
      %v3530 = vsel %vm2098, %v3300, %v3325
      %v3533 = vsel %vm2098, %v3301, %v3327
      %v3536 = vsel %vm2098, %v3302, %v3329
      %v3539 = vsel %vm2098, %v3303, %v3331
      %v3541 = vsel %vm2164, %v3530, %v3353
      %v3543 = vsel %vm2164, %v3533, %v3355
      %v3545 = vsel %vm2164, %v3536, %v3357
      %v3547 = vsel %vm2164, %v3539, %v3359
      %v3549 = vsel %vm2230, %v3541, %v3381
      %v3551 = vsel %vm2230, %v3543, %v3383
      %v3553 = vsel %vm2230, %v3545, %v3385
      %v3555 = vsel %vm2230, %v3547, %v3387
      %v3557 = vsel %vm2296, %v3549, %v3409
      %v3559 = vsel %vm2296, %v3551, %v3411
      %v3561 = vsel %vm2296, %v3553, %v3413
      %v3563 = vsel %vm2296, %v3555, %v3415
      %vm3564 = vcmask 326656
      %v3566 = vsel %vm3564, %v3557, %v3437
      %v3568 = vsel %vm3564, %v3559, %v3439
      %v3570 = vsel %vm3564, %v3561, %v3441
      %v3572 = vsel %vm3564, %v3563, %v3443
      %vm3573 = vcmask 392192
      %v3575 = vsel %vm3573, %v3566, %v3465
      %v3577 = vsel %vm3573, %v3568, %v3467
      %v3579 = vsel %vm3573, %v3570, %v3469
      %v3581 = vsel %vm3573, %v3572, %v3471
      %vm3582 = vcmask 457728
      %v3584 = vsel %vm3582, %v3575, %v3493
      %v3586 = vsel %vm3582, %v3577, %v3495
      %v3588 = vsel %vm3582, %v3579, %v3497
      %v3590 = vsel %vm3582, %v3581, %v3499
      %vm3591 = vcmask 523264
      %v3593 = vsel %vm3591, %v3584, %v3521
      %v3595 = vsel %vm3591, %v3586, %v3523
      %v3597 = vsel %vm3591, %v3588, %v3525
      %v3599 = vsel %vm3591, %v3590, %v3527
      %v3600 = vld [vmem:[%s3] sm:$0xff]
      %v3601 = vld [vmem:[%s3 + $0x8] sm:$0xff]
      %v3602 = vld [vmem:[%s3 + $0x10] sm:$0xff]
      %v3603 = vld [vmem:[%s3 + $0x18] sm:$0xff]
      %v3604 = vld [vmem:[%s3 + $0x20] sm:$0xff]
      %v3605 = vld [vmem:[%s3 + $0x28] sm:$0xff]
      %v3606 = vld [vmem:[%s3 + $0x30] sm:$0xff]
      %v3607 = vld [vmem:[%s3 + $0x38] sm:$0xff]
      %v3608 = vld [vmem:[%s3 + $0x40] sm:$0xff]
      %v3609 = vpack.c.bf16 %v3601, %v3600
      %v3610 = vpack.c.bf16 %v3603, %v3602
      %v3611 = vpack.c.bf16 %v3605, %v3604
      %v3612 = vpack.c.bf16 %v3607, %v3606
      %v3613 = vpack.c.bf16 %v3608, %v3608
      %v3614 = vld [vmem:[%s4] sm:$0x1]
      %v3616 = vperm.slane %v3614, 0
      %vm3618 = vcmask 588800
      %v3619 = vsel %vm3618, %v3593, 0
      %v3621 = vsel %vm3618, %v3595, 0
      %v3623 = vsel %vm3618, %v3597, 0
      %v3625 = vsel %vm3618, %v3599, 0
      %vm3627 = vcmask 1043456
      %v3629 = vsel %vm3627, %v3613, 0
      %3631 = vmatpush.bf16.msra.mxu0 0
      %3632 = vmatpush.bf16.msra.mxu0 0
      %3633 = vmatpush.bf16.msra.mxu0 0
      %3634 = vmatpush.bf16.msra.mxu0 %v3629
      %3635 = vmatpush.bf16.msra.mxu0 %v3612
      %3636 = vmatpush.bf16.msra.mxu0 %v3611
      %3637 = vmatpush.bf16.msra.mxu0 %v3610
      %3638 = vmatpush.bf16.msra.mxu0 %v3609
      %3639 = vmatmul.bf16.gmra.mxu0 %v3619
      %v3640 = vpop.f32.mrf.mxu0
      %v3641 = vadd.f32 %v3616, %v3640
      %v3642 = vpop.f32.mrf.mxu0
      %v3643 = vadd.f32 %v3616, %v3642
      %3644 = vmatmul.bf16.gmra.mxu0 %v3621
      %v3645 = vpop.f32.mrf.mxu0
      %v3646 = vadd.f32 %v3616, %v3645
      %v3647 = vpop.f32.mrf.mxu0
      %v3648 = vadd.f32 %v3616, %v3647
      %3649 = vmatmul.bf16.gmra.mxu0 %v3623
      %v3650 = vpop.f32.mrf.mxu0
      %v3651 = vadd.f32 %v3616, %v3650
      %v3652 = vpop.f32.mrf.mxu0
      %v3653 = vadd.f32 %v3616, %v3652
      %3654 = vmatmul.bf16.gmra.mxu0 %v3625
      %v3655 = vpop.f32.mrf.mxu0
      %v3656 = vadd.f32 %v3616, %v3655
      %v3657 = vpop.f32.mrf.mxu0
      %v3658 = vadd.f32 %v3616, %v3657
      %3659 = vdwg.mxu0
      %v3660 = vmax.f32 %v3641, 0.0
      %v3661 = vmax.f32 %v3643, 0.0
      %v3662 = vmax.f32 %v3646, 0.0
      %v3663 = vmax.f32 %v3648, 0.0
      %v3664 = vmax.f32 %v3651, 0.0
      %v3665 = vmax.f32 %v3653, 0.0
      %v3666 = vmax.f32 %v3656, 0.0
      %v3667 = vmax.f32 %v3658, 0.0
      %3668 = vst.msk [vmem:[%s3130 + $0x1] sm:$0xff] %vm2098, %v3660
      %3669 = vst.msk [vmem:[%s3130 + $0x11] sm:$0xff] %vm2098, %v3661
      %3670 = vst.msk [vmem:[%s3130 + $0x21] sm:$0xff] %vm2098, %v3662
      %3671 = vst.msk [vmem:[%s3130 + $0x31] sm:$0xff] %vm2098, %v3663
      %3672 = vst.msk [vmem:[%s3130 + $0x41] sm:$0xff] %vm2098, %v3664
      %3673 = vst.msk [vmem:[%s3130 + $0x51] sm:$0xff] %vm2098, %v3665
      %3674 = vst.msk [vmem:[%s3130 + $0x61] sm:$0xff] %vm2098, %v3666
      %3675 = vst.msk [vmem:[%s3130 + $0x71] sm:$0xff] %vm2098, %v3667
      %v3676 = vld [vmem:[#allocation4] sm:$0xff]
      %v3677 = vld [vmem:[#allocation4 + $0x10] sm:$0xff]
      %v3678 = vld [vmem:[#allocation4 + $0x20] sm:$0xff]
      %v3679 = vld [vmem:[#allocation4 + $0x30] sm:$0xff]
      %v3680 = vld [vmem:[#allocation4 + $0x40] sm:$0xff]
      %v3681 = vld [vmem:[#allocation4 + $0x50] sm:$0xff]
      %v3682 = vld [vmem:[#allocation4 + $0x60] sm:$0xff]
      %v3683 = vld [vmem:[#allocation4 + $0x70] sm:$0xff]
      %v3684 = vpack.c.bf16 %v3676, %v3676
      %v3685 = vpack.c.bf16 %v3677, %v3677
      %v3686 = vpack.c.bf16 %v3678, %v3678
      %v3687 = vpack.c.bf16 %v3679, %v3679
      %v3688 = vpack.c.bf16 %v3680, %v3680
      %v3689 = vpack.c.bf16 %v3681, %v3681
      %v3690 = vpack.c.bf16 %v3682, %v3682
      %v3691 = vpack.c.bf16 %v3683, %v3683
      %v3692 = vld [vmem:[#allocation4 + $0x1] sm:$0xff]
      %v3693 = vld [vmem:[#allocation4 + $0x11] sm:$0xff]
      %v3694 = vld [vmem:[#allocation4 + $0x21] sm:$0xff]
      %v3695 = vld [vmem:[#allocation4 + $0x31] sm:$0xff]
      %v3696 = vld [vmem:[#allocation4 + $0x41] sm:$0xff]
      %v3697 = vld [vmem:[#allocation4 + $0x51] sm:$0xff]
      %v3698 = vld [vmem:[#allocation4 + $0x61] sm:$0xff]
      %v3699 = vld [vmem:[#allocation4 + $0x71] sm:$0xff]
      %v3700 = vpack.c.bf16 %v3692, %v3692
      %v3701 = vpack.c.bf16 %v3693, %v3693
      %v3702 = vpack.c.bf16 %v3694, %v3694
      %v3703 = vpack.c.bf16 %v3695, %v3695
      %v3704 = vpack.c.bf16 %v3696, %v3696
      %v3705 = vpack.c.bf16 %v3697, %v3697
      %v3706 = vpack.c.bf16 %v3698, %v3698
      %v3707 = vpack.c.bf16 %v3699, %v3699
      %v3708 = vld [vmem:[#allocation4 + $0x2] sm:$0xff]
      %v3709 = vld [vmem:[#allocation4 + $0x12] sm:$0xff]
      %v3710 = vld [vmem:[#allocation4 + $0x22] sm:$0xff]
      %v3711 = vld [vmem:[#allocation4 + $0x32] sm:$0xff]
      %v3712 = vld [vmem:[#allocation4 + $0x42] sm:$0xff]
      %v3713 = vld [vmem:[#allocation4 + $0x52] sm:$0xff]
      %v3714 = vld [vmem:[#allocation4 + $0x62] sm:$0xff]
      %v3715 = vld [vmem:[#allocation4 + $0x72] sm:$0xff]
      %v3716 = vpack.c.bf16 %v3708, %v3708
      %v3717 = vpack.c.bf16 %v3709, %v3709
      %v3718 = vpack.c.bf16 %v3710, %v3710
      %v3719 = vpack.c.bf16 %v3711, %v3711
      %v3720 = vpack.c.bf16 %v3712, %v3712
      %v3721 = vpack.c.bf16 %v3713, %v3713
      %v3722 = vpack.c.bf16 %v3714, %v3714
      %v3723 = vpack.c.bf16 %v3715, %v3715
      %v3724 = vld [vmem:[%s3130] sm:$0xff]
      %v3725 = vld [vmem:[%s3130 + $0x10] sm:$0xff]
      %v3726 = vld [vmem:[%s3130 + $0x20] sm:$0xff]
      %v3727 = vld [vmem:[%s3130 + $0x30] sm:$0xff]
      %v3728 = vld [vmem:[%s3130 + $0x40] sm:$0xff]
      %v3729 = vld [vmem:[%s3130 + $0x50] sm:$0xff]
      %v3730 = vld [vmem:[%s3130 + $0x60] sm:$0xff]
      %v3731 = vld [vmem:[%s3130 + $0x70] sm:$0xff]
      %v3732 = vpack.c.bf16 %v3724, %v3724
      %v3733 = vpack.c.bf16 %v3725, %v3725
      %v3734 = vpack.c.bf16 %v3726, %v3726
      %v3735 = vpack.c.bf16 %v3727, %v3727
      %v3736 = vpack.c.bf16 %v3728, %v3728
      %v3737 = vpack.c.bf16 %v3729, %v3729
      %v3738 = vpack.c.bf16 %v3730, %v3730
      %v3739 = vpack.c.bf16 %v3731, %v3731
      %v3740 = vld [vmem:[%s3130 + $0x1] sm:$0xff]
      %v3741 = vld [vmem:[%s3130 + $0x11] sm:$0xff]
      %v3742 = vld [vmem:[%s3130 + $0x21] sm:$0xff]
      %v3743 = vld [vmem:[%s3130 + $0x31] sm:$0xff]
      %v3744 = vld [vmem:[%s3130 + $0x41] sm:$0xff]
      %v3745 = vld [vmem:[%s3130 + $0x51] sm:$0xff]
      %v3746 = vld [vmem:[%s3130 + $0x61] sm:$0xff]
      %v3747 = vld [vmem:[%s3130 + $0x71] sm:$0xff]
      %v3748 = vpack.c.bf16 %v3740, %v3740
      %v3749 = vpack.c.bf16 %v3741, %v3741
      %v3750 = vpack.c.bf16 %v3742, %v3742
      %v3751 = vpack.c.bf16 %v3743, %v3743
      %v3752 = vpack.c.bf16 %v3744, %v3744
      %v3753 = vpack.c.bf16 %v3745, %v3745
      %v3754 = vpack.c.bf16 %v3746, %v3746
      %v3755 = vpack.c.bf16 %v3747, %v3747
      %v3756 = vld [vmem:[%s3130 + $0x2] sm:$0xff]
      %v3757 = vld [vmem:[%s3130 + $0x12] sm:$0xff]
      %v3758 = vld [vmem:[%s3130 + $0x22] sm:$0xff]
      %v3759 = vld [vmem:[%s3130 + $0x32] sm:$0xff]
      %v3760 = vld [vmem:[%s3130 + $0x42] sm:$0xff]
      %v3761 = vld [vmem:[%s3130 + $0x52] sm:$0xff]
      %v3762 = vld [vmem:[%s3130 + $0x62] sm:$0xff]
      %v3763 = vld [vmem:[%s3130 + $0x72] sm:$0xff]
      %v3764 = vpack.c.bf16 %v3756, %v3756
      %v3765 = vpack.c.bf16 %v3757, %v3757
      %v3766 = vpack.c.bf16 %v3758, %v3758
      %v3767 = vpack.c.bf16 %v3759, %v3759
      %v3768 = vpack.c.bf16 %v3760, %v3760
      %v3769 = vpack.c.bf16 %v3761, %v3761
      %v3770 = vpack.c.bf16 %v3762, %v3762
      %v3771 = vpack.c.bf16 %v3763, %v3763
      %v3772 = vld [vmem:[%s3235] sm:$0xff]
      %v3773 = vld [vmem:[%s3235 + $0x10] sm:$0xff]
      %v3774 = vld [vmem:[%s3235 + $0x20] sm:$0xff]
      %v3775 = vld [vmem:[%s3235 + $0x30] sm:$0xff]
      %v3776 = vld [vmem:[%s3235 + $0x40] sm:$0xff]
      %v3777 = vld [vmem:[%s3235 + $0x50] sm:$0xff]
      %v3778 = vld [vmem:[%s3235 + $0x60] sm:$0xff]
      %v3779 = vld [vmem:[%s3235 + $0x70] sm:$0xff]
      %v3780 = vpack.c.bf16 %v3772, %v3772
      %v3781 = vpack.c.bf16 %v3773, %v3773
      %v3782 = vpack.c.bf16 %v3774, %v3774
      %v3783 = vpack.c.bf16 %v3775, %v3775
      %v3784 = vpack.c.bf16 %v3776, %v3776
      %v3785 = vpack.c.bf16 %v3777, %v3777
      %v3786 = vpack.c.bf16 %v3778, %v3778
      %v3787 = vpack.c.bf16 %v3779, %v3779
      %v3788 = vld [vmem:[%s3235 + $0x1] sm:$0xff]
      %v3789 = vld [vmem:[%s3235 + $0x11] sm:$0xff]
      %v3790 = vld [vmem:[%s3235 + $0x21] sm:$0xff]
      %v3791 = vld [vmem:[%s3235 + $0x31] sm:$0xff]
      %v3792 = vld [vmem:[%s3235 + $0x41] sm:$0xff]
      %v3793 = vld [vmem:[%s3235 + $0x51] sm:$0xff]
      %v3794 = vld [vmem:[%s3235 + $0x61] sm:$0xff]
      %v3795 = vld [vmem:[%s3235 + $0x71] sm:$0xff]
      %v3796 = vpack.c.bf16 %v3788, %v3788
      %v3797 = vpack.c.bf16 %v3789, %v3789
      %v3798 = vpack.c.bf16 %v3790, %v3790
      %v3799 = vpack.c.bf16 %v3791, %v3791
      %v3800 = vpack.c.bf16 %v3792, %v3792
      %v3801 = vpack.c.bf16 %v3793, %v3793
      %v3802 = vpack.c.bf16 %v3794, %v3794
      %v3803 = vpack.c.bf16 %v3795, %v3795
      %v3804 = vld [vmem:[%s3235 + $0x2] sm:$0xff]
      %v3805 = vld [vmem:[%s3235 + $0x12] sm:$0xff]
      %v3806 = vld [vmem:[%s3235 + $0x22] sm:$0xff]
      %v3807 = vld [vmem:[%s3235 + $0x32] sm:$0xff]
      %v3808 = vld [vmem:[%s3235 + $0x42] sm:$0xff]
      %v3809 = vld [vmem:[%s3235 + $0x52] sm:$0xff]
      %v3810 = vld [vmem:[%s3235 + $0x62] sm:$0xff]
      %v3811 = vld [vmem:[%s3235 + $0x72] sm:$0xff]
      %v3812 = vpack.c.bf16 %v3804, %v3804
      %v3813 = vpack.c.bf16 %v3805, %v3805
      %v3814 = vpack.c.bf16 %v3806, %v3806
      %v3815 = vpack.c.bf16 %v3807, %v3807
      %v3816 = vpack.c.bf16 %v3808, %v3808
      %v3817 = vpack.c.bf16 %v3809, %v3809
      %v3818 = vpack.c.bf16 %v3810, %v3810
      %v3819 = vpack.c.bf16 %v3811, %v3811
      %v3828 = vunpack.c.l.b16 %v3684
      %v3829 = vunpack.c.l.b16 %v3685
      %v3830 = vunpack.c.l.b16 %v3686
      %v3831 = vunpack.c.l.b16 %v3687
      %v3832 = vunpack.c.l.b16 %v3688
      %v3833 = vunpack.c.l.b16 %v3689
      %v3834 = vunpack.c.l.b16 %v3690
      %v3835 = vunpack.c.l.b16 %v3691
      %v3836 = vpack.c.b16 %v3829, %v3828
      %v3837 = vpack.c.b16 %v3831, %v3830
      %v3838 = vpack.c.b16 %v3833, %v3832
      %v3839 = vpack.c.b16 %v3835, %v3834
      %v3848 = vunpack.c.l.b16 %v3700
      %v3849 = vunpack.c.l.b16 %v3701
      %v3850 = vunpack.c.l.b16 %v3702
      %v3851 = vunpack.c.l.b16 %v3703
      %v3852 = vunpack.c.l.b16 %v3704
      %v3853 = vunpack.c.l.b16 %v3705
      %v3854 = vunpack.c.l.b16 %v3706
      %v3855 = vunpack.c.l.b16 %v3707
      %v3856 = vpack.c.b16 %v3849, %v3848
      %v3857 = vpack.c.b16 %v3851, %v3850
      %v3858 = vpack.c.b16 %v3853, %v3852
      %v3859 = vpack.c.b16 %v3855, %v3854
      %3860 = vrot.lane.b32.xlu0 %v3856, 8
      %v3861 = vpop.permute.xlu0 %3860
      %3862 = vrot.lane.b32.xlu0 %v3857, 8
      %v3863 = vpop.permute.xlu0 %3862
      %3864 = vrot.lane.b32.xlu0 %v3858, 8
      %v3865 = vpop.permute.xlu0 %3864
      %3866 = vrot.lane.b32.xlu0 %v3859, 8
      %v3867 = vpop.permute.xlu0 %3866
      %v3876 = vunpack.c.l.b16 %v3716
      %v3877 = vunpack.c.l.b16 %v3717
      %v3878 = vunpack.c.l.b16 %v3718
      %v3879 = vunpack.c.l.b16 %v3719
      %v3880 = vunpack.c.l.b16 %v3720
      %v3881 = vunpack.c.l.b16 %v3721
      %v3882 = vunpack.c.l.b16 %v3722
      %v3883 = vunpack.c.l.b16 %v3723
      %v3884 = vpack.c.b16 %v3877, %v3876
      %v3885 = vpack.c.b16 %v3879, %v3878
      %v3886 = vpack.c.b16 %v3881, %v3880
      %v3887 = vpack.c.b16 %v3883, %v3882
      %3888 = vrot.lane.b32.xlu0 %v3884, 16
      %v3889 = vpop.permute.xlu0 %3888
      %3890 = vrot.lane.b32.xlu0 %v3885, 16
      %v3891 = vpop.permute.xlu0 %3890
      %3892 = vrot.lane.b32.xlu0 %v3886, 16
      %v3893 = vpop.permute.xlu0 %3892
      %3894 = vrot.lane.b32.xlu0 %v3887, 16
      %v3895 = vpop.permute.xlu0 %3894
      %v3904 = vunpack.c.l.b16 %v3732
      %v3905 = vunpack.c.l.b16 %v3733
      %v3906 = vunpack.c.l.b16 %v3734
      %v3907 = vunpack.c.l.b16 %v3735
      %v3908 = vunpack.c.l.b16 %v3736
      %v3909 = vunpack.c.l.b16 %v3737
      %v3910 = vunpack.c.l.b16 %v3738
      %v3911 = vunpack.c.l.b16 %v3739
      %v3912 = vpack.c.b16 %v3905, %v3904
      %v3913 = vpack.c.b16 %v3907, %v3906
      %v3914 = vpack.c.b16 %v3909, %v3908
      %v3915 = vpack.c.b16 %v3911, %v3910
      %3916 = vrot.lane.b32.xlu0 %v3912, 24
      %v3917 = vpop.permute.xlu0 %3916
      %3918 = vrot.lane.b32.xlu0 %v3913, 24
      %v3919 = vpop.permute.xlu0 %3918
      %3920 = vrot.lane.b32.xlu0 %v3914, 24
      %v3921 = vpop.permute.xlu0 %3920
      %3922 = vrot.lane.b32.xlu0 %v3915, 24
      %v3923 = vpop.permute.xlu0 %3922
      %v3932 = vunpack.c.l.b16 %v3748
      %v3933 = vunpack.c.l.b16 %v3749
      %v3934 = vunpack.c.l.b16 %v3750
      %v3935 = vunpack.c.l.b16 %v3751
      %v3936 = vunpack.c.l.b16 %v3752
      %v3937 = vunpack.c.l.b16 %v3753
      %v3938 = vunpack.c.l.b16 %v3754
      %v3939 = vunpack.c.l.b16 %v3755
      %v3940 = vpack.c.b16 %v3933, %v3932
      %v3941 = vpack.c.b16 %v3935, %v3934
      %v3942 = vpack.c.b16 %v3937, %v3936
      %v3943 = vpack.c.b16 %v3939, %v3938
      %3944 = vrot.lane.b32.xlu0 %v3940, 32
      %v3945 = vpop.permute.xlu0 %3944
      %3946 = vrot.lane.b32.xlu0 %v3941, 32
      %v3947 = vpop.permute.xlu0 %3946
      %3948 = vrot.lane.b32.xlu0 %v3942, 32
      %v3949 = vpop.permute.xlu0 %3948
      %3950 = vrot.lane.b32.xlu0 %v3943, 32
      %v3951 = vpop.permute.xlu0 %3950
      %v3960 = vunpack.c.l.b16 %v3764
      %v3961 = vunpack.c.l.b16 %v3765
      %v3962 = vunpack.c.l.b16 %v3766
      %v3963 = vunpack.c.l.b16 %v3767
      %v3964 = vunpack.c.l.b16 %v3768
      %v3965 = vunpack.c.l.b16 %v3769
      %v3966 = vunpack.c.l.b16 %v3770
      %v3967 = vunpack.c.l.b16 %v3771
      %v3968 = vpack.c.b16 %v3961, %v3960
      %v3969 = vpack.c.b16 %v3963, %v3962
      %v3970 = vpack.c.b16 %v3965, %v3964
      %v3971 = vpack.c.b16 %v3967, %v3966
      %3972 = vrot.lane.b32.xlu0 %v3968, 40
      %v3973 = vpop.permute.xlu0 %3972
      %3974 = vrot.lane.b32.xlu0 %v3969, 40
      %v3975 = vpop.permute.xlu0 %3974
      %3976 = vrot.lane.b32.xlu0 %v3970, 40
      %v3977 = vpop.permute.xlu0 %3976
      %3978 = vrot.lane.b32.xlu0 %v3971, 40
      %v3979 = vpop.permute.xlu0 %3978
      %v3988 = vunpack.c.l.b16 %v3780
      %v3989 = vunpack.c.l.b16 %v3781
      %v3990 = vunpack.c.l.b16 %v3782
      %v3991 = vunpack.c.l.b16 %v3783
      %v3992 = vunpack.c.l.b16 %v3784
      %v3993 = vunpack.c.l.b16 %v3785
      %v3994 = vunpack.c.l.b16 %v3786
      %v3995 = vunpack.c.l.b16 %v3787
      %v3996 = vpack.c.b16 %v3989, %v3988
      %v3997 = vpack.c.b16 %v3991, %v3990
      %v3998 = vpack.c.b16 %v3993, %v3992
      %v3999 = vpack.c.b16 %v3995, %v3994
      %4000 = vrot.lane.b32.xlu0 %v3996, 48
      %v4001 = vpop.permute.xlu0 %4000
      %4002 = vrot.lane.b32.xlu0 %v3997, 48
      %v4003 = vpop.permute.xlu0 %4002
      %4004 = vrot.lane.b32.xlu0 %v3998, 48
      %v4005 = vpop.permute.xlu0 %4004
      %4006 = vrot.lane.b32.xlu0 %v3999, 48
      %v4007 = vpop.permute.xlu0 %4006
      %v4016 = vunpack.c.l.b16 %v3796
      %v4017 = vunpack.c.l.b16 %v3797
      %v4018 = vunpack.c.l.b16 %v3798
      %v4019 = vunpack.c.l.b16 %v3799
      %v4020 = vunpack.c.l.b16 %v3800
      %v4021 = vunpack.c.l.b16 %v3801
      %v4022 = vunpack.c.l.b16 %v3802
      %v4023 = vunpack.c.l.b16 %v3803
      %v4024 = vpack.c.b16 %v4017, %v4016
      %v4025 = vpack.c.b16 %v4019, %v4018
      %v4026 = vpack.c.b16 %v4021, %v4020
      %v4027 = vpack.c.b16 %v4023, %v4022
      %4028 = vrot.lane.b32.xlu0 %v4024, 56
      %v4029 = vpop.permute.xlu0 %4028
      %4030 = vrot.lane.b32.xlu0 %v4025, 56
      %v4031 = vpop.permute.xlu0 %4030
      %4032 = vrot.lane.b32.xlu0 %v4026, 56
      %v4033 = vpop.permute.xlu0 %4032
      %4034 = vrot.lane.b32.xlu0 %v4027, 56
      %v4035 = vpop.permute.xlu0 %4034
      %v4044 = vunpack.c.l.b16 %v3812
      %v4045 = vunpack.c.l.b16 %v3813
      %v4046 = vunpack.c.l.b16 %v3814
      %v4047 = vunpack.c.l.b16 %v3815
      %v4048 = vunpack.c.l.b16 %v3816
      %v4049 = vunpack.c.l.b16 %v3817
      %v4050 = vunpack.c.l.b16 %v3818
      %v4051 = vunpack.c.l.b16 %v3819
      %v4052 = vpack.c.b16 %v4045, %v4044
      %v4053 = vpack.c.b16 %v4047, %v4046
      %v4054 = vpack.c.b16 %v4049, %v4048
      %v4055 = vpack.c.b16 %v4051, %v4050
      %4056 = vrot.lane.b32.xlu0 %v4052, 64
      %v4057 = vpop.permute.xlu0 %4056
      %4058 = vrot.lane.b32.xlu0 %v4053, 64
      %v4059 = vpop.permute.xlu0 %4058
      %4060 = vrot.lane.b32.xlu0 %v4054, 64
      %v4061 = vpop.permute.xlu0 %4060
      %4062 = vrot.lane.b32.xlu0 %v4055, 64
      %v4063 = vpop.permute.xlu0 %4062
      %v4066 = vsel %vm2098, %v3836, %v3861
      %v4069 = vsel %vm2098, %v3837, %v3863
      %v4072 = vsel %vm2098, %v3838, %v3865
      %v4075 = vsel %vm2098, %v3839, %v3867
      %v4077 = vsel %vm2164, %v4066, %v3889
      %v4079 = vsel %vm2164, %v4069, %v3891
      %v4081 = vsel %vm2164, %v4072, %v3893
      %v4083 = vsel %vm2164, %v4075, %v3895
      %v4085 = vsel %vm2230, %v4077, %v3917
      %v4087 = vsel %vm2230, %v4079, %v3919
      %v4089 = vsel %vm2230, %v4081, %v3921
      %v4091 = vsel %vm2230, %v4083, %v3923
      %v4093 = vsel %vm2296, %v4085, %v3945
      %v4095 = vsel %vm2296, %v4087, %v3947
      %v4097 = vsel %vm2296, %v4089, %v3949
      %v4099 = vsel %vm2296, %v4091, %v3951
      %v4101 = vsel %vm3564, %v4093, %v3973
      %v4103 = vsel %vm3564, %v4095, %v3975
      %v4105 = vsel %vm3564, %v4097, %v3977
      %v4107 = vsel %vm3564, %v4099, %v3979
      %v4109 = vsel %vm3573, %v4101, %v4001
      %v4111 = vsel %vm3573, %v4103, %v4003
      %v4113 = vsel %vm3573, %v4105, %v4005
      %v4115 = vsel %vm3573, %v4107, %v4007
      %v4117 = vsel %vm3582, %v4109, %v4029
      %v4119 = vsel %vm3582, %v4111, %v4031
      %v4121 = vsel %vm3582, %v4113, %v4033
      %v4123 = vsel %vm3582, %v4115, %v4035
      %v4125 = vsel %vm3591, %v4117, %v4057
      %v4127 = vsel %vm3591, %v4119, %v4059
      %v4129 = vsel %vm3591, %v4121, %v4061
      %v4131 = vsel %vm3591, %v4123, %v4063
      %v4132 = vld [vmem:[%s5] sm:$0xff]
      %v4133 = vld [vmem:[%s5 + $0x8] sm:$0xff]
      %v4134 = vld [vmem:[%s5 + $0x10] sm:$0xff]
      %v4135 = vld [vmem:[%s5 + $0x18] sm:$0xff]
      %v4136 = vld [vmem:[%s5 + $0x20] sm:$0xff]
      %v4137 = vld [vmem:[%s5 + $0x28] sm:$0xff]
      %v4138 = vld [vmem:[%s5 + $0x30] sm:$0xff]
      %v4139 = vld [vmem:[%s5 + $0x38] sm:$0xff]
      %v4140 = vld [vmem:[%s5 + $0x40] sm:$0xff]
      %v4141 = vpack.c.bf16 %v4133, %v4132
      %v4142 = vpack.c.bf16 %v4135, %v4134
      %v4143 = vpack.c.bf16 %v4137, %v4136
      %v4144 = vpack.c.bf16 %v4139, %v4138
      %v4145 = vpack.c.bf16 %v4140, %v4140
      %v4146 = vld [vmem:[%s6] sm:$0x1]
      %v4148 = vperm.slane %v4146, 0
      %v4150 = vsel %vm3618, %v4125, 0
      %v4152 = vsel %vm3618, %v4127, 0
      %v4154 = vsel %vm3618, %v4129, 0
      %v4156 = vsel %vm3618, %v4131, 0
      %v4159 = vsel %vm3627, %v4145, 0
      %4161 = vmatpush.bf16.msra.mxu0 0
      %4162 = vmatpush.bf16.msra.mxu0 0
      %4163 = vmatpush.bf16.msra.mxu0 0
      %4164 = vmatpush.bf16.msra.mxu0 %v4159
      %4165 = vmatpush.bf16.msra.mxu0 %v4144
      %4166 = vmatpush.bf16.msra.mxu0 %v4143
      %4167 = vmatpush.bf16.msra.mxu0 %v4142
      %4168 = vmatpush.bf16.msra.mxu0 %v4141
      %4169 = vmatmul.bf16.gmra.mxu0 %v4150
      %v4170 = vpop.f32.mrf.mxu0
      %v4171 = vadd.f32 %v4148, %v4170
      %v4172 = vpop.f32.mrf.mxu0
      %v4173 = vadd.f32 %v4148, %v4172
      %4174 = vmatmul.bf16.gmra.mxu0 %v4152
      %v4175 = vpop.f32.mrf.mxu0
      %v4176 = vadd.f32 %v4148, %v4175
      %v4177 = vpop.f32.mrf.mxu0
      %v4178 = vadd.f32 %v4148, %v4177
      %4179 = vmatmul.bf16.gmra.mxu0 %v4154
      %v4180 = vpop.f32.mrf.mxu0
      %v4181 = vadd.f32 %v4148, %v4180
      %v4182 = vpop.f32.mrf.mxu0
      %v4183 = vadd.f32 %v4148, %v4182
      %4184 = vmatmul.bf16.gmra.mxu0 %v4156
      %v4185 = vpop.f32.mrf.mxu0
      %v4186 = vadd.f32 %v4148, %v4185
      %v4187 = vpop.f32.mrf.mxu0
      %v4188 = vadd.f32 %v4148, %v4187
      %4189 = vdwg.mxu0
      %v4190 = vadd.f32 %v4171, %v3114
      %v4191 = vadd.f32 %v4173, %v3115
      %v4192 = vadd.f32 %v4176, %v3116
      %v4193 = vadd.f32 %v4178, %v3117
      %v4194 = vadd.f32 %v4181, %v3118
      %v4195 = vadd.f32 %v4183, %v3119
      %v4196 = vadd.f32 %v4186, %v3120
      %v4197 = vadd.f32 %v4188, %v3121
      %4198 = vst.msk [vmem:[#allocation5] sm:$0xff] %vm2098, %v4190
      %4199 = vst.msk [vmem:[#allocation5 + $0x8] sm:$0xff] %vm2098, %v4191
      %4200 = vst.msk [vmem:[#allocation5 + $0x10] sm:$0xff] %vm2098, %v4192
      %4201 = vst.msk [vmem:[#allocation5 + $0x18] sm:$0xff] %vm2098, %v4193
      %4202 = vst.msk [vmem:[#allocation5 + $0x20] sm:$0xff] %vm2098, %v4194
      %4203 = vst.msk [vmem:[#allocation5 + $0x28] sm:$0xff] %vm2098, %v4195
      %4204 = vst.msk [vmem:[#allocation5 + $0x30] sm:$0xff] %vm2098, %v4196
      %4205 = vst.msk [vmem:[#allocation5 + $0x38] sm:$0xff] %vm2098, %v4197
      %v4206 = vld [vmem:[#allocation5] sm:$0xff]
      %v4207 = vld [vmem:[#allocation5 + $0x8] sm:$0xff]
      %v4208 = vld [vmem:[#allocation5 + $0x10] sm:$0xff]
      %v4209 = vld [vmem:[#allocation5 + $0x18] sm:$0xff]
      %v4210 = vld [vmem:[#allocation5 + $0x20] sm:$0xff]
      %v4211 = vld [vmem:[#allocation5 + $0x28] sm:$0xff]
      %v4212 = vld [vmem:[#allocation5 + $0x30] sm:$0xff]
      %v4213 = vld [vmem:[#allocation5 + $0x38] sm:$0xff]
      %v4214 = vmax.f32 %v4206, 0.0
      %v4215 = vmax.f32 %v4207, 0.0
      %v4216 = vmax.f32 %v4208, 0.0
      %v4217 = vmax.f32 %v4209, 0.0
      %v4218 = vmax.f32 %v4210, 0.0
      %v4219 = vmax.f32 %v4211, 0.0
      %v4220 = vmax.f32 %v4212, 0.0
      %v4221 = vmax.f32 %v4213, 0.0
      %4222 = vst.msk [vmem:[%s3130 + $0x1] sm:$0xff] %vm2098, %v4214
      %4223 = vst.msk [vmem:[%s3130 + $0x11] sm:$0xff] %vm2098, %v4215
      %4224 = vst.msk [vmem:[%s3130 + $0x21] sm:$0xff] %vm2098, %v4216
      %4225 = vst.msk [vmem:[%s3130 + $0x31] sm:$0xff] %vm2098, %v4217
      %4226 = vst.msk [vmem:[%s3130 + $0x41] sm:$0xff] %vm2098, %v4218
      %4227 = vst.msk [vmem:[%s3130 + $0x51] sm:$0xff] %vm2098, %v4219
      %4228 = vst.msk [vmem:[%s3130 + $0x61] sm:$0xff] %vm2098, %v4220
      %4229 = vst.msk [vmem:[%s3130 + $0x71] sm:$0xff] %vm2098, %v4221
      %v4230 = vld [vmem:[#allocation4] sm:$0xff]
      %v4231 = vld [vmem:[#allocation4 + $0x10] sm:$0xff]
      %v4232 = vld [vmem:[#allocation4 + $0x20] sm:$0xff]
      %v4233 = vld [vmem:[#allocation4 + $0x30] sm:$0xff]
      %v4234 = vld [vmem:[#allocation4 + $0x40] sm:$0xff]
      %v4235 = vld [vmem:[#allocation4 + $0x50] sm:$0xff]
      %v4236 = vld [vmem:[#allocation4 + $0x60] sm:$0xff]
      %v4237 = vld [vmem:[#allocation4 + $0x70] sm:$0xff]
      %v4238 = vpack.c.bf16 %v4230, %v4230
      %v4239 = vpack.c.bf16 %v4231, %v4231
      %v4240 = vpack.c.bf16 %v4232, %v4232
      %v4241 = vpack.c.bf16 %v4233, %v4233
      %v4242 = vpack.c.bf16 %v4234, %v4234
      %v4243 = vpack.c.bf16 %v4235, %v4235
      %v4244 = vpack.c.bf16 %v4236, %v4236
      %v4245 = vpack.c.bf16 %v4237, %v4237
      %v4246 = vld [vmem:[#allocation4 + $0x1] sm:$0xff]
      %v4247 = vld [vmem:[#allocation4 + $0x11] sm:$0xff]
      %v4248 = vld [vmem:[#allocation4 + $0x21] sm:$0xff]
      %v4249 = vld [vmem:[#allocation4 + $0x31] sm:$0xff]
      %v4250 = vld [vmem:[#allocation4 + $0x41] sm:$0xff]
      %v4251 = vld [vmem:[#allocation4 + $0x51] sm:$0xff]
      %v4252 = vld [vmem:[#allocation4 + $0x61] sm:$0xff]
      %v4253 = vld [vmem:[#allocation4 + $0x71] sm:$0xff]
      %v4254 = vpack.c.bf16 %v4246, %v4246
      %v4255 = vpack.c.bf16 %v4247, %v4247
      %v4256 = vpack.c.bf16 %v4248, %v4248
      %v4257 = vpack.c.bf16 %v4249, %v4249
      %v4258 = vpack.c.bf16 %v4250, %v4250
      %v4259 = vpack.c.bf16 %v4251, %v4251
      %v4260 = vpack.c.bf16 %v4252, %v4252
      %v4261 = vpack.c.bf16 %v4253, %v4253
      %v4262 = vld [vmem:[#allocation4 + $0x2] sm:$0xff]
      %v4263 = vld [vmem:[#allocation4 + $0x12] sm:$0xff]
      %v4264 = vld [vmem:[#allocation4 + $0x22] sm:$0xff]
      %v4265 = vld [vmem:[#allocation4 + $0x32] sm:$0xff]
      %v4266 = vld [vmem:[#allocation4 + $0x42] sm:$0xff]
      %v4267 = vld [vmem:[#allocation4 + $0x52] sm:$0xff]
      %v4268 = vld [vmem:[#allocation4 + $0x62] sm:$0xff]
      %v4269 = vld [vmem:[#allocation4 + $0x72] sm:$0xff]
      %v4270 = vpack.c.bf16 %v4262, %v4262
      %v4271 = vpack.c.bf16 %v4263, %v4263
      %v4272 = vpack.c.bf16 %v4264, %v4264
      %v4273 = vpack.c.bf16 %v4265, %v4265
      %v4274 = vpack.c.bf16 %v4266, %v4266
      %v4275 = vpack.c.bf16 %v4267, %v4267
      %v4276 = vpack.c.bf16 %v4268, %v4268
      %v4277 = vpack.c.bf16 %v4269, %v4269
      %v4278 = vld [vmem:[%s3130] sm:$0xff]
      %v4279 = vld [vmem:[%s3130 + $0x10] sm:$0xff]
      %v4280 = vld [vmem:[%s3130 + $0x20] sm:$0xff]
      %v4281 = vld [vmem:[%s3130 + $0x30] sm:$0xff]
      %v4282 = vld [vmem:[%s3130 + $0x40] sm:$0xff]
      %v4283 = vld [vmem:[%s3130 + $0x50] sm:$0xff]
      %v4284 = vld [vmem:[%s3130 + $0x60] sm:$0xff]
      %v4285 = vld [vmem:[%s3130 + $0x70] sm:$0xff]
      %v4286 = vpack.c.bf16 %v4278, %v4278
      %v4287 = vpack.c.bf16 %v4279, %v4279
      %v4288 = vpack.c.bf16 %v4280, %v4280
      %v4289 = vpack.c.bf16 %v4281, %v4281
      %v4290 = vpack.c.bf16 %v4282, %v4282
      %v4291 = vpack.c.bf16 %v4283, %v4283
      %v4292 = vpack.c.bf16 %v4284, %v4284
      %v4293 = vpack.c.bf16 %v4285, %v4285
      %v4294 = vld [vmem:[%s3130 + $0x1] sm:$0xff]
      %v4295 = vld [vmem:[%s3130 + $0x11] sm:$0xff]
      %v4296 = vld [vmem:[%s3130 + $0x21] sm:$0xff]
      %v4297 = vld [vmem:[%s3130 + $0x31] sm:$0xff]
      %v4298 = vld [vmem:[%s3130 + $0x41] sm:$0xff]
      %v4299 = vld [vmem:[%s3130 + $0x51] sm:$0xff]
      %v4300 = vld [vmem:[%s3130 + $0x61] sm:$0xff]
      %v4301 = vld [vmem:[%s3130 + $0x71] sm:$0xff]
      %v4302 = vpack.c.bf16 %v4294, %v4294
      %v4303 = vpack.c.bf16 %v4295, %v4295
      %v4304 = vpack.c.bf16 %v4296, %v4296
      %v4305 = vpack.c.bf16 %v4297, %v4297
      %v4306 = vpack.c.bf16 %v4298, %v4298
      %v4307 = vpack.c.bf16 %v4299, %v4299
      %v4308 = vpack.c.bf16 %v4300, %v4300
      %v4309 = vpack.c.bf16 %v4301, %v4301
      %v4310 = vld [vmem:[%s3130 + $0x2] sm:$0xff]
      %v4311 = vld [vmem:[%s3130 + $0x12] sm:$0xff]
      %v4312 = vld [vmem:[%s3130 + $0x22] sm:$0xff]
      %v4313 = vld [vmem:[%s3130 + $0x32] sm:$0xff]
      %v4314 = vld [vmem:[%s3130 + $0x42] sm:$0xff]
      %v4315 = vld [vmem:[%s3130 + $0x52] sm:$0xff]
      %v4316 = vld [vmem:[%s3130 + $0x62] sm:$0xff]
      %v4317 = vld [vmem:[%s3130 + $0x72] sm:$0xff]
      %v4318 = vpack.c.bf16 %v4310, %v4310
      %v4319 = vpack.c.bf16 %v4311, %v4311
      %v4320 = vpack.c.bf16 %v4312, %v4312
      %v4321 = vpack.c.bf16 %v4313, %v4313
      %v4322 = vpack.c.bf16 %v4314, %v4314
      %v4323 = vpack.c.bf16 %v4315, %v4315
      %v4324 = vpack.c.bf16 %v4316, %v4316
      %v4325 = vpack.c.bf16 %v4317, %v4317
      %v4326 = vld [vmem:[%s3235] sm:$0xff]
      %v4327 = vld [vmem:[%s3235 + $0x10] sm:$0xff]
      %v4328 = vld [vmem:[%s3235 + $0x20] sm:$0xff]
      %v4329 = vld [vmem:[%s3235 + $0x30] sm:$0xff]
      %v4330 = vld [vmem:[%s3235 + $0x40] sm:$0xff]
      %v4331 = vld [vmem:[%s3235 + $0x50] sm:$0xff]
      %v4332 = vld [vmem:[%s3235 + $0x60] sm:$0xff]
      %v4333 = vld [vmem:[%s3235 + $0x70] sm:$0xff]
      %v4334 = vpack.c.bf16 %v4326, %v4326
      %v4335 = vpack.c.bf16 %v4327, %v4327
      %v4336 = vpack.c.bf16 %v4328, %v4328
      %v4337 = vpack.c.bf16 %v4329, %v4329
      %v4338 = vpack.c.bf16 %v4330, %v4330
      %v4339 = vpack.c.bf16 %v4331, %v4331
      %v4340 = vpack.c.bf16 %v4332, %v4332
      %v4341 = vpack.c.bf16 %v4333, %v4333
      %v4342 = vld [vmem:[%s3235 + $0x1] sm:$0xff]
      %v4343 = vld [vmem:[%s3235 + $0x11] sm:$0xff]
      %v4344 = vld [vmem:[%s3235 + $0x21] sm:$0xff]
      %v4345 = vld [vmem:[%s3235 + $0x31] sm:$0xff]
      %v4346 = vld [vmem:[%s3235 + $0x41] sm:$0xff]
      %v4347 = vld [vmem:[%s3235 + $0x51] sm:$0xff]
      %v4348 = vld [vmem:[%s3235 + $0x61] sm:$0xff]
      %v4349 = vld [vmem:[%s3235 + $0x71] sm:$0xff]
      %v4350 = vpack.c.bf16 %v4342, %v4342
      %v4351 = vpack.c.bf16 %v4343, %v4343
      %v4352 = vpack.c.bf16 %v4344, %v4344
      %v4353 = vpack.c.bf16 %v4345, %v4345
      %v4354 = vpack.c.bf16 %v4346, %v4346
      %v4355 = vpack.c.bf16 %v4347, %v4347
      %v4356 = vpack.c.bf16 %v4348, %v4348
      %v4357 = vpack.c.bf16 %v4349, %v4349
      %v4358 = vld [vmem:[%s3235 + $0x2] sm:$0xff]
      %v4359 = vld [vmem:[%s3235 + $0x12] sm:$0xff]
      %v4360 = vld [vmem:[%s3235 + $0x22] sm:$0xff]
      %v4361 = vld [vmem:[%s3235 + $0x32] sm:$0xff]
      %v4362 = vld [vmem:[%s3235 + $0x42] sm:$0xff]
      %v4363 = vld [vmem:[%s3235 + $0x52] sm:$0xff]
      %v4364 = vld [vmem:[%s3235 + $0x62] sm:$0xff]
      %v4365 = vld [vmem:[%s3235 + $0x72] sm:$0xff]
      %v4366 = vpack.c.bf16 %v4358, %v4358
      %v4367 = vpack.c.bf16 %v4359, %v4359
      %v4368 = vpack.c.bf16 %v4360, %v4360
      %v4369 = vpack.c.bf16 %v4361, %v4361
      %v4370 = vpack.c.bf16 %v4362, %v4362
      %v4371 = vpack.c.bf16 %v4363, %v4363
      %v4372 = vpack.c.bf16 %v4364, %v4364
      %v4373 = vpack.c.bf16 %v4365, %v4365
      %v4382 = vunpack.c.l.b16 %v4238
      %v4383 = vunpack.c.l.b16 %v4239
      %v4384 = vunpack.c.l.b16 %v4240
      %v4385 = vunpack.c.l.b16 %v4241
      %v4386 = vunpack.c.l.b16 %v4242
      %v4387 = vunpack.c.l.b16 %v4243
      %v4388 = vunpack.c.l.b16 %v4244
      %v4389 = vunpack.c.l.b16 %v4245
      %v4390 = vpack.c.b16 %v4383, %v4382
      %v4391 = vpack.c.b16 %v4385, %v4384
      %v4392 = vpack.c.b16 %v4387, %v4386
      %v4393 = vpack.c.b16 %v4389, %v4388
      %v4402 = vunpack.c.l.b16 %v4254
      %v4403 = vunpack.c.l.b16 %v4255
      %v4404 = vunpack.c.l.b16 %v4256
      %v4405 = vunpack.c.l.b16 %v4257
      %v4406 = vunpack.c.l.b16 %v4258
      %v4407 = vunpack.c.l.b16 %v4259
      %v4408 = vunpack.c.l.b16 %v4260
      %v4409 = vunpack.c.l.b16 %v4261
      %v4410 = vpack.c.b16 %v4403, %v4402
      %v4411 = vpack.c.b16 %v4405, %v4404
      %v4412 = vpack.c.b16 %v4407, %v4406
      %v4413 = vpack.c.b16 %v4409, %v4408
      %4414 = vrot.lane.b32.xlu0 %v4410, 8
      %v4415 = vpop.permute.xlu0 %4414
      %4416 = vrot.lane.b32.xlu0 %v4411, 8
      %v4417 = vpop.permute.xlu0 %4416
      %4418 = vrot.lane.b32.xlu0 %v4412, 8
      %v4419 = vpop.permute.xlu0 %4418
      %4420 = vrot.lane.b32.xlu0 %v4413, 8
      %v4421 = vpop.permute.xlu0 %4420
      %v4430 = vunpack.c.l.b16 %v4270
      %v4431 = vunpack.c.l.b16 %v4271
      %v4432 = vunpack.c.l.b16 %v4272
      %v4433 = vunpack.c.l.b16 %v4273
      %v4434 = vunpack.c.l.b16 %v4274
      %v4435 = vunpack.c.l.b16 %v4275
      %v4436 = vunpack.c.l.b16 %v4276
      %v4437 = vunpack.c.l.b16 %v4277
      %v4438 = vpack.c.b16 %v4431, %v4430
      %v4439 = vpack.c.b16 %v4433, %v4432
      %v4440 = vpack.c.b16 %v4435, %v4434
      %v4441 = vpack.c.b16 %v4437, %v4436
      %4442 = vrot.lane.b32.xlu0 %v4438, 16
      %v4443 = vpop.permute.xlu0 %4442
      %4444 = vrot.lane.b32.xlu0 %v4439, 16
      %v4445 = vpop.permute.xlu0 %4444
      %4446 = vrot.lane.b32.xlu0 %v4440, 16
      %v4447 = vpop.permute.xlu0 %4446
      %4448 = vrot.lane.b32.xlu0 %v4441, 16
      %v4449 = vpop.permute.xlu0 %4448
      %v4458 = vunpack.c.l.b16 %v4286
      %v4459 = vunpack.c.l.b16 %v4287
      %v4460 = vunpack.c.l.b16 %v4288
      %v4461 = vunpack.c.l.b16 %v4289
      %v4462 = vunpack.c.l.b16 %v4290
      %v4463 = vunpack.c.l.b16 %v4291
      %v4464 = vunpack.c.l.b16 %v4292
      %v4465 = vunpack.c.l.b16 %v4293
      %v4466 = vpack.c.b16 %v4459, %v4458
      %v4467 = vpack.c.b16 %v4461, %v4460
      %v4468 = vpack.c.b16 %v4463, %v4462
      %v4469 = vpack.c.b16 %v4465, %v4464
      %4470 = vrot.lane.b32.xlu0 %v4466, 24
      %v4471 = vpop.permute.xlu0 %4470
      %4472 = vrot.lane.b32.xlu0 %v4467, 24
      %v4473 = vpop.permute.xlu0 %4472
      %4474 = vrot.lane.b32.xlu0 %v4468, 24
      %v4475 = vpop.permute.xlu0 %4474
      %4476 = vrot.lane.b32.xlu0 %v4469, 24
      %v4477 = vpop.permute.xlu0 %4476
      %v4486 = vunpack.c.l.b16 %v4302
      %v4487 = vunpack.c.l.b16 %v4303
      %v4488 = vunpack.c.l.b16 %v4304
      %v4489 = vunpack.c.l.b16 %v4305
      %v4490 = vunpack.c.l.b16 %v4306
      %v4491 = vunpack.c.l.b16 %v4307
      %v4492 = vunpack.c.l.b16 %v4308
      %v4493 = vunpack.c.l.b16 %v4309
      %v4494 = vpack.c.b16 %v4487, %v4486
      %v4495 = vpack.c.b16 %v4489, %v4488
      %v4496 = vpack.c.b16 %v4491, %v4490
      %v4497 = vpack.c.b16 %v4493, %v4492
      %4498 = vrot.lane.b32.xlu0 %v4494, 32
      %v4499 = vpop.permute.xlu0 %4498
      %4500 = vrot.lane.b32.xlu0 %v4495, 32
      %v4501 = vpop.permute.xlu0 %4500
      %4502 = vrot.lane.b32.xlu0 %v4496, 32
      %v4503 = vpop.permute.xlu0 %4502
      %4504 = vrot.lane.b32.xlu0 %v4497, 32
      %v4505 = vpop.permute.xlu0 %4504
      %v4514 = vunpack.c.l.b16 %v4318
      %v4515 = vunpack.c.l.b16 %v4319
      %v4516 = vunpack.c.l.b16 %v4320
      %v4517 = vunpack.c.l.b16 %v4321
      %v4518 = vunpack.c.l.b16 %v4322
      %v4519 = vunpack.c.l.b16 %v4323
      %v4520 = vunpack.c.l.b16 %v4324
      %v4521 = vunpack.c.l.b16 %v4325
      %v4522 = vpack.c.b16 %v4515, %v4514
      %v4523 = vpack.c.b16 %v4517, %v4516
      %v4524 = vpack.c.b16 %v4519, %v4518
      %v4525 = vpack.c.b16 %v4521, %v4520
      %4526 = vrot.lane.b32.xlu0 %v4522, 40
      %v4527 = vpop.permute.xlu0 %4526
      %4528 = vrot.lane.b32.xlu0 %v4523, 40
      %v4529 = vpop.permute.xlu0 %4528
      %4530 = vrot.lane.b32.xlu0 %v4524, 40
      %v4531 = vpop.permute.xlu0 %4530
      %4532 = vrot.lane.b32.xlu0 %v4525, 40
      %v4533 = vpop.permute.xlu0 %4532
      %v4542 = vunpack.c.l.b16 %v4334
      %v4543 = vunpack.c.l.b16 %v4335
      %v4544 = vunpack.c.l.b16 %v4336
      %v4545 = vunpack.c.l.b16 %v4337
      %v4546 = vunpack.c.l.b16 %v4338
      %v4547 = vunpack.c.l.b16 %v4339
      %v4548 = vunpack.c.l.b16 %v4340
      %v4549 = vunpack.c.l.b16 %v4341
      %v4550 = vpack.c.b16 %v4543, %v4542
      %v4551 = vpack.c.b16 %v4545, %v4544
      %v4552 = vpack.c.b16 %v4547, %v4546
      %v4553 = vpack.c.b16 %v4549, %v4548
      %4554 = vrot.lane.b32.xlu0 %v4550, 48
      %v4555 = vpop.permute.xlu0 %4554
      %4556 = vrot.lane.b32.xlu0 %v4551, 48
      %v4557 = vpop.permute.xlu0 %4556
      %4558 = vrot.lane.b32.xlu0 %v4552, 48
      %v4559 = vpop.permute.xlu0 %4558
      %4560 = vrot.lane.b32.xlu0 %v4553, 48
      %v4561 = vpop.permute.xlu0 %4560
      %v4570 = vunpack.c.l.b16 %v4350
      %v4571 = vunpack.c.l.b16 %v4351
      %v4572 = vunpack.c.l.b16 %v4352
      %v4573 = vunpack.c.l.b16 %v4353
      %v4574 = vunpack.c.l.b16 %v4354
      %v4575 = vunpack.c.l.b16 %v4355
      %v4576 = vunpack.c.l.b16 %v4356
      %v4577 = vunpack.c.l.b16 %v4357
      %v4578 = vpack.c.b16 %v4571, %v4570
      %v4579 = vpack.c.b16 %v4573, %v4572
      %v4580 = vpack.c.b16 %v4575, %v4574
      %v4581 = vpack.c.b16 %v4577, %v4576
      %4582 = vrot.lane.b32.xlu0 %v4578, 56
      %v4583 = vpop.permute.xlu0 %4582
      %4584 = vrot.lane.b32.xlu0 %v4579, 56
      %v4585 = vpop.permute.xlu0 %4584
      %4586 = vrot.lane.b32.xlu0 %v4580, 56
      %v4587 = vpop.permute.xlu0 %4586
      %4588 = vrot.lane.b32.xlu0 %v4581, 56
      %v4589 = vpop.permute.xlu0 %4588
      %v4598 = vunpack.c.l.b16 %v4366
      %v4599 = vunpack.c.l.b16 %v4367
      %v4600 = vunpack.c.l.b16 %v4368
      %v4601 = vunpack.c.l.b16 %v4369
      %v4602 = vunpack.c.l.b16 %v4370
      %v4603 = vunpack.c.l.b16 %v4371
      %v4604 = vunpack.c.l.b16 %v4372
      %v4605 = vunpack.c.l.b16 %v4373
      %v4606 = vpack.c.b16 %v4599, %v4598
      %v4607 = vpack.c.b16 %v4601, %v4600
      %v4608 = vpack.c.b16 %v4603, %v4602
      %v4609 = vpack.c.b16 %v4605, %v4604
      %4610 = vrot.lane.b32.xlu0 %v4606, 64
      %v4611 = vpop.permute.xlu0 %4610
      %4612 = vrot.lane.b32.xlu0 %v4607, 64
      %v4613 = vpop.permute.xlu0 %4612
      %4614 = vrot.lane.b32.xlu0 %v4608, 64
      %v4615 = vpop.permute.xlu0 %4614
      %4616 = vrot.lane.b32.xlu0 %v4609, 64
      %v4617 = vpop.permute.xlu0 %4616
      %v4620 = vsel %vm2098, %v4390, %v4415
      %v4623 = vsel %vm2098, %v4391, %v4417
      %v4626 = vsel %vm2098, %v4392, %v4419
      %v4629 = vsel %vm2098, %v4393, %v4421
      %v4631 = vsel %vm2164, %v4620, %v4443
      %v4633 = vsel %vm2164, %v4623, %v4445
      %v4635 = vsel %vm2164, %v4626, %v4447
      %v4637 = vsel %vm2164, %v4629, %v4449
      %v4639 = vsel %vm2230, %v4631, %v4471
      %v4641 = vsel %vm2230, %v4633, %v4473
      %v4643 = vsel %vm2230, %v4635, %v4475
      %v4645 = vsel %vm2230, %v4637, %v4477
      %v4647 = vsel %vm2296, %v4639, %v4499
      %v4649 = vsel %vm2296, %v4641, %v4501
      %v4651 = vsel %vm2296, %v4643, %v4503
      %v4653 = vsel %vm2296, %v4645, %v4505
      %v4655 = vsel %vm3564, %v4647, %v4527
      %v4657 = vsel %vm3564, %v4649, %v4529
      %v4659 = vsel %vm3564, %v4651, %v4531
      %v4661 = vsel %vm3564, %v4653, %v4533
      %v4663 = vsel %vm3573, %v4655, %v4555
      %v4665 = vsel %vm3573, %v4657, %v4557
      %v4667 = vsel %vm3573, %v4659, %v4559
      %v4669 = vsel %vm3573, %v4661, %v4561
      %v4671 = vsel %vm3582, %v4663, %v4583
      %v4673 = vsel %vm3582, %v4665, %v4585
      %v4675 = vsel %vm3582, %v4667, %v4587
      %v4677 = vsel %vm3582, %v4669, %v4589
      %v4679 = vsel %vm3591, %v4671, %v4611
      %v4681 = vsel %vm3591, %v4673, %v4613
      %v4683 = vsel %vm3591, %v4675, %v4615
      %v4685 = vsel %vm3591, %v4677, %v4617
      %v4686 = vld [vmem:[%s7] sm:$0xff]
      %v4687 = vld [vmem:[%s7 + $0x8] sm:$0xff]
      %v4688 = vld [vmem:[%s7 + $0x10] sm:$0xff]
      %v4689 = vld [vmem:[%s7 + $0x18] sm:$0xff]
      %v4690 = vld [vmem:[%s7 + $0x20] sm:$0xff]
      %v4691 = vld [vmem:[%s7 + $0x28] sm:$0xff]
      %v4692 = vld [vmem:[%s7 + $0x30] sm:$0xff]
      %v4693 = vld [vmem:[%s7 + $0x38] sm:$0xff]
      %v4694 = vld [vmem:[%s7 + $0x40] sm:$0xff]
      %v4695 = vpack.c.bf16 %v4687, %v4686
      %v4696 = vpack.c.bf16 %v4689, %v4688
      %v4697 = vpack.c.bf16 %v4691, %v4690
      %v4698 = vpack.c.bf16 %v4693, %v4692
      %v4699 = vpack.c.bf16 %v4694, %v4694
      %v4700 = vld [vmem:[%s8] sm:$0x1]
      %v4702 = vperm.slane %v4700, 0
      %v4704 = vsel %vm3618, %v4679, 0
      %v4706 = vsel %vm3618, %v4681, 0
      %v4708 = vsel %vm3618, %v4683, 0
      %v4710 = vsel %vm3618, %v4685, 0
      %v4713 = vsel %vm3627, %v4699, 0
      %4715 = vmatpush.bf16.msra.mxu0 0
      %4716 = vmatpush.bf16.msra.mxu0 0
      %4717 = vmatpush.bf16.msra.mxu0 0
      %4718 = vmatpush.bf16.msra.mxu0 %v4713
      %4719 = vmatpush.bf16.msra.mxu0 %v4698
      %4720 = vmatpush.bf16.msra.mxu0 %v4697
      %4721 = vmatpush.bf16.msra.mxu0 %v4696
      %4722 = vmatpush.bf16.msra.mxu0 %v4695
      %4723 = vmatmul.bf16.gmra.mxu0 %v4704
      %v4724 = vpop.f32.mrf.mxu0
      %v4725 = vadd.f32 %v4702, %v4724
      %v4726 = vpop.f32.mrf.mxu0
      %v4727 = vadd.f32 %v4702, %v4726
      %4728 = vmatmul.bf16.gmra.mxu0 %v4706
      %v4729 = vpop.f32.mrf.mxu0
      %v4730 = vadd.f32 %v4702, %v4729
      %v4731 = vpop.f32.mrf.mxu0
      %v4732 = vadd.f32 %v4702, %v4731
      %4733 = vmatmul.bf16.gmra.mxu0 %v4708
      %v4734 = vpop.f32.mrf.mxu0
      %v4735 = vadd.f32 %v4702, %v4734
      %v4736 = vpop.f32.mrf.mxu0
      %v4737 = vadd.f32 %v4702, %v4736
      %4738 = vmatmul.bf16.gmra.mxu0 %v4710
      %v4739 = vpop.f32.mrf.mxu0
      %v4740 = vadd.f32 %v4702, %v4739
      %v4741 = vpop.f32.mrf.mxu0
      %v4742 = vadd.f32 %v4702, %v4741
      %4743 = vdwg.mxu0
      %v4744 = vmax.f32 %v4725, 0.0
      %v4745 = vmax.f32 %v4727, 0.0
      %v4746 = vmax.f32 %v4730, 0.0
      %v4747 = vmax.f32 %v4732, 0.0
      %v4748 = vmax.f32 %v4735, 0.0
      %v4749 = vmax.f32 %v4737, 0.0
      %v4750 = vmax.f32 %v4740, 0.0
      %v4751 = vmax.f32 %v4742, 0.0
      %4752 = vst.msk [vmem:[%s3130 + $0x1] sm:$0xff] %vm2098, %v4744
      %4753 = vst.msk [vmem:[%s3130 + $0x11] sm:$0xff] %vm2098, %v4745
      %4754 = vst.msk [vmem:[%s3130 + $0x21] sm:$0xff] %vm2098, %v4746
      %4755 = vst.msk [vmem:[%s3130 + $0x31] sm:$0xff] %vm2098, %v4747
      %4756 = vst.msk [vmem:[%s3130 + $0x41] sm:$0xff] %vm2098, %v4748
      %4757 = vst.msk [vmem:[%s3130 + $0x51] sm:$0xff] %vm2098, %v4749
      %4758 = vst.msk [vmem:[%s3130 + $0x61] sm:$0xff] %vm2098, %v4750
      %4759 = vst.msk [vmem:[%s3130 + $0x71] sm:$0xff] %vm2098, %v4751
      %v4760 = vld [vmem:[#allocation4] sm:$0xff]
      %v4761 = vld [vmem:[#allocation4 + $0x10] sm:$0xff]
      %v4762 = vld [vmem:[#allocation4 + $0x20] sm:$0xff]
      %v4763 = vld [vmem:[#allocation4 + $0x30] sm:$0xff]
      %v4764 = vld [vmem:[#allocation4 + $0x40] sm:$0xff]
      %v4765 = vld [vmem:[#allocation4 + $0x50] sm:$0xff]
      %v4766 = vld [vmem:[#allocation4 + $0x60] sm:$0xff]
      %v4767 = vld [vmem:[#allocation4 + $0x70] sm:$0xff]
      %v4768 = vpack.c.bf16 %v4760, %v4760
      %v4769 = vpack.c.bf16 %v4761, %v4761
      %v4770 = vpack.c.bf16 %v4762, %v4762
      %v4771 = vpack.c.bf16 %v4763, %v4763
      %v4772 = vpack.c.bf16 %v4764, %v4764
      %v4773 = vpack.c.bf16 %v4765, %v4765
      %v4774 = vpack.c.bf16 %v4766, %v4766
      %v4775 = vpack.c.bf16 %v4767, %v4767
      %v4776 = vld [vmem:[#allocation4 + $0x1] sm:$0xff]
      %v4777 = vld [vmem:[#allocation4 + $0x11] sm:$0xff]
      %v4778 = vld [vmem:[#allocation4 + $0x21] sm:$0xff]
      %v4779 = vld [vmem:[#allocation4 + $0x31] sm:$0xff]
      %v4780 = vld [vmem:[#allocation4 + $0x41] sm:$0xff]
      %v4781 = vld [vmem:[#allocation4 + $0x51] sm:$0xff]
      %v4782 = vld [vmem:[#allocation4 + $0x61] sm:$0xff]
      %v4783 = vld [vmem:[#allocation4 + $0x71] sm:$0xff]
      %v4784 = vpack.c.bf16 %v4776, %v4776
      %v4785 = vpack.c.bf16 %v4777, %v4777
      %v4786 = vpack.c.bf16 %v4778, %v4778
      %v4787 = vpack.c.bf16 %v4779, %v4779
      %v4788 = vpack.c.bf16 %v4780, %v4780
      %v4789 = vpack.c.bf16 %v4781, %v4781
      %v4790 = vpack.c.bf16 %v4782, %v4782
      %v4791 = vpack.c.bf16 %v4783, %v4783
      %v4792 = vld [vmem:[#allocation4 + $0x2] sm:$0xff]
      %v4793 = vld [vmem:[#allocation4 + $0x12] sm:$0xff]
      %v4794 = vld [vmem:[#allocation4 + $0x22] sm:$0xff]
      %v4795 = vld [vmem:[#allocation4 + $0x32] sm:$0xff]
      %v4796 = vld [vmem:[#allocation4 + $0x42] sm:$0xff]
      %v4797 = vld [vmem:[#allocation4 + $0x52] sm:$0xff]
      %v4798 = vld [vmem:[#allocation4 + $0x62] sm:$0xff]
      %v4799 = vld [vmem:[#allocation4 + $0x72] sm:$0xff]
      %v4800 = vpack.c.bf16 %v4792, %v4792
      %v4801 = vpack.c.bf16 %v4793, %v4793
      %v4802 = vpack.c.bf16 %v4794, %v4794
      %v4803 = vpack.c.bf16 %v4795, %v4795
      %v4804 = vpack.c.bf16 %v4796, %v4796
      %v4805 = vpack.c.bf16 %v4797, %v4797
      %v4806 = vpack.c.bf16 %v4798, %v4798
      %v4807 = vpack.c.bf16 %v4799, %v4799
      %v4808 = vld [vmem:[%s3130] sm:$0xff]
      %v4809 = vld [vmem:[%s3130 + $0x10] sm:$0xff]
      %v4810 = vld [vmem:[%s3130 + $0x20] sm:$0xff]
      %v4811 = vld [vmem:[%s3130 + $0x30] sm:$0xff]
      %v4812 = vld [vmem:[%s3130 + $0x40] sm:$0xff]
      %v4813 = vld [vmem:[%s3130 + $0x50] sm:$0xff]
      %v4814 = vld [vmem:[%s3130 + $0x60] sm:$0xff]
      %v4815 = vld [vmem:[%s3130 + $0x70] sm:$0xff]
      %v4816 = vpack.c.bf16 %v4808, %v4808
      %v4817 = vpack.c.bf16 %v4809, %v4809
      %v4818 = vpack.c.bf16 %v4810, %v4810
      %v4819 = vpack.c.bf16 %v4811, %v4811
      %v4820 = vpack.c.bf16 %v4812, %v4812
      %v4821 = vpack.c.bf16 %v4813, %v4813
      %v4822 = vpack.c.bf16 %v4814, %v4814
      %v4823 = vpack.c.bf16 %v4815, %v4815
      %v4824 = vld [vmem:[%s3130 + $0x1] sm:$0xff]
      %v4825 = vld [vmem:[%s3130 + $0x11] sm:$0xff]
      %v4826 = vld [vmem:[%s3130 + $0x21] sm:$0xff]
      %v4827 = vld [vmem:[%s3130 + $0x31] sm:$0xff]
      %v4828 = vld [vmem:[%s3130 + $0x41] sm:$0xff]
      %v4829 = vld [vmem:[%s3130 + $0x51] sm:$0xff]
      %v4830 = vld [vmem:[%s3130 + $0x61] sm:$0xff]
      %v4831 = vld [vmem:[%s3130 + $0x71] sm:$0xff]
      %v4832 = vpack.c.bf16 %v4824, %v4824
      %v4833 = vpack.c.bf16 %v4825, %v4825
      %v4834 = vpack.c.bf16 %v4826, %v4826
      %v4835 = vpack.c.bf16 %v4827, %v4827
      %v4836 = vpack.c.bf16 %v4828, %v4828
      %v4837 = vpack.c.bf16 %v4829, %v4829
      %v4838 = vpack.c.bf16 %v4830, %v4830
      %v4839 = vpack.c.bf16 %v4831, %v4831
      %v4840 = vld [vmem:[%s3130 + $0x2] sm:$0xff]
      %v4841 = vld [vmem:[%s3130 + $0x12] sm:$0xff]
      %v4842 = vld [vmem:[%s3130 + $0x22] sm:$0xff]
      %v4843 = vld [vmem:[%s3130 + $0x32] sm:$0xff]
      %v4844 = vld [vmem:[%s3130 + $0x42] sm:$0xff]
      %v4845 = vld [vmem:[%s3130 + $0x52] sm:$0xff]
      %v4846 = vld [vmem:[%s3130 + $0x62] sm:$0xff]
      %v4847 = vld [vmem:[%s3130 + $0x72] sm:$0xff]
      %v4848 = vpack.c.bf16 %v4840, %v4840
      %v4849 = vpack.c.bf16 %v4841, %v4841
      %v4850 = vpack.c.bf16 %v4842, %v4842
      %v4851 = vpack.c.bf16 %v4843, %v4843
      %v4852 = vpack.c.bf16 %v4844, %v4844
      %v4853 = vpack.c.bf16 %v4845, %v4845
      %v4854 = vpack.c.bf16 %v4846, %v4846
      %v4855 = vpack.c.bf16 %v4847, %v4847
      %v4856 = vld [vmem:[%s3235] sm:$0xff]
      %v4857 = vld [vmem:[%s3235 + $0x10] sm:$0xff]
      %v4858 = vld [vmem:[%s3235 + $0x20] sm:$0xff]
      %v4859 = vld [vmem:[%s3235 + $0x30] sm:$0xff]
      %v4860 = vld [vmem:[%s3235 + $0x40] sm:$0xff]
      %v4861 = vld [vmem:[%s3235 + $0x50] sm:$0xff]
      %v4862 = vld [vmem:[%s3235 + $0x60] sm:$0xff]
      %v4863 = vld [vmem:[%s3235 + $0x70] sm:$0xff]
      %v4864 = vpack.c.bf16 %v4856, %v4856
      %v4865 = vpack.c.bf16 %v4857, %v4857
      %v4866 = vpack.c.bf16 %v4858, %v4858
      %v4867 = vpack.c.bf16 %v4859, %v4859
      %v4868 = vpack.c.bf16 %v4860, %v4860
      %v4869 = vpack.c.bf16 %v4861, %v4861
      %v4870 = vpack.c.bf16 %v4862, %v4862
      %v4871 = vpack.c.bf16 %v4863, %v4863
      %v4872 = vld [vmem:[%s3235 + $0x1] sm:$0xff]
      %v4873 = vld [vmem:[%s3235 + $0x11] sm:$0xff]
      %v4874 = vld [vmem:[%s3235 + $0x21] sm:$0xff]
      %v4875 = vld [vmem:[%s3235 + $0x31] sm:$0xff]
      %v4876 = vld [vmem:[%s3235 + $0x41] sm:$0xff]
      %v4877 = vld [vmem:[%s3235 + $0x51] sm:$0xff]
      %v4878 = vld [vmem:[%s3235 + $0x61] sm:$0xff]
      %v4879 = vld [vmem:[%s3235 + $0x71] sm:$0xff]
      %v4880 = vpack.c.bf16 %v4872, %v4872
      %v4881 = vpack.c.bf16 %v4873, %v4873
      %v4882 = vpack.c.bf16 %v4874, %v4874
      %v4883 = vpack.c.bf16 %v4875, %v4875
      %v4884 = vpack.c.bf16 %v4876, %v4876
      %v4885 = vpack.c.bf16 %v4877, %v4877
      %v4886 = vpack.c.bf16 %v4878, %v4878
      %v4887 = vpack.c.bf16 %v4879, %v4879
      %v4888 = vld [vmem:[%s3235 + $0x2] sm:$0xff]
      %v4889 = vld [vmem:[%s3235 + $0x12] sm:$0xff]
      %v4890 = vld [vmem:[%s3235 + $0x22] sm:$0xff]
      %v4891 = vld [vmem:[%s3235 + $0x32] sm:$0xff]
      %v4892 = vld [vmem:[%s3235 + $0x42] sm:$0xff]
      %v4893 = vld [vmem:[%s3235 + $0x52] sm:$0xff]
      %v4894 = vld [vmem:[%s3235 + $0x62] sm:$0xff]
      %v4895 = vld [vmem:[%s3235 + $0x72] sm:$0xff]
      %v4896 = vpack.c.bf16 %v4888, %v4888
      %v4897 = vpack.c.bf16 %v4889, %v4889
      %v4898 = vpack.c.bf16 %v4890, %v4890
      %v4899 = vpack.c.bf16 %v4891, %v4891
      %v4900 = vpack.c.bf16 %v4892, %v4892
      %v4901 = vpack.c.bf16 %v4893, %v4893
      %v4902 = vpack.c.bf16 %v4894, %v4894
      %v4903 = vpack.c.bf16 %v4895, %v4895
      %v4912 = vunpack.c.l.b16 %v4768
      %v4913 = vunpack.c.l.b16 %v4769
      %v4914 = vunpack.c.l.b16 %v4770
      %v4915 = vunpack.c.l.b16 %v4771
      %v4916 = vunpack.c.l.b16 %v4772
      %v4917 = vunpack.c.l.b16 %v4773
      %v4918 = vunpack.c.l.b16 %v4774
      %v4919 = vunpack.c.l.b16 %v4775
      %v4920 = vpack.c.b16 %v4913, %v4912
      %v4921 = vpack.c.b16 %v4915, %v4914
      %v4922 = vpack.c.b16 %v4917, %v4916
      %v4923 = vpack.c.b16 %v4919, %v4918
      %v4932 = vunpack.c.l.b16 %v4784
      %v4933 = vunpack.c.l.b16 %v4785
      %v4934 = vunpack.c.l.b16 %v4786
      %v4935 = vunpack.c.l.b16 %v4787
      %v4936 = vunpack.c.l.b16 %v4788
      %v4937 = vunpack.c.l.b16 %v4789
      %v4938 = vunpack.c.l.b16 %v4790
      %v4939 = vunpack.c.l.b16 %v4791
      %v4940 = vpack.c.b16 %v4933, %v4932
      %v4941 = vpack.c.b16 %v4935, %v4934
      %v4942 = vpack.c.b16 %v4937, %v4936
      %v4943 = vpack.c.b16 %v4939, %v4938
      %4944 = vrot.lane.b32.xlu0 %v4940, 8
      %v4945 = vpop.permute.xlu0 %4944
      %4946 = vrot.lane.b32.xlu0 %v4941, 8
      %v4947 = vpop.permute.xlu0 %4946
      %4948 = vrot.lane.b32.xlu0 %v4942, 8
      %v4949 = vpop.permute.xlu0 %4948
      %4950 = vrot.lane.b32.xlu0 %v4943, 8
      %v4951 = vpop.permute.xlu0 %4950
      %v4960 = vunpack.c.l.b16 %v4800
      %v4961 = vunpack.c.l.b16 %v4801
      %v4962 = vunpack.c.l.b16 %v4802
      %v4963 = vunpack.c.l.b16 %v4803
      %v4964 = vunpack.c.l.b16 %v4804
      %v4965 = vunpack.c.l.b16 %v4805
      %v4966 = vunpack.c.l.b16 %v4806
      %v4967 = vunpack.c.l.b16 %v4807
      %v4968 = vpack.c.b16 %v4961, %v4960
      %v4969 = vpack.c.b16 %v4963, %v4962
      %v4970 = vpack.c.b16 %v4965, %v4964
      %v4971 = vpack.c.b16 %v4967, %v4966
      %4972 = vrot.lane.b32.xlu0 %v4968, 16
      %v4973 = vpop.permute.xlu0 %4972
      %4974 = vrot.lane.b32.xlu0 %v4969, 16
      %v4975 = vpop.permute.xlu0 %4974
      %4976 = vrot.lane.b32.xlu0 %v4970, 16
      %v4977 = vpop.permute.xlu0 %4976
      %4978 = vrot.lane.b32.xlu0 %v4971, 16
      %v4979 = vpop.permute.xlu0 %4978
      %v4988 = vunpack.c.l.b16 %v4816
      %v4989 = vunpack.c.l.b16 %v4817
      %v4990 = vunpack.c.l.b16 %v4818
      %v4991 = vunpack.c.l.b16 %v4819
      %v4992 = vunpack.c.l.b16 %v4820
      %v4993 = vunpack.c.l.b16 %v4821
      %v4994 = vunpack.c.l.b16 %v4822
      %v4995 = vunpack.c.l.b16 %v4823
      %v4996 = vpack.c.b16 %v4989, %v4988
      %v4997 = vpack.c.b16 %v4991, %v4990
      %v4998 = vpack.c.b16 %v4993, %v4992
      %v4999 = vpack.c.b16 %v4995, %v4994
      %5000 = vrot.lane.b32.xlu0 %v4996, 24
      %v5001 = vpop.permute.xlu0 %5000
      %5002 = vrot.lane.b32.xlu0 %v4997, 24
      %v5003 = vpop.permute.xlu0 %5002
      %5004 = vrot.lane.b32.xlu0 %v4998, 24
      %v5005 = vpop.permute.xlu0 %5004
      %5006 = vrot.lane.b32.xlu0 %v4999, 24
      %v5007 = vpop.permute.xlu0 %5006
      %v5016 = vunpack.c.l.b16 %v4832
      %v5017 = vunpack.c.l.b16 %v4833
      %v5018 = vunpack.c.l.b16 %v4834
      %v5019 = vunpack.c.l.b16 %v4835
      %v5020 = vunpack.c.l.b16 %v4836
      %v5021 = vunpack.c.l.b16 %v4837
      %v5022 = vunpack.c.l.b16 %v4838
      %v5023 = vunpack.c.l.b16 %v4839
      %v5024 = vpack.c.b16 %v5017, %v5016
      %v5025 = vpack.c.b16 %v5019, %v5018
      %v5026 = vpack.c.b16 %v5021, %v5020
      %v5027 = vpack.c.b16 %v5023, %v5022
      %5028 = vrot.lane.b32.xlu0 %v5024, 32
      %v5029 = vpop.permute.xlu0 %5028
      %5030 = vrot.lane.b32.xlu0 %v5025, 32
      %v5031 = vpop.permute.xlu0 %5030
      %5032 = vrot.lane.b32.xlu0 %v5026, 32
      %v5033 = vpop.permute.xlu0 %5032
      %5034 = vrot.lane.b32.xlu0 %v5027, 32
      %v5035 = vpop.permute.xlu0 %5034
      %v5044 = vunpack.c.l.b16 %v4848
      %v5045 = vunpack.c.l.b16 %v4849
      %v5046 = vunpack.c.l.b16 %v4850
      %v5047 = vunpack.c.l.b16 %v4851
      %v5048 = vunpack.c.l.b16 %v4852
      %v5049 = vunpack.c.l.b16 %v4853
      %v5050 = vunpack.c.l.b16 %v4854
      %v5051 = vunpack.c.l.b16 %v4855
      %v5052 = vpack.c.b16 %v5045, %v5044
      %v5053 = vpack.c.b16 %v5047, %v5046
      %v5054 = vpack.c.b16 %v5049, %v5048
      %v5055 = vpack.c.b16 %v5051, %v5050
      %5056 = vrot.lane.b32.xlu0 %v5052, 40
      %v5057 = vpop.permute.xlu0 %5056
      %5058 = vrot.lane.b32.xlu0 %v5053, 40
      %v5059 = vpop.permute.xlu0 %5058
      %5060 = vrot.lane.b32.xlu0 %v5054, 40
      %v5061 = vpop.permute.xlu0 %5060
      %5062 = vrot.lane.b32.xlu0 %v5055, 40
      %v5063 = vpop.permute.xlu0 %5062
      %v5072 = vunpack.c.l.b16 %v4864
      %v5073 = vunpack.c.l.b16 %v4865
      %v5074 = vunpack.c.l.b16 %v4866
      %v5075 = vunpack.c.l.b16 %v4867
      %v5076 = vunpack.c.l.b16 %v4868
      %v5077 = vunpack.c.l.b16 %v4869
      %v5078 = vunpack.c.l.b16 %v4870
      %v5079 = vunpack.c.l.b16 %v4871
      %v5080 = vpack.c.b16 %v5073, %v5072
      %v5081 = vpack.c.b16 %v5075, %v5074
      %v5082 = vpack.c.b16 %v5077, %v5076
      %v5083 = vpack.c.b16 %v5079, %v5078
      %5084 = vrot.lane.b32.xlu0 %v5080, 48
      %v5085 = vpop.permute.xlu0 %5084
      %5086 = vrot.lane.b32.xlu0 %v5081, 48
      %v5087 = vpop.permute.xlu0 %5086
      %5088 = vrot.lane.b32.xlu0 %v5082, 48
      %v5089 = vpop.permute.xlu0 %5088
      %5090 = vrot.lane.b32.xlu0 %v5083, 48
      %v5091 = vpop.permute.xlu0 %5090
      %v5100 = vunpack.c.l.b16 %v4880
      %v5101 = vunpack.c.l.b16 %v4881
      %v5102 = vunpack.c.l.b16 %v4882
      %v5103 = vunpack.c.l.b16 %v4883
      %v5104 = vunpack.c.l.b16 %v4884
      %v5105 = vunpack.c.l.b16 %v4885
      %v5106 = vunpack.c.l.b16 %v4886
      %v5107 = vunpack.c.l.b16 %v4887
      %v5108 = vpack.c.b16 %v5101, %v5100
      %v5109 = vpack.c.b16 %v5103, %v5102
      %v5110 = vpack.c.b16 %v5105, %v5104
      %v5111 = vpack.c.b16 %v5107, %v5106
      %5112 = vrot.lane.b32.xlu0 %v5108, 56
      %v5113 = vpop.permute.xlu0 %5112
      %5114 = vrot.lane.b32.xlu0 %v5109, 56
      %v5115 = vpop.permute.xlu0 %5114
      %5116 = vrot.lane.b32.xlu0 %v5110, 56
      %v5117 = vpop.permute.xlu0 %5116
      %5118 = vrot.lane.b32.xlu0 %v5111, 56
      %v5119 = vpop.permute.xlu0 %5118
      %v5128 = vunpack.c.l.b16 %v4896
      %v5129 = vunpack.c.l.b16 %v4897
      %v5130 = vunpack.c.l.b16 %v4898
      %v5131 = vunpack.c.l.b16 %v4899
      %v5132 = vunpack.c.l.b16 %v4900
      %v5133 = vunpack.c.l.b16 %v4901
      %v5134 = vunpack.c.l.b16 %v4902
      %v5135 = vunpack.c.l.b16 %v4903
      %v5136 = vpack.c.b16 %v5129, %v5128
      %v5137 = vpack.c.b16 %v5131, %v5130
      %v5138 = vpack.c.b16 %v5133, %v5132
      %v5139 = vpack.c.b16 %v5135, %v5134
      %5140 = vrot.lane.b32.xlu0 %v5136, 64
      %v5141 = vpop.permute.xlu0 %5140
      %5142 = vrot.lane.b32.xlu0 %v5137, 64
      %v5143 = vpop.permute.xlu0 %5142
      %5144 = vrot.lane.b32.xlu0 %v5138, 64
      %v5145 = vpop.permute.xlu0 %5144
      %5146 = vrot.lane.b32.xlu0 %v5139, 64
      %v5147 = vpop.permute.xlu0 %5146
      %v5150 = vsel %vm2098, %v4920, %v4945
      %v5153 = vsel %vm2098, %v4921, %v4947
      %v5156 = vsel %vm2098, %v4922, %v4949
      %v5159 = vsel %vm2098, %v4923, %v4951
      %v5161 = vsel %vm2164, %v5150, %v4973
      %v5163 = vsel %vm2164, %v5153, %v4975
      %v5165 = vsel %vm2164, %v5156, %v4977
      %v5167 = vsel %vm2164, %v5159, %v4979
      %v5169 = vsel %vm2230, %v5161, %v5001
      %v5171 = vsel %vm2230, %v5163, %v5003
      %v5173 = vsel %vm2230, %v5165, %v5005
      %v5175 = vsel %vm2230, %v5167, %v5007
      %v5177 = vsel %vm2296, %v5169, %v5029
      %v5179 = vsel %vm2296, %v5171, %v5031
      %v5181 = vsel %vm2296, %v5173, %v5033
      %v5183 = vsel %vm2296, %v5175, %v5035
      %v5185 = vsel %vm3564, %v5177, %v5057
      %v5187 = vsel %vm3564, %v5179, %v5059
      %v5189 = vsel %vm3564, %v5181, %v5061
      %v5191 = vsel %vm3564, %v5183, %v5063
      %v5193 = vsel %vm3573, %v5185, %v5085
      %v5195 = vsel %vm3573, %v5187, %v5087
      %v5197 = vsel %vm3573, %v5189, %v5089
      %v5199 = vsel %vm3573, %v5191, %v5091
      %v5201 = vsel %vm3582, %v5193, %v5113
      %v5203 = vsel %vm3582, %v5195, %v5115
      %v5205 = vsel %vm3582, %v5197, %v5117
      %v5207 = vsel %vm3582, %v5199, %v5119
      %v5209 = vsel %vm3591, %v5201, %v5141
      %v5211 = vsel %vm3591, %v5203, %v5143
      %v5213 = vsel %vm3591, %v5205, %v5145
      %v5215 = vsel %vm3591, %v5207, %v5147
      %v5216 = vld [vmem:[%s9] sm:$0xff]
      %v5217 = vld [vmem:[%s9 + $0x8] sm:$0xff]
      %v5218 = vld [vmem:[%s9 + $0x10] sm:$0xff]
      %v5219 = vld [vmem:[%s9 + $0x18] sm:$0xff]
      %v5220 = vld [vmem:[%s9 + $0x20] sm:$0xff]
      %v5221 = vld [vmem:[%s9 + $0x28] sm:$0xff]
      %v5222 = vld [vmem:[%s9 + $0x30] sm:$0xff]
      %v5223 = vld [vmem:[%s9 + $0x38] sm:$0xff]
      %v5224 = vld [vmem:[%s9 + $0x40] sm:$0xff]
      %v5225 = vpack.c.bf16 %v5217, %v5216
      %v5226 = vpack.c.bf16 %v5219, %v5218
      %v5227 = vpack.c.bf16 %v5221, %v5220
      %v5228 = vpack.c.bf16 %v5223, %v5222
      %v5229 = vpack.c.bf16 %v5224, %v5224
      %v5230 = vld [vmem:[%s10] sm:$0x1]
      %v5232 = vperm.slane %v5230, 0
      %v5234 = vsel %vm3618, %v5209, 0
      %v5236 = vsel %vm3618, %v5211, 0
      %v5238 = vsel %vm3618, %v5213, 0
      %v5240 = vsel %vm3618, %v5215, 0
      %v5243 = vsel %vm3627, %v5229, 0
      %5245 = vmatpush.bf16.msra.mxu0 0
      %5246 = vmatpush.bf16.msra.mxu0 0
      %5247 = vmatpush.bf16.msra.mxu0 0
      %5248 = vmatpush.bf16.msra.mxu0 %v5243
      %5249 = vmatpush.bf16.msra.mxu0 %v5228
      %5250 = vmatpush.bf16.msra.mxu0 %v5227
      %5251 = vmatpush.bf16.msra.mxu0 %v5226
      %5252 = vmatpush.bf16.msra.mxu0 %v5225
      %5253 = vmatmul.bf16.gmra.mxu0 %v5234
      %v5254 = vpop.f32.mrf.mxu0
      %v5255 = vadd.f32 %v5232, %v5254
      %v5256 = vpop.f32.mrf.mxu0
      %v5257 = vadd.f32 %v5232, %v5256
      %5258 = vmatmul.bf16.gmra.mxu0 %v5236
      %v5259 = vpop.f32.mrf.mxu0
      %v5260 = vadd.f32 %v5232, %v5259
      %v5261 = vpop.f32.mrf.mxu0
      %v5262 = vadd.f32 %v5232, %v5261
      %5263 = vmatmul.bf16.gmra.mxu0 %v5238
      %v5264 = vpop.f32.mrf.mxu0
      %v5265 = vadd.f32 %v5232, %v5264
      %v5266 = vpop.f32.mrf.mxu0
      %v5267 = vadd.f32 %v5232, %v5266
      %5268 = vmatmul.bf16.gmra.mxu0 %v5240
      %v5269 = vpop.f32.mrf.mxu0
      %v5270 = vadd.f32 %v5232, %v5269
      %v5271 = vpop.f32.mrf.mxu0
      %v5272 = vadd.f32 %v5232, %v5271
      %5273 = vdwg.mxu0
      %v5274 = vadd.f32 %v5255, %v4206
      %v5275 = vadd.f32 %v5257, %v4207
      %v5276 = vadd.f32 %v5260, %v4208
      %v5277 = vadd.f32 %v5262, %v4209
      %v5278 = vadd.f32 %v5265, %v4210
      %v5279 = vadd.f32 %v5267, %v4211
      %v5280 = vadd.f32 %v5270, %v4212
      %v5281 = vadd.f32 %v5272, %v4213
      %v5282 = vrot.slane %v5276, 4
      %vm5283 = vcmask 1047556
      %v5284 = vsel %vm5283, %v5282, %v5274
      %v5285 = vrot.slane %v5274, 4
      %v5286 = vsel %vm5283, %v5276, %v5285
      %v5288 = vunpack.c.l.s4 1983009808
      %v5289 = vunpack.c.0.s8 %v5288
      %v5290 = vperm.slane %v5284, %v5289
      %v5292 = vunpack.c.l.s4 1983009808
      %v5293 = vunpack.c.0.s8 %v5292
      %v5294 = vperm.slane %v5286, %v5293
      %v5295 = vrot.slane %v5277, 4
      %v5296 = vsel %vm5283, %v5295, %v5275
      %v5297 = vrot.slane %v5275, 4
      %v5298 = vsel %vm5283, %v5277, %v5297
      %v5300 = vunpack.c.l.s4 1983009808
      %v5301 = vunpack.c.0.s8 %v5300
      %v5302 = vperm.slane %v5296, %v5301
      %v5304 = vunpack.c.l.s4 1983009808
      %v5305 = vunpack.c.0.s8 %v5304
      %v5306 = vperm.slane %v5298, %v5305
      %v5307 = vrot.slane %v5280, 4
      %v5308 = vsel %vm5283, %v5307, %v5278
      %v5309 = vrot.slane %v5278, 4
      %v5310 = vsel %vm5283, %v5280, %v5309
      %v5312 = vunpack.c.l.s4 1983009808
      %v5313 = vunpack.c.0.s8 %v5312
      %v5314 = vperm.slane %v5308, %v5313
      %v5316 = vunpack.c.l.s4 1983009808
      %v5317 = vunpack.c.0.s8 %v5316
      %v5318 = vperm.slane %v5310, %v5317
      %v5319 = vrot.slane %v5281, 4
      %v5320 = vsel %vm5283, %v5319, %v5279
      %v5321 = vrot.slane %v5279, 4
      %v5322 = vsel %vm5283, %v5281, %v5321
      %v5324 = vunpack.c.l.s4 1983009808
      %v5325 = vunpack.c.0.s8 %v5324
      %v5326 = vperm.slane %v5320, %v5325
      %v5328 = vunpack.c.l.s4 1983009808
      %v5329 = vunpack.c.0.s8 %v5328
      %v5330 = vperm.slane %v5322, %v5329
      %v5331 = vrot.slane %v5302, 4
      %v5332 = vsel %vm5283, %v5331, %v5290
      %v5333 = vrot.slane %v5290, 4
      %v5334 = vsel %vm5283, %v5302, %v5333
      %v5336 = vunpack.c.l.s4 1934713408
      %v5337 = vunpack.c.0.s8 %v5336
      %v5338 = vperm.slane %v5332, %v5337
      %v5340 = vunpack.c.l.s4 1934713408
      %v5341 = vunpack.c.0.s8 %v5340
      %v5342 = vperm.slane %v5334, %v5341
      %v5343 = vrot.slane %v5306, 4
      %v5344 = vsel %vm5283, %v5343, %v5294
      %v5345 = vrot.slane %v5294, 4
      %v5346 = vsel %vm5283, %v5306, %v5345
      %v5348 = vunpack.c.l.s4 1934713408
      %v5349 = vunpack.c.0.s8 %v5348
      %v5350 = vperm.slane %v5344, %v5349
      %v5352 = vunpack.c.l.s4 1934713408
      %v5353 = vunpack.c.0.s8 %v5352
      %v5354 = vperm.slane %v5346, %v5353
      %v5355 = vrot.slane %v5326, 4
      %v5356 = vsel %vm5283, %v5355, %v5314
      %v5357 = vrot.slane %v5314, 4
      %v5358 = vsel %vm5283, %v5326, %v5357
      %v5360 = vunpack.c.l.s4 1934713408
      %v5361 = vunpack.c.0.s8 %v5360
      %v5362 = vperm.slane %v5356, %v5361
      %v5364 = vunpack.c.l.s4 1934713408
      %v5365 = vunpack.c.0.s8 %v5364
      %v5366 = vperm.slane %v5358, %v5365
      %v5367 = vrot.slane %v5330, 4
      %v5368 = vsel %vm5283, %v5367, %v5318
      %v5369 = vrot.slane %v5318, 4
      %v5370 = vsel %vm5283, %v5330, %v5369
      %v5372 = vunpack.c.l.s4 1934713408
      %v5373 = vunpack.c.0.s8 %v5372
      %v5374 = vperm.slane %v5368, %v5373
      %v5376 = vunpack.c.l.s4 1934713408
      %v5377 = vunpack.c.0.s8 %v5376
      %v5378 = vperm.slane %v5370, %v5377
      %v5379 = vrot.slane %v5362, 4
      %v5380 = vsel %vm5283, %v5379, %v5338
      %v5381 = vrot.slane %v5338, 4
      %v5382 = vsel %vm5283, %v5362, %v5381
      %v5383 = vrot.slane %v5366, 4
      %v5384 = vsel %vm5283, %v5383, %v5342
      %v5385 = vrot.slane %v5342, 4
      %v5386 = vsel %vm5283, %v5366, %v5385
      %v5387 = vrot.slane %v5374, 4
      %v5388 = vsel %vm5283, %v5387, %v5350
      %v5389 = vrot.slane %v5350, 4
      %v5390 = vsel %vm5283, %v5374, %v5389
      %v5391 = vrot.slane %v5378, 4
      %v5392 = vsel %vm5283, %v5391, %v5354
      %v5393 = vrot.slane %v5354, 4
      %v5394 = vsel %vm5283, %v5378, %v5393
      %5396 = vrot.lane.b32.xlu0 %v5382, 8
      %v5397 = vpop.permute.xlu0 %5396
      %5400 = vrot.lane.b32.xlu0 %v5384, 16
      %v5401 = vpop.permute.xlu0 %5400
      %5404 = vrot.lane.b32.xlu0 %v5386, 24
      %v5405 = vpop.permute.xlu0 %5404
      %5408 = vrot.lane.b32.xlu0 %v5388, 32
      %v5409 = vpop.permute.xlu0 %5408
      %5412 = vrot.lane.b32.xlu0 %v5390, 40
      %v5413 = vpop.permute.xlu0 %5412
      %5416 = vrot.lane.b32.xlu0 %v5392, 48
      %v5417 = vpop.permute.xlu0 %5416
      %5420 = vrot.lane.b32.xlu0 %v5394, 56
      %v5421 = vpop.permute.xlu0 %5420
      %v5423 = vsel %vm2098, %v5380, %v5397
      %v5424 = vsel %vm2164, %v5423, %v5401
      %v5425 = vsel %vm2230, %v5424, %v5405
      %v5426 = vsel %vm2296, %v5425, %v5409
      %v5427 = vsel %vm3564, %v5426, %v5413
      %v5428 = vsel %vm3573, %v5427, %v5417
      %v5429 = vsel %vm3582, %v5428, %v5421
      %5430 = vst.msk [vmem:[%s384] sm:$0xff] %vm3591, %v5429
      %p5431 = scmp.lt.s32.totalorder %s22, 1
      %s5432 = scalar_select %p5431, %s22, 1
      %s5433 = smul.addr %s5432, 8
      %s5434 = scalar_lea.vmem %s11, %s5433
      // Predicated region
      $region65: #{impala_block.1} parent=63 // pred_check
        %p5435 = pneg %p276
      $region66: #{impala_block.1} parent=63 // pred_check_branch
        %5437 = sbr.rel (%p5435) target = $region68
      $region67: #{impala_block.1} parent=63 // pred_region
        _
      $region68: #{impala_block.1} parent=63 // pred_fallthru
        _
    $region64: #{impala_block.1} parent=5 // pred_fallthru
      _
    %p5438 = scmp.le.s32.totalorder 2, %s17
    // Predicated region
    $region69: #{impala_block.1} parent=5 // pred_check
      %p5439 = pneg %p5438
    $region70: #{impala_block.1} parent=5 // pred_check_branch
      %5441 = sbr.rel (%p5439) target = $region72
    $region71: #{impala_block.1} parent=5 // pred_region
      %s5442 = ssub.s32 %s17, 2
      // Predicated region
      $region73: #{impala_block.1} parent=71 // pred_check
        %p5443 = pneg %p282
      $region74: #{impala_block.1} parent=71 // pred_check_branch
        %5445 = sbr.rel (%p5443) target = $region76
      $region75: #{impala_block.1} parent=71 // pred_region
        %p5446 = scmp.lt.s32.totalorder %s23, 1
        %s5447 = scalar_select %p5446, %s23, 1
        %s5448 = smul.addr %s5447, 8
        %s5449 = scalar_lea.vmem %s11, %s5448
      $region76: #{impala_block.1} parent=71 // pred_fallthru
        _
    $region72: #{impala_block.1} parent=5 // pred_fallthru
      _
  $region6: #{impala_block.1} parent=0 // loop_footer
    %s21 = sadd.s32 1, %s17
  $region7: #{impala_block.1} parent=0 // loop_footer_branch
    %16 = sbr.rel target = $region3
  $region8: #{impala_block.1} parent=0 // loop_exit
    _

</llo_original>
